<compile_context>
chip_gen: v7x
topology: tpu7x:2x2x1
jax: 0.10.0
libtpu: 0.0.40
codegen_flags: <defaults>
</compile_context>

<pallas_src>
import math

import jax
import jax.numpy as jnp
from jax.experimental import pallas as pl
from jax.experimental.pallas import tpu as pltpu  # noqa: F401  (no TPU-specific params needed at this size)

# ---------------- synthetic BERT config ----------------
VOCAB = 50
HIDDEN = 32
NHEADS = 4
DHEAD = HIDDEN // NHEADS
NLAYERS = 2
INTER = 64
SEQ = 8
MAXPOS = 16
NEG_SAMPLES = 2
DOC_SECTION = NEG_SAMPLES + 1          # training_neg_samples + 1
BATCH = 2 * DOC_SECTION                # bs=2 positive rows, rest negatives
BS = BATCH * SEQ                       # flattened token count
LN_EPS = 1e-12
VEC_PAD = 128                          # lane-aligned row width for the packed vector slab


# ---------------- fused whole-model kernel ----------------

def _bert_cross_kernel(emb_ref, bias_ref, misc_ref, lvec_ref,
                       wqkv_ref, wo_ref, w1_ref, w2_ref, headw_ref,
                       out_ref):
    bias = bias_ref[...]                                   # [BS, BS] combined mask
    misc = misc_ref[...]                                   # [4, H]: emb_g, emb_b, pool_b, cls_b

    def ln(y, g, b):
        mu = jnp.mean(y, axis=-1, keepdims=True)
        yc = y - mu
        var = jnp.mean(yc * yc, axis=-1, keepdims=True)
        return yc * jax.lax.rsqrt(var + LN_EPS) * g + b

    def mm(a, w_bf16):
        # bf16 MXU operands, f32 accumulate.
        return jnp.dot(a.astype(jnp.bfloat16), w_bf16,
                       preferred_element_type=jnp.float32)

    # embedding LayerNorm
    x = ln(emb_ref[...], misc[0:1, :], misc[1:2, :])        # [BS, H] f32

    for l in range(NLAYERS):
        lv = lvec_ref[l]                                    # [8, 128] packed per-layer vectors

        # ---- fused QKV projection (scale already folded into Q weight/bias) ----
        qkv = mm(x, wqkv_ref[l]) + lv[0:1, 0:3 * HIDDEN]    # [BS, 3H] f32

        # ---- per-head scores; one softmax pass over all heads ----
        s_parts = []
        v_parts = []
        for h in range(NHEADS):
            qh = qkv[:, h * DHEAD:(h + 1) * DHEAD]
            kh = qkv[:, HIDDEN + h * DHEAD:HIDDEN + (h + 1) * DHEAD]
            v_parts.append(
                qkv[:, 2 * HIDDEN + h * DHEAD:2 * HIDDEN + (h + 1) * DHEAD]
                .astype(jnp.bfloat16))
            s = jax.lax.dot_general(                        # q @ k^T
                qh.astype(jnp.bfloat16), kh.astype(jnp.bfloat16),
                (((1,), (1,)), ((), ())),
                preferred_element_type=jnp.float32)         # [BS, BS]
            s_parts.append(s + bias)                        # mask cross-batch + padded keys
        s_all = jnp.concatenate(s_parts, axis=0)            # [NHEADS*BS, BS]
        s_all = s_all - jnp.max(s_all, axis=-1, keepdims=True)
        p_all = jnp.exp(s_all)
        p_all = p_all * pl.reciprocal(jnp.sum(p_all, axis=-1, keepdims=True),
                                      approx=True)
        p_all = p_all.astype(jnp.bfloat16)

        # ---- per-head context -> lane concat -> single output projection ----
        ctx = jnp.concatenate(
            [jnp.dot(p_all[h * BS:(h + 1) * BS, :], v_parts[h],
                     preferred_element_type=jnp.float32)
             for h in range(NHEADS)],
            axis=-1)                                        # [BS, H] f32
        attn = mm(ctx, wo_ref[l]) + lv[1:2, 0:HIDDEN]

        # ---- residual + LayerNorm (fused epilogue) ----
        x = ln(x + attn, lv[2:3, 0:HIDDEN], lv[3:4, 0:HIDDEN])

        # ---- feed-forward ----
        hdn = mm(x, w1_ref[l]) + lv[4:5, 0:INTER]           # [BS, INTER]
        # TODO(synk): HF BERT default is exact erf-GELU; tanh approximation used here.
        hdn = 0.5 * hdn * (1.0 + jnp.tanh(0.7978845608028654 *
                                          (hdn + 0.044715 * hdn * hdn * hdn)))
        ffn = mm(hdn, w2_ref[l]) + lv[5:6, 0:HIDDEN]
        x = ln(x + ffn, lv[6:7, 0:HIDDEN], lv[7:8, 0:HIDDEN])

    # ---- pooler (CLS token via strided sublane gather) + classifier head ----
    nrows = x.shape[0] // SEQ
    cls = x.reshape(nrows, SEQ, HIDDEN)[:, 0, :]            # [B, H]
    hw = headw_ref[...]                                     # [H, H+1] bf16: pool_w | cls_w
    pooled = jnp.tanh(mm(cls, hw[:, 0:HIDDEN]) + misc[2:3, :])
    logits = mm(pooled, hw[:, HIDDEN:HIDDEN + 1]) + misc[3:4, 0:1]   # [B, 1]
    out_ref[...] = logits.astype(out_ref.dtype)


# ---------------- parameter init (deterministic, synthetic) ----------------

def init_params(key):
    keys = iter(jax.random.split(key, 8 + NLAYERS * 8))

    def dense(fan_in, fan_out):
        w = jax.random.normal(next(keys), (fan_in, fan_out), jnp.float32) * 0.02
        b = jnp.zeros((fan_out,), jnp.float32)
        return w, b

    params = {
        "word_emb": jax.random.normal(next(keys), (VOCAB, HIDDEN), jnp.float32) * 0.02,
        "pos_emb": jax.random.normal(next(keys), (MAXPOS, HIDDEN), jnp.float32) * 0.02,
        "type_emb": jax.random.normal(next(keys), (2, HIDDEN), jnp.float32) * 0.02,
        "emb_ln_g": jnp.ones((HIDDEN,), jnp.float32),
        "emb_ln_b": jnp.zeros((HIDDEN,), jnp.float32),
        "layers": [],
    }
    for _ in range(NLAYERS):
        wq, bq = dense(HIDDEN, HIDDEN)
        wk, bk = dense(HIDDEN, HIDDEN)
        wv, bv = dense(HIDDEN, HIDDEN)
        wo, bo = dense(HIDDEN, HIDDEN)
        w1, b1 = dense(HIDDEN, INTER)
        w2, b2 = dense(INTER, HIDDEN)
        params["layers"].append({
            "wq": wq, "bq": bq, "wk": wk, "bk": bk, "wv": wv, "bv": bv,
            "wo": wo, "bo": bo,
            "ln1_g": jnp.ones((HIDDEN,), jnp.float32), "ln1_b": jnp.zeros((HIDDEN,), jnp.float32),
            "w1": w1, "b1": b1, "w2": w2, "b2": b2,
            "ln2_g": jnp.ones((HIDDEN,), jnp.float32), "ln2_b": jnp.zeros((HIDDEN,), jnp.float32),
        })
    wp, bp = dense(HIDDEN, HIDDEN)         # pooler
    wc, bc = dense(HIDDEN, 1)              # classifier head (num_labels = 1)
    params.update({"pool_w": wp, "pool_b": bp, "cls_w": wc, "cls_b": bc})
    return params


# ---------------- BertCross.forward ----------------

def bert_cross_forward(params, input_ids, attention_mask, mode="train"):
    B, S = input_ids.shape
    bf16 = jnp.bfloat16
    f32 = jnp.float32
    scale = 1.0 / math.sqrt(DHEAD)

    # Embedding gather stays in XLA (glue); everything else is one fused Pallas call.
    emb = (params["word_emb"][input_ids]
           + params["pos_emb"][jnp.arange(S)][None, :, :]
           + params["type_emb"][0][None, None, :])
    emb = emb.reshape(B * S, HIDDEN).astype(f32)

    # Combined attention bias [BS, BS]: 0 for same-batch & unmasked key, -1e9 otherwise.
    keep = attention_mask.astype(f32).reshape(B * S)
    bidx = jnp.repeat(jnp.arange(B), S)
    same = (bidx[:, None] == bidx[None, :]).astype(f32)
    attn_bias = (same * keep[None, :] - 1.0) * 1e9

    L = params["layers"]

    def padr(v, n):
        return jnp.pad(v, (0, n - v.shape[0]))

    # --- big weights (bf16, layer-stacked) ---
    wqkv = jnp.stack([jnp.concatenate([l["wq"] * scale, l["wk"], l["wv"]], axis=1)
                      for l in L]).astype(bf16)                       # [NL, H, 3H]
    wo = jnp.stack([l["wo"] for l in L]).astype(bf16)                 # [NL, H, H]
    w1 = jnp.stack([l["w1"] for l in L]).astype(bf16)                 # [NL, H, INTER]
    w2 = jnp.stack([l["w2"] for l in L]).astype(bf16)                 # [NL, INTER, H]

    # --- all per-layer bias / LN vectors packed into one slab [NL, 8, 128] ---
    layer_vecs = jnp.stack([
        jnp.stack([
            padr(jnp.concatenate([l["bq"] * scale, l["bk"], l["bv"]]), VEC_PAD),
            padr(l["bo"], VEC_PAD),
            padr(l["ln1_g"], VEC_PAD),
            padr(l["ln1_b"], VEC_PAD),
            padr(l["b1"], VEC_PAD),
            padr(l["b2"], VEC_PAD),
            padr(l["ln2_g"], VEC_PAD),
            padr(l["ln2_b"], VEC_PAD),
        ]) for l in L]).astype(f32)                                   # [NL, 8, 128]

    # --- misc vectors: emb LN gamma/beta, pooler bias, classifier bias ---
    misc_vecs = jnp.stack([
        params["emb_ln_g"], params["emb_ln_b"], params["pool_b"],
        padr(params["cls_b"], HIDDEN)]).astype(f32)                   # [4, H]

    # --- pooler + classifier weights packed side by side ---
    head_w = jnp.concatenate([params["pool_w"], params["cls_w"]], axis=1).astype(bf16)  # [H, H+1]

    inputs = (emb, attn_bias, misc_vecs, layer_vecs, wqkv, wo, w1, w2, head_w)

    # No grid: single invocation, whole arrays resident in VMEM, no double-buffering.
    logits = pl.pallas_call(
        _bert_cross_kernel,
        out_shape=jax.ShapeDtypeStruct((B, 1), f32),
    )(*inputs)

    if mode == "train":
        bs = B // DOC_SECTION
        pos_scores = logits[:bs]
        neg_scores = logits[bs:]
        return logits, 0, 0, pos_scores, neg_scores
    return logits, 0, 0, None, None


# ---------------- main ----------------

if __name__ == "__main__":
    root = jax.random.PRNGKey(0)
    pkey, idkey, mkey = jax.random.split(root, 3)

    params = init_params(pkey)
    input_ids = jax.random.randint(idkey, (BATCH, SEQ), 0, VOCAB, dtype=jnp.int32)
    # attention mask: odd batch rows have the last 3 tokens padded out
    attention_mask = jnp.ones((BATCH, SEQ), jnp.int32)
    pad = (jnp.arange(BATCH)[:, None] % 2 == 1) & (jnp.arange(SEQ)[None, :] >= SEQ - 3)
    attention_mask = jnp.where(pad, 0, attention_mask)

    forward = jax.jit(bert_cross_forward, static_argnames=("mode",))
    result, z0, z1, pos_scores, neg_scores = forward(
        params, input_ids, attention_mask, mode="train")
    jax.block_until_ready((result, pos_scores, neg_scores))

    assert result.shape == (BATCH, 1)
    assert pos_scores.shape == (BATCH // DOC_SECTION, 1)
    assert neg_scores.shape == (BATCH - BATCH // DOC_SECTION, 1)
    assert bool(jnp.all(jnp.isfinite(result)))
    print("KERNEL_OK")
</pallas_src>

<mosaic_0001>
module attributes {stable_mosaic.version = 11 : i64} {
  func.func @_bert_cross_kernel(%arg0: memref<48x32xf32, #tpu.memory_space<vmem>>, %arg1: memref<48x48xf32, #tpu.memory_space<vmem>>, %arg2: memref<4x32xf32, #tpu.memory_space<vmem>>, %arg3: memref<2x8x128xf32, #tpu.memory_space<vmem>>, %arg4: memref<2x32x96xbf16, #tpu.memory_space<vmem>>, %arg5: memref<2x32x32xbf16, #tpu.memory_space<vmem>>, %arg6: memref<2x32x64xbf16, #tpu.memory_space<vmem>>, %arg7: memref<2x64x32xbf16, #tpu.memory_space<vmem>>, %arg8: memref<32x33xbf16, #tpu.memory_space<vmem>>, %arg9: memref<6x1xf32, #tpu.memory_space<vmem>>) attributes {dimension_semantics = [], scalar_prefetch = 0 : i64, scratch_operands = 0 : i64, tpu.core_type = #tpu.core_type<tc>} {
    %c0 = arith.constant 0 : index
    %c0_0 = arith.constant 0 : index
    %0 = vector.load %arg1[%c0, %c0_0] : memref<48x48xf32, #tpu.memory_space<vmem>>, vector<48x48xf32>
    %c0_1 = arith.constant 0 : index
    %c0_2 = arith.constant 0 : index
    %1 = vector.load %arg2[%c0_1, %c0_2] : memref<4x32xf32, #tpu.memory_space<vmem>>, vector<4x32xf32>
    %c0_3 = arith.constant 0 : index
    %c0_4 = arith.constant 0 : index
    %2 = vector.load %arg0[%c0_3, %c0_4] : memref<48x32xf32, #tpu.memory_space<vmem>>, vector<48x32xf32>
    %3 = vector.extract_strided_slice %1 {offsets = [0, 0], sizes = [1, 32], strides = [1, 1]} : vector<4x32xf32> to vector<1x32xf32>
    %4 = vector.extract_strided_slice %1 {offsets = [1, 0], sizes = [1, 32], strides = [1, 1]} : vector<4x32xf32> to vector<1x32xf32>
    %cst = arith.constant dense<0.000000e+00> : vector<48xf32>
    %5 = vector.multi_reduction <add>, %2, %cst [1] : vector<48x32xf32> to vector<48xf32>
    %6 = vector.shape_cast %5 : vector<48xf32> to vector<48x1xf32>
    %cst_5 = arith.constant 3.200000e+01 : f32
    %7 = vector.broadcast %cst_5 : f32 to vector<48x1xf32>
    %8 = arith.divf %6, %7 : vector<48x1xf32>
    %9 = vector.broadcast %8 : vector<48x1xf32> to vector<48x32xf32>
    %10 = arith.subf %2, %9 : vector<48x32xf32>
    %11 = arith.mulf %10, %10 : vector<48x32xf32>
    %cst_6 = arith.constant dense<0.000000e+00> : vector<48xf32>
    %12 = vector.multi_reduction <add>, %11, %cst_6 [1] : vector<48x32xf32> to vector<48xf32>
    %13 = vector.shape_cast %12 : vector<48xf32> to vector<48x1xf32>
    %cst_7 = arith.constant 3.200000e+01 : f32
    %14 = vector.broadcast %cst_7 : f32 to vector<48x1xf32>
    %15 = arith.divf %13, %14 : vector<48x1xf32>
    %cst_8 = arith.constant 9.99999996E-13 : f32
    %16 = vector.broadcast %cst_8 : f32 to vector<48x1xf32>
    %17 = arith.addf %15, %16 : vector<48x1xf32>
    %18 = math.rsqrt %17 : vector<48x1xf32>
    %19 = vector.broadcast %18 : vector<48x1xf32> to vector<48x32xf32>
    %20 = arith.mulf %10, %19 : vector<48x32xf32>
    %21 = vector.broadcast %3 : vector<1x32xf32> to vector<48x32xf32>
    %22 = arith.mulf %20, %21 : vector<48x32xf32>
    %23 = vector.broadcast %4 : vector<1x32xf32> to vector<48x32xf32>
    %24 = arith.addf %22, %23 : vector<48x32xf32>
    %c0_9 = arith.constant 0 : index
    %c0_10 = arith.constant 0 : index
    %c0_11 = arith.constant 0 : index
    %25 = vector.load %arg3[%c0_9, %c0_10, %c0_11] : memref<2x8x128xf32, #tpu.memory_space<vmem>>, vector<1x8x128xf32>
    %26 = vector.shape_cast %25 : vector<1x8x128xf32> to vector<8x128xf32>
    %c0_12 = arith.constant 0 : index
    %c0_13 = arith.constant 0 : index
    %c0_14 = arith.constant 0 : index
    %27 = vector.load %arg4[%c0_12, %c0_13, %c0_14] : memref<2x32x96xbf16, #tpu.memory_space<vmem>>, vector<1x32x96xbf16>
    %28 = vector.shape_cast %27 : vector<1x32x96xbf16> to vector<32x96xbf16>
    %29 = arith.truncf %24 : vector<48x32xf32> to vector<48x32xbf16>
    %cst_15 = arith.constant dense<0.000000e+00> : vector<48x96xf32>
    %30 = tpu.matmul %29, %28, %cst_15 {dimension_numbers = #tpu.dot_dimension_numbers<[1], [0], [0], [1], [0, 0, 1, 1], [], []>} : vector<48x32xbf16>, vector<32x96xbf16>, vector<48x96xf32> -> vector<48x96xf32>
    %31 = vector.extract_strided_slice %26 {offsets = [0, 0], sizes = [1, 96], strides = [1, 1]} : vector<8x128xf32> to vector<1x96xf32>
    %32 = vector.broadcast %31 : vector<1x96xf32> to vector<48x96xf32>
    %33 = arith.addf %30, %32 : vector<48x96xf32>
    %34 = vector.extract_strided_slice %33 {offsets = [0, 0], sizes = [48, 8], strides = [1, 1]} : vector<48x96xf32> to vector<48x8xf32>
    %35 = vector.extract_strided_slice %33 {offsets = [0, 32], sizes = [48, 8], strides = [1, 1]} : vector<48x96xf32> to vector<48x8xf32>
    %36 = vector.extract_strided_slice %33 {offsets = [0, 64], sizes = [48, 8], strides = [1, 1]} : vector<48x96xf32> to vector<48x8xf32>
    %37 = arith.truncf %36 : vector<48x8xf32> to vector<48x8xbf16>
    %38 = arith.truncf %34 : vector<48x8xf32> to vector<48x8xbf16>
    %39 = arith.truncf %35 : vector<48x8xf32> to vector<48x8xbf16>
    %cst_16 = arith.constant dense<0.000000e+00> : vector<48x48xf32>
    %40 = tpu.matmul %38, %39, %cst_16 {dimension_numbers = #tpu.dot_dimension_numbers<[1], [1], [0], [0], [0, 0, 1, 0], [], []>} : vector<48x8xbf16>, vector<48x8xbf16>, vector<48x48xf32> -> vector<48x48xf32>
    %41 = arith.addf %40, %0 : vector<48x48xf32>
    %42 = vector.extract_strided_slice %33 {offsets = [0, 8], sizes = [48, 8], strides = [1, 1]} : vector<48x96xf32> to vector<48x8xf32>
    %43 = vector.extract_strided_slice %33 {offsets = [0, 40], sizes = [48, 8], strides = [1, 1]} : vector<48x96xf32> to vector<48x8xf32>
    %44 = vector.extract_strided_slice %33 {offsets = [0, 72], sizes = [48, 8], strides = [1, 1]} : vector<48x96xf32> to vector<48x8xf32>
    %45 = arith.truncf %44 : vector<48x8xf32> to vector<48x8xbf16>
    %46 = arith.truncf %42 : vector<48x8xf32> to vector<48x8xbf16>
    %47 = arith.truncf %43 : vector<48x8xf32> to vector<48x8xbf16>
    %cst_17 = arith.constant dense<0.000000e+00> : vector<48x48xf32>
    %48 = tpu.matmul %46, %47, %cst_17 {dimension_numbers = #tpu.dot_dimension_numbers<[1], [1], [0], [0], [0, 0, 1, 0], [], []>} : vector<48x8xbf16>, vector<48x8xbf16>, vector<48x48xf32> -> vector<48x48xf32>
    %49 = arith.addf %48, %0 : vector<48x48xf32>
    %50 = vector.extract_strided_slice %33 {offsets = [0, 16], sizes = [48, 8], strides = [1, 1]} : vector<48x96xf32> to vector<48x8xf32>
    %51 = vector.extract_strided_slice %33 {offsets = [0, 48], sizes = [48, 8], strides = [1, 1]} : vector<48x96xf32> to vector<48x8xf32>
    %52 = vector.extract_strided_slice %33 {offsets = [0, 80], sizes = [48, 8], strides = [1, 1]} : vector<48x96xf32> to vector<48x8xf32>
    %53 = arith.truncf %52 : vector<48x8xf32> to vector<48x8xbf16>
    %54 = arith.truncf %50 : vector<48x8xf32> to vector<48x8xbf16>
    %55 = arith.truncf %51 : vector<48x8xf32> to vector<48x8xbf16>
    %cst_18 = arith.constant dense<0.000000e+00> : vector<48x48xf32>
    %56 = tpu.matmul %54, %55, %cst_18 {dimension_numbers = #tpu.dot_dimension_numbers<[1], [1], [0], [0], [0, 0, 1, 0], [], []>} : vector<48x8xbf16>, vector<48x8xbf16>, vector<48x48xf32> -> vector<48x48xf32>
    %57 = arith.addf %56, %0 : vector<48x48xf32>
    %58 = vector.extract_strided_slice %33 {offsets = [0, 24], sizes = [48, 8], strides = [1, 1]} : vector<48x96xf32> to vector<48x8xf32>
    %59 = vector.extract_strided_slice %33 {offsets = [0, 56], sizes = [48, 8], strides = [1, 1]} : vector<48x96xf32> to vector<48x8xf32>
    %60 = vector.extract_strided_slice %33 {offsets = [0, 88], sizes = [48, 8], strides = [1, 1]} : vector<48x96xf32> to vector<48x8xf32>
    %61 = arith.truncf %60 : vector<48x8xf32> to vector<48x8xbf16>
    %62 = arith.truncf %58 : vector<48x8xf32> to vector<48x8xbf16>
    %63 = arith.truncf %59 : vector<48x8xf32> to vector<48x8xbf16>
    %cst_19 = arith.constant dense<0.000000e+00> : vector<48x48xf32>
    %64 = tpu.matmul %62, %63, %cst_19 {dimension_numbers = #tpu.dot_dimension_numbers<[1], [1], [0], [0], [0, 0, 1, 0], [], []>} : vector<48x8xbf16>, vector<48x8xbf16>, vector<48x48xf32> -> vector<48x48xf32>
    %65 = arith.addf %64, %0 : vector<48x48xf32>
    %66 = tpu.concatenate %41, %49, %57, %65 in 0 : vector<48x48xf32>, vector<48x48xf32>, vector<48x48xf32>, vector<48x48xf32> -> vector<192x48xf32>
    %cst_20 = arith.constant dense<0xFF800000> : vector<192xf32>
    %67 = vector.multi_reduction <maximumf>, %66, %cst_20 [1] : vector<192x48xf32> to vector<192xf32>
    %68 = vector.shape_cast %67 : vector<192xf32> to vector<192x1xf32>
    %69 = vector.broadcast %68 : vector<192x1xf32> to vector<192x48xf32>
    %70 = arith.subf %66, %69 : vector<192x48xf32>
    %71 = math.exp %70 : vector<192x48xf32>
    %cst_21 = arith.constant dense<0.000000e+00> : vector<192xf32>
    %72 = vector.multi_reduction <add>, %71, %cst_21 [1] : vector<192x48xf32> to vector<192xf32>
    %73 = vector.shape_cast %72 : vector<192xf32> to vector<192x1xf32>
    %74 = tpu.reciprocal %73 {approx = true} : vector<192x1xf32> -> vector<192x1xf32>
    %75 = vector.broadcast %74 : vector<192x1xf32> to vector<192x48xf32>
    %76 = arith.mulf %71, %75 : vector<192x48xf32>
    %77 = arith.truncf %76 : vector<192x48xf32> to vector<192x48xbf16>
    %78 = vector.extract_strided_slice %77 {offsets = [0, 0], sizes = [48, 48], strides = [1, 1]} : vector<192x48xbf16> to vector<48x48xbf16>
    %cst_22 = arith.constant dense<0.000000e+00> : vector<48x8xf32>
    %79 = tpu.matmul %78, %37, %cst_22 {dimension_numbers = #tpu.dot_dimension_numbers<[1], [0], [0], [1], [0, 0, 1, 1], [], []>} : vector<48x48xbf16>, vector<48x8xbf16>, vector<48x8xf32> -> vector<48x8xf32>
    %80 = vector.extract_strided_slice %77 {offsets = [48, 0], sizes = [48, 48], strides = [1, 1]} : vector<192x48xbf16> to vector<48x48xbf16>
    %cst_23 = arith.constant dense<0.000000e+00> : vector<48x8xf32>
    %81 = tpu.matmul %80, %45, %cst_23 {dimension_numbers = #tpu.dot_dimension_numbers<[1], [0], [0], [1], [0, 0, 1, 1], [], []>} : vector<48x48xbf16>, vector<48x8xbf16>, vector<48x8xf32> -> vector<48x8xf32>
    %82 = vector.extract_strided_slice %77 {offsets = [96, 0], sizes = [48, 48], strides = [1, 1]} : vector<192x48xbf16> to vector<48x48xbf16>
    %cst_24 = arith.constant dense<0.000000e+00> : vector<48x8xf32>
    %83 = tpu.matmul %82, %53, %cst_24 {dimension_numbers = #tpu.dot_dimension_numbers<[1], [0], [0], [1], [0, 0, 1, 1], [], []>} : vector<48x48xbf16>, vector<48x8xbf16>, vector<48x8xf32> -> vector<48x8xf32>
    %84 = vector.extract_strided_slice %77 {offsets = [144, 0], sizes = [48, 48], strides = [1, 1]} : vector<192x48xbf16> to vector<48x48xbf16>
    %cst_25 = arith.constant dense<0.000000e+00> : vector<48x8xf32>
    %85 = tpu.matmul %84, %61, %cst_25 {dimension_numbers = #tpu.dot_dimension_numbers<[1], [0], [0], [1], [0, 0, 1, 1], [], []>} : vector<48x48xbf16>, vector<48x8xbf16>, vector<48x8xf32> -> vector<48x8xf32>
    %86 = tpu.concatenate %79, %81, %83, %85 in 1 : vector<48x8xf32>, vector<48x8xf32>, vector<48x8xf32>, vector<48x8xf32> -> vector<48x32xf32>
    %c0_26 = arith.constant 0 : index
    %c0_27 = arith.constant 0 : index
    %c0_28 = arith.constant 0 : index
    %87 = vector.load %arg5[%c0_26, %c0_27, %c0_28] : memref<2x32x32xbf16, #tpu.memory_space<vmem>>, vector<1x32x32xbf16>
    %88 = vector.shape_cast %87 : vector<1x32x32xbf16> to vector<32x32xbf16>
    %89 = arith.truncf %86 : vector<48x32xf32> to vector<48x32xbf16>
    %cst_29 = arith.constant dense<0.000000e+00> : vector<48x32xf32>
    %90 = tpu.matmul %89, %88, %cst_29 {dimension_numbers = #tpu.dot_dimension_numbers<[1], [0], [0], [1], [0, 0, 1, 1], [], []>} : vector<48x32xbf16>, vector<32x32xbf16>, vector<48x32xf32> -> vector<48x32xf32>
    %91 = vector.extract_strided_slice %26 {offsets = [1, 0], sizes = [1, 32], strides = [1, 1]} : vector<8x128xf32> to vector<1x32xf32>
    %92 = vector.broadcast %91 : vector<1x32xf32> to vector<48x32xf32>
    %93 = arith.addf %90, %92 : vector<48x32xf32>
    %94 = arith.addf %24, %93 : vector<48x32xf32>
    %95 = vector.extract_strided_slice %26 {offsets = [2, 0], sizes = [1, 32], strides = [1, 1]} : vector<8x128xf32> to vector<1x32xf32>
    %96 = vector.extract_strided_slice %26 {offsets = [3, 0], sizes = [1, 32], strides = [1, 1]} : vector<8x128xf32> to vector<1x32xf32>
    %cst_30 = arith.constant dense<0.000000e+00> : vector<48xf32>
    %97 = vector.multi_reduction <add>, %94, %cst_30 [1] : vector<48x32xf32> to vector<48xf32>
    %98 = vector.shape_cast %97 : vector<48xf32> to vector<48x1xf32>
    %cst_31 = arith.constant 3.200000e+01 : f32
    %99 = vector.broadcast %cst_31 : f32 to vector<48x1xf32>
    %100 = arith.divf %98, %99 : vector<48x1xf32>
    %101 = vector.broadcast %100 : vector<48x1xf32> to vector<48x32xf32>
    %102 = arith.subf %94, %101 : vector<48x32xf32>
    %103 = arith.mulf %102, %102 : vector<48x32xf32>
    %cst_32 = arith.constant dense<0.000000e+00> : vector<48xf32>
    %104 = vector.multi_reduction <add>, %103, %cst_32 [1] : vector<48x32xf32> to vector<48xf32>
    %105 = vector.shape_cast %104 : vector<48xf32> to vector<48x1xf32>
    %cst_33 = arith.constant 3.200000e+01 : f32
    %106 = vector.broadcast %cst_33 : f32 to vector<48x1xf32>
    %107 = arith.divf %105, %106 : vector<48x1xf32>
    %cst_34 = arith.constant 9.99999996E-13 : f32
    %108 = vector.broadcast %cst_34 : f32 to vector<48x1xf32>
    %109 = arith.addf %107, %108 : vector<48x1xf32>
    %110 = math.rsqrt %109 : vector<48x1xf32>
    %111 = vector.broadcast %110 : vector<48x1xf32> to vector<48x32xf32>
    %112 = arith.mulf %102, %111 : vector<48x32xf32>
    %113 = vector.broadcast %95 : vector<1x32xf32> to vector<48x32xf32>
    %114 = arith.mulf %112, %113 : vector<48x32xf32>
    %115 = vector.broadcast %96 : vector<1x32xf32> to vector<48x32xf32>
    %116 = arith.addf %114, %115 : vector<48x32xf32>
    %c0_35 = arith.constant 0 : index
    %c0_36 = arith.constant 0 : index
    %c0_37 = arith.constant 0 : index
    %117 = vector.load %arg6[%c0_35, %c0_36, %c0_37] : memref<2x32x64xbf16, #tpu.memory_space<vmem>>, vector<1x32x64xbf16>
    %118 = vector.shape_cast %117 : vector<1x32x64xbf16> to vector<32x64xbf16>
    %119 = arith.truncf %116 : vector<48x32xf32> to vector<48x32xbf16>
    %cst_38 = arith.constant dense<0.000000e+00> : vector<48x64xf32>
    %120 = tpu.matmul %119, %118, %cst_38 {dimension_numbers = #tpu.dot_dimension_numbers<[1], [0], [0], [1], [0, 0, 1, 1], [], []>} : vector<48x32xbf16>, vector<32x64xbf16>, vector<48x64xf32> -> vector<48x64xf32>
    %121 = vector.extract_strided_slice %26 {offsets = [4, 0], sizes = [1, 64], strides = [1, 1]} : vector<8x128xf32> to vector<1x64xf32>
    %122 = vector.broadcast %121 : vector<1x64xf32> to vector<48x64xf32>
    %123 = arith.addf %120, %122 : vector<48x64xf32>
    %cst_39 = arith.constant 5.000000e-01 : f32
    %124 = vector.broadcast %cst_39 : f32 to vector<48x64xf32>
    %125 = arith.mulf %124, %123 : vector<48x64xf32>
    %cst_40 = arith.constant 4.471500e-02 : f32
    %126 = vector.broadcast %cst_40 : f32 to vector<48x64xf32>
    %127 = arith.mulf %126, %123 : vector<48x64xf32>
    %128 = arith.mulf %127, %123 : vector<48x64xf32>
    %129 = arith.mulf %128, %123 : vector<48x64xf32>
    %130 = arith.addf %123, %129 : vector<48x64xf32>
    %cst_41 = arith.constant 0.797884583 : f32
    %131 = vector.broadcast %cst_41 : f32 to vector<48x64xf32>
    %132 = arith.mulf %131, %130 : vector<48x64xf32>
    %133 = math.tanh %132 : vector<48x64xf32>
    %cst_42 = arith.constant 1.000000e+00 : f32
    %134 = vector.broadcast %cst_42 : f32 to vector<48x64xf32>
    %135 = arith.addf %134, %133 : vector<48x64xf32>
    %136 = arith.mulf %125, %135 : vector<48x64xf32>
    %c0_43 = arith.constant 0 : index
    %c0_44 = arith.constant 0 : index
    %c0_45 = arith.constant 0 : index
    %137 = vector.load %arg7[%c0_43, %c0_44, %c0_45] : memref<2x64x32xbf16, #tpu.memory_space<vmem>>, vector<1x64x32xbf16>
    %138 = vector.shape_cast %137 : vector<1x64x32xbf16> to vector<64x32xbf16>
    %139 = arith.truncf %136 : vector<48x64xf32> to vector<48x64xbf16>
    %cst_46 = arith.constant dense<0.000000e+00> : vector<48x32xf32>
    %140 = tpu.matmul %139, %138, %cst_46 {dimension_numbers = #tpu.dot_dimension_numbers<[1], [0], [0], [1], [0, 0, 1, 1], [], []>} : vector<48x64xbf16>, vector<64x32xbf16>, vector<48x32xf32> -> vector<48x32xf32>
    %141 = vector.extract_strided_slice %26 {offsets = [5, 0], sizes = [1, 32], strides = [1, 1]} : vector<8x128xf32> to vector<1x32xf32>
    %142 = vector.broadcast %141 : vector<1x32xf32> to vector<48x32xf32>
    %143 = arith.addf %140, %142 : vector<48x32xf32>
    %144 = arith.addf %116, %143 : vector<48x32xf32>
    %145 = vector.extract_strided_slice %26 {offsets = [6, 0], sizes = [1, 32], strides = [1, 1]} : vector<8x128xf32> to vector<1x32xf32>
    %146 = vector.extract_strided_slice %26 {offsets = [7, 0], sizes = [1, 32], strides = [1, 1]} : vector<8x128xf32> to vector<1x32xf32>
    %cst_47 = arith.constant dense<0.000000e+00> : vector<48xf32>
    %147 = vector.multi_reduction <add>, %144, %cst_47 [1] : vector<48x32xf32> to vector<48xf32>
    %148 = vector.shape_cast %147 : vector<48xf32> to vector<48x1xf32>
    %cst_48 = arith.constant 3.200000e+01 : f32
    %149 = vector.broadcast %cst_48 : f32 to vector<48x1xf32>
    %150 = arith.divf %148, %149 : vector<48x1xf32>
    %151 = vector.broadcast %150 : vector<48x1xf32> to vector<48x32xf32>
    %152 = arith.subf %144, %151 : vector<48x32xf32>
    %153 = arith.mulf %152, %152 : vector<48x32xf32>
    %cst_49 = arith.constant dense<0.000000e+00> : vector<48xf32>
    %154 = vector.multi_reduction <add>, %153, %cst_49 [1] : vector<48x32xf32> to vector<48xf32>
    %155 = vector.shape_cast %154 : vector<48xf32> to vector<48x1xf32>
    %cst_50 = arith.constant 3.200000e+01 : f32
    %156 = vector.broadcast %cst_50 : f32 to vector<48x1xf32>
    %157 = arith.divf %155, %156 : vector<48x1xf32>
    %cst_51 = arith.constant 9.99999996E-13 : f32
    %158 = vector.broadcast %cst_51 : f32 to vector<48x1xf32>
    %159 = arith.addf %157, %158 : vector<48x1xf32>
    %160 = math.rsqrt %159 : vector<48x1xf32>
    %161 = vector.broadcast %160 : vector<48x1xf32> to vector<48x32xf32>
    %162 = arith.mulf %152, %161 : vector<48x32xf32>
    %163 = vector.broadcast %145 : vector<1x32xf32> to vector<48x32xf32>
    %164 = arith.mulf %162, %163 : vector<48x32xf32>
    %165 = vector.broadcast %146 : vector<1x32xf32> to vector<48x32xf32>
    %166 = arith.addf %164, %165 : vector<48x32xf32>
    %c1 = arith.constant 1 : index
    %c0_52 = arith.constant 0 : index
    %c0_53 = arith.constant 0 : index
    %167 = vector.load %arg3[%c1, %c0_52, %c0_53] : memref<2x8x128xf32, #tpu.memory_space<vmem>>, vector<1x8x128xf32>
    %168 = vector.shape_cast %167 : vector<1x8x128xf32> to vector<8x128xf32>
    %c1_54 = arith.constant 1 : index
    %c0_55 = arith.constant 0 : index
    %c0_56 = arith.constant 0 : index
    %169 = vector.load %arg4[%c1_54, %c0_55, %c0_56] : memref<2x32x96xbf16, #tpu.memory_space<vmem>>, vector<1x32x96xbf16>
    %170 = vector.shape_cast %169 : vector<1x32x96xbf16> to vector<32x96xbf16>
    %171 = arith.truncf %166 : vector<48x32xf32> to vector<48x32xbf16>
    %cst_57 = arith.constant dense<0.000000e+00> : vector<48x96xf32>
    %172 = tpu.matmul %171, %170, %cst_57 {dimension_numbers = #tpu.dot_dimension_numbers<[1], [0], [0], [1], [0, 0, 1, 1], [], []>} : vector<48x32xbf16>, vector<32x96xbf16>, vector<48x96xf32> -> vector<48x96xf32>
    %173 = vector.extract_strided_slice %168 {offsets = [0, 0], sizes = [1, 96], strides = [1, 1]} : vector<8x128xf32> to vector<1x96xf32>
    %174 = vector.broadcast %173 : vector<1x96xf32> to vector<48x96xf32>
    %175 = arith.addf %172, %174 : vector<48x96xf32>
    %176 = vector.extract_strided_slice %175 {offsets = [0, 0], sizes = [48, 8], strides = [1, 1]} : vector<48x96xf32> to vector<48x8xf32>
    %177 = vector.extract_strided_slice %175 {offsets = [0, 32], sizes = [48, 8], strides = [1, 1]} : vector<48x96xf32> to vector<48x8xf32>
    %178 = vector.extract_strided_slice %175 {offsets = [0, 64], sizes = [48, 8], strides = [1, 1]} : vector<48x96xf32> to vector<48x8xf32>
    %179 = arith.truncf %178 : vector<48x8xf32> to vector<48x8xbf16>
    %180 = arith.truncf %176 : vector<48x8xf32> to vector<48x8xbf16>
    %181 = arith.truncf %177 : vector<48x8xf32> to vector<48x8xbf16>
    %cst_58 = arith.constant dense<0.000000e+00> : vector<48x48xf32>
    %182 = tpu.matmul %180, %181, %cst_58 {dimension_numbers = #tpu.dot_dimension_numbers<[1], [1], [0], [0], [0, 0, 1, 0], [], []>} : vector<48x8xbf16>, vector<48x8xbf16>, vector<48x48xf32> -> vector<48x48xf32>
    %183 = arith.addf %182, %0 : vector<48x48xf32>
    %184 = vector.extract_strided_slice %175 {offsets = [0, 8], sizes = [48, 8], strides = [1, 1]} : vector<48x96xf32> to vector<48x8xf32>
    %185 = vector.extract_strided_slice %175 {offsets = [0, 40], sizes = [48, 8], strides = [1, 1]} : vector<48x96xf32> to vector<48x8xf32>
    %186 = vector.extract_strided_slice %175 {offsets = [0, 72], sizes = [48, 8], strides = [1, 1]} : vector<48x96xf32> to vector<48x8xf32>
    %187 = arith.truncf %186 : vector<48x8xf32> to vector<48x8xbf16>
    %188 = arith.truncf %184 : vector<48x8xf32> to vector<48x8xbf16>
    %189 = arith.truncf %185 : vector<48x8xf32> to vector<48x8xbf16>
    %cst_59 = arith.constant dense<0.000000e+00> : vector<48x48xf32>
    %190 = tpu.matmul %188, %189, %cst_59 {dimension_numbers = #tpu.dot_dimension_numbers<[1], [1], [0], [0], [0, 0, 1, 0], [], []>} : vector<48x8xbf16>, vector<48x8xbf16>, vector<48x48xf32> -> vector<48x48xf32>
    %191 = arith.addf %190, %0 : vector<48x48xf32>
    %192 = vector.extract_strided_slice %175 {offsets = [0, 16], sizes = [48, 8], strides = [1, 1]} : vector<48x96xf32> to vector<48x8xf32>
    %193 = vector.extract_strided_slice %175 {offsets = [0, 48], sizes = [48, 8], strides = [1, 1]} : vector<48x96xf32> to vector<48x8xf32>
    %194 = vector.extract_strided_slice %175 {offsets = [0, 80], sizes = [48, 8], strides = [1, 1]} : vector<48x96xf32> to vector<48x8xf32>
    %195 = arith.truncf %194 : vector<48x8xf32> to vector<48x8xbf16>
    %196 = arith.truncf %192 : vector<48x8xf32> to vector<48x8xbf16>
    %197 = arith.truncf %193 : vector<48x8xf32> to vector<48x8xbf16>
    %cst_60 = arith.constant dense<0.000000e+00> : vector<48x48xf32>
    %198 = tpu.matmul %196, %197, %cst_60 {dimension_numbers = #tpu.dot_dimension_numbers<[1], [1], [0], [0], [0, 0, 1, 0], [], []>} : vector<48x8xbf16>, vector<48x8xbf16>, vector<48x48xf32> -> vector<48x48xf32>
    %199 = arith.addf %198, %0 : vector<48x48xf32>
    %200 = vector.extract_strided_slice %175 {offsets = [0, 24], sizes = [48, 8], strides = [1, 1]} : vector<48x96xf32> to vector<48x8xf32>
    %201 = vector.extract_strided_slice %175 {offsets = [0, 56], sizes = [48, 8], strides = [1, 1]} : vector<48x96xf32> to vector<48x8xf32>
    %202 = vector.extract_strided_slice %175 {offsets = [0, 88], sizes = [48, 8], strides = [1, 1]} : vector<48x96xf32> to vector<48x8xf32>
    %203 = arith.truncf %202 : vector<48x8xf32> to vector<48x8xbf16>
    %204 = arith.truncf %200 : vector<48x8xf32> to vector<48x8xbf16>
    %205 = arith.truncf %201 : vector<48x8xf32> to vector<48x8xbf16>
    %cst_61 = arith.constant dense<0.000000e+00> : vector<48x48xf32>
    %206 = tpu.matmul %204, %205, %cst_61 {dimension_numbers = #tpu.dot_dimension_numbers<[1], [1], [0], [0], [0, 0, 1, 0], [], []>} : vector<48x8xbf16>, vector<48x8xbf16>, vector<48x48xf32> -> vector<48x48xf32>
    %207 = arith.addf %206, %0 : vector<48x48xf32>
    %208 = tpu.concatenate %183, %191, %199, %207 in 0 : vector<48x48xf32>, vector<48x48xf32>, vector<48x48xf32>, vector<48x48xf32> -> vector<192x48xf32>
    %cst_62 = arith.constant dense<0xFF800000> : vector<192xf32>
    %209 = vector.multi_reduction <maximumf>, %208, %cst_62 [1] : vector<192x48xf32> to vector<192xf32>
    %210 = vector.shape_cast %209 : vector<192xf32> to vector<192x1xf32>
    %211 = vector.broadcast %210 : vector<192x1xf32> to vector<192x48xf32>
    %212 = arith.subf %208, %211 : vector<192x48xf32>
    %213 = math.exp %212 : vector<192x48xf32>
    %cst_63 = arith.constant dense<0.000000e+00> : vector<192xf32>
    %214 = vector.multi_reduction <add>, %213, %cst_63 [1] : vector<192x48xf32> to vector<192xf32>
    %215 = vector.shape_cast %214 : vector<192xf32> to vector<192x1xf32>
    %216 = tpu.reciprocal %215 {approx = true} : vector<192x1xf32> -> vector<192x1xf32>
    %217 = vector.broadcast %216 : vector<192x1xf32> to vector<192x48xf32>
    %218 = arith.mulf %213, %217 : vector<192x48xf32>
    %219 = arith.truncf %218 : vector<192x48xf32> to vector<192x48xbf16>
    %220 = vector.extract_strided_slice %219 {offsets = [0, 0], sizes = [48, 48], strides = [1, 1]} : vector<192x48xbf16> to vector<48x48xbf16>
    %cst_64 = arith.constant dense<0.000000e+00> : vector<48x8xf32>
    %221 = tpu.matmul %220, %179, %cst_64 {dimension_numbers = #tpu.dot_dimension_numbers<[1], [0], [0], [1], [0, 0, 1, 1], [], []>} : vector<48x48xbf16>, vector<48x8xbf16>, vector<48x8xf32> -> vector<48x8xf32>
    %222 = vector.extract_strided_slice %219 {offsets = [48, 0], sizes = [48, 48], strides = [1, 1]} : vector<192x48xbf16> to vector<48x48xbf16>
    %cst_65 = arith.constant dense<0.000000e+00> : vector<48x8xf32>
    %223 = tpu.matmul %222, %187, %cst_65 {dimension_numbers = #tpu.dot_dimension_numbers<[1], [0], [0], [1], [0, 0, 1, 1], [], []>} : vector<48x48xbf16>, vector<48x8xbf16>, vector<48x8xf32> -> vector<48x8xf32>
    %224 = vector.extract_strided_slice %219 {offsets = [96, 0], sizes = [48, 48], strides = [1, 1]} : vector<192x48xbf16> to vector<48x48xbf16>
    %cst_66 = arith.constant dense<0.000000e+00> : vector<48x8xf32>
    %225 = tpu.matmul %224, %195, %cst_66 {dimension_numbers = #tpu.dot_dimension_numbers<[1], [0], [0], [1], [0, 0, 1, 1], [], []>} : vector<48x48xbf16>, vector<48x8xbf16>, vector<48x8xf32> -> vector<48x8xf32>
    %226 = vector.extract_strided_slice %219 {offsets = [144, 0], sizes = [48, 48], strides = [1, 1]} : vector<192x48xbf16> to vector<48x48xbf16>
    %cst_67 = arith.constant dense<0.000000e+00> : vector<48x8xf32>
    %227 = tpu.matmul %226, %203, %cst_67 {dimension_numbers = #tpu.dot_dimension_numbers<[1], [0], [0], [1], [0, 0, 1, 1], [], []>} : vector<48x48xbf16>, vector<48x8xbf16>, vector<48x8xf32> -> vector<48x8xf32>
    %228 = tpu.concatenate %221, %223, %225, %227 in 1 : vector<48x8xf32>, vector<48x8xf32>, vector<48x8xf32>, vector<48x8xf32> -> vector<48x32xf32>
    %c1_68 = arith.constant 1 : index
    %c0_69 = arith.constant 0 : index
    %c0_70 = arith.constant 0 : index
    %229 = vector.load %arg5[%c1_68, %c0_69, %c0_70] : memref<2x32x32xbf16, #tpu.memory_space<vmem>>, vector<1x32x32xbf16>
    %230 = vector.shape_cast %229 : vector<1x32x32xbf16> to vector<32x32xbf16>
    %231 = arith.truncf %228 : vector<48x32xf32> to vector<48x32xbf16>
    %cst_71 = arith.constant dense<0.000000e+00> : vector<48x32xf32>
    %232 = tpu.matmul %231, %230, %cst_71 {dimension_numbers = #tpu.dot_dimension_numbers<[1], [0], [0], [1], [0, 0, 1, 1], [], []>} : vector<48x32xbf16>, vector<32x32xbf16>, vector<48x32xf32> -> vector<48x32xf32>
    %233 = vector.extract_strided_slice %168 {offsets = [1, 0], sizes = [1, 32], strides = [1, 1]} : vector<8x128xf32> to vector<1x32xf32>
    %234 = vector.broadcast %233 : vector<1x32xf32> to vector<48x32xf32>
    %235 = arith.addf %232, %234 : vector<48x32xf32>
    %236 = arith.addf %166, %235 : vector<48x32xf32>
    %237 = vector.extract_strided_slice %168 {offsets = [2, 0], sizes = [1, 32], strides = [1, 1]} : vector<8x128xf32> to vector<1x32xf32>
    %238 = vector.extract_strided_slice %168 {offsets = [3, 0], sizes = [1, 32], strides = [1, 1]} : vector<8x128xf32> to vector<1x32xf32>
    %cst_72 = arith.constant dense<0.000000e+00> : vector<48xf32>
    %239 = vector.multi_reduction <add>, %236, %cst_72 [1] : vector<48x32xf32> to vector<48xf32>
    %240 = vector.shape_cast %239 : vector<48xf32> to vector<48x1xf32>
    %cst_73 = arith.constant 3.200000e+01 : f32
    %241 = vector.broadcast %cst_73 : f32 to vector<48x1xf32>
    %242 = arith.divf %240, %241 : vector<48x1xf32>
    %243 = vector.broadcast %242 : vector<48x1xf32> to vector<48x32xf32>
    %244 = arith.subf %236, %243 : vector<48x32xf32>
    %245 = arith.mulf %244, %244 : vector<48x32xf32>
    %cst_74 = arith.constant dense<0.000000e+00> : vector<48xf32>
    %246 = vector.multi_reduction <add>, %245, %cst_74 [1] : vector<48x32xf32> to vector<48xf32>
    %247 = vector.shape_cast %246 : vector<48xf32> to vector<48x1xf32>
    %cst_75 = arith.constant 3.200000e+01 : f32
    %248 = vector.broadcast %cst_75 : f32 to vector<48x1xf32>
    %249 = arith.divf %247, %248 : vector<48x1xf32>
    %cst_76 = arith.constant 9.99999996E-13 : f32
    %250 = vector.broadcast %cst_76 : f32 to vector<48x1xf32>
    %251 = arith.addf %249, %250 : vector<48x1xf32>
    %252 = math.rsqrt %251 : vector<48x1xf32>
    %253 = vector.broadcast %252 : vector<48x1xf32> to vector<48x32xf32>
    %254 = arith.mulf %244, %253 : vector<48x32xf32>
    %255 = vector.broadcast %237 : vector<1x32xf32> to vector<48x32xf32>
    %256 = arith.mulf %254, %255 : vector<48x32xf32>
    %257 = vector.broadcast %238 : vector<1x32xf32> to vector<48x32xf32>
    %258 = arith.addf %256, %257 : vector<48x32xf32>
    %c1_77 = arith.constant 1 : index
    %c0_78 = arith.constant 0 : index
    %c0_79 = arith.constant 0 : index
    %259 = vector.load %arg6[%c1_77, %c0_78, %c0_79] : memref<2x32x64xbf16, #tpu.memory_space<vmem>>, vector<1x32x64xbf16>
    %260 = vector.shape_cast %259 : vector<1x32x64xbf16> to vector<32x64xbf16>
    %261 = arith.truncf %258 : vector<48x32xf32> to vector<48x32xbf16>
    %cst_80 = arith.constant dense<0.000000e+00> : vector<48x64xf32>
    %262 = tpu.matmul %261, %260, %cst_80 {dimension_numbers = #tpu.dot_dimension_numbers<[1], [0], [0], [1], [0, 0, 1, 1], [], []>} : vector<48x32xbf16>, vector<32x64xbf16>, vector<48x64xf32> -> vector<48x64xf32>
    %263 = vector.extract_strided_slice %168 {offsets = [4, 0], sizes = [1, 64], strides = [1, 1]} : vector<8x128xf32> to vector<1x64xf32>
    %264 = vector.broadcast %263 : vector<1x64xf32> to vector<48x64xf32>
    %265 = arith.addf %262, %264 : vector<48x64xf32>
    %cst_81 = arith.constant 5.000000e-01 : f32
    %266 = vector.broadcast %cst_81 : f32 to vector<48x64xf32>
    %267 = arith.mulf %266, %265 : vector<48x64xf32>
    %cst_82 = arith.constant 4.471500e-02 : f32
    %268 = vector.broadcast %cst_82 : f32 to vector<48x64xf32>
    %269 = arith.mulf %268, %265 : vector<48x64xf32>
    %270 = arith.mulf %269, %265 : vector<48x64xf32>
    %271 = arith.mulf %270, %265 : vector<48x64xf32>
    %272 = arith.addf %265, %271 : vector<48x64xf32>
    %cst_83 = arith.constant 0.797884583 : f32
    %273 = vector.broadcast %cst_83 : f32 to vector<48x64xf32>
    %274 = arith.mulf %273, %272 : vector<48x64xf32>
    %275 = math.tanh %274 : vector<48x64xf32>
    %cst_84 = arith.constant 1.000000e+00 : f32
    %276 = vector.broadcast %cst_84 : f32 to vector<48x64xf32>
    %277 = arith.addf %276, %275 : vector<48x64xf32>
    %278 = arith.mulf %267, %277 : vector<48x64xf32>
    %c1_85 = arith.constant 1 : index
    %c0_86 = arith.constant 0 : index
    %c0_87 = arith.constant 0 : index
    %279 = vector.load %arg7[%c1_85, %c0_86, %c0_87] : memref<2x64x32xbf16, #tpu.memory_space<vmem>>, vector<1x64x32xbf16>
    %280 = vector.shape_cast %279 : vector<1x64x32xbf16> to vector<64x32xbf16>
    %281 = arith.truncf %278 : vector<48x64xf32> to vector<48x64xbf16>
    %cst_88 = arith.constant dense<0.000000e+00> : vector<48x32xf32>
    %282 = tpu.matmul %281, %280, %cst_88 {dimension_numbers = #tpu.dot_dimension_numbers<[1], [0], [0], [1], [0, 0, 1, 1], [], []>} : vector<48x64xbf16>, vector<64x32xbf16>, vector<48x32xf32> -> vector<48x32xf32>
    %283 = vector.extract_strided_slice %168 {offsets = [5, 0], sizes = [1, 32], strides = [1, 1]} : vector<8x128xf32> to vector<1x32xf32>
    %284 = vector.broadcast %283 : vector<1x32xf32> to vector<48x32xf32>
    %285 = arith.addf %282, %284 : vector<48x32xf32>
    %286 = arith.addf %258, %285 : vector<48x32xf32>
    %287 = vector.extract_strided_slice %168 {offsets = [6, 0], sizes = [1, 32], strides = [1, 1]} : vector<8x128xf32> to vector<1x32xf32>
    %288 = vector.extract_strided_slice %168 {offsets = [7, 0], sizes = [1, 32], strides = [1, 1]} : vector<8x128xf32> to vector<1x32xf32>
    %cst_89 = arith.constant dense<0.000000e+00> : vector<48xf32>
    %289 = vector.multi_reduction <add>, %286, %cst_89 [1] : vector<48x32xf32> to vector<48xf32>
    %290 = vector.shape_cast %289 : vector<48xf32> to vector<48x1xf32>
    %cst_90 = arith.constant 3.200000e+01 : f32
    %291 = vector.broadcast %cst_90 : f32 to vector<48x1xf32>
    %292 = arith.divf %290, %291 : vector<48x1xf32>
    %293 = vector.broadcast %292 : vector<48x1xf32> to vector<48x32xf32>
    %294 = arith.subf %286, %293 : vector<48x32xf32>
    %295 = arith.mulf %294, %294 : vector<48x32xf32>
    %cst_91 = arith.constant dense<0.000000e+00> : vector<48xf32>
    %296 = vector.multi_reduction <add>, %295, %cst_91 [1] : vector<48x32xf32> to vector<48xf32>
    %297 = vector.shape_cast %296 : vector<48xf32> to vector<48x1xf32>
    %cst_92 = arith.constant 3.200000e+01 : f32
    %298 = vector.broadcast %cst_92 : f32 to vector<48x1xf32>
    %299 = arith.divf %297, %298 : vector<48x1xf32>
    %cst_93 = arith.constant 9.99999996E-13 : f32
    %300 = vector.broadcast %cst_93 : f32 to vector<48x1xf32>
    %301 = arith.addf %299, %300 : vector<48x1xf32>
    %302 = math.rsqrt %301 : vector<48x1xf32>
    %303 = vector.broadcast %302 : vector<48x1xf32> to vector<48x32xf32>
    %304 = arith.mulf %294, %303 : vector<48x32xf32>
    %305 = vector.broadcast %287 : vector<1x32xf32> to vector<48x32xf32>
    %306 = arith.mulf %304, %305 : vector<48x32xf32>
    %307 = vector.broadcast %288 : vector<1x32xf32> to vector<48x32xf32>
    %308 = arith.addf %306, %307 : vector<48x32xf32>
    %309 = vector.shape_cast %308 : vector<48x32xf32> to vector<6x8x32xf32>
    %310 = vector.extract_strided_slice %309 {offsets = [0, 0, 0], sizes = [6, 1, 32], strides = [1, 1, 1]} : vector<6x8x32xf32> to vector<6x1x32xf32>
    %311 = vector.shape_cast %310 : vector<6x1x32xf32> to vector<6x32xf32>
    %c0_94 = arith.constant 0 : index
    %c0_95 = arith.constant 0 : index
    %312 = vector.load %arg8[%c0_94, %c0_95] : memref<32x33xbf16, #tpu.memory_space<vmem>>, vector<32x33xbf16>
    %313 = vector.extract_strided_slice %312 {offsets = [0, 0], sizes = [32, 32], strides = [1, 1]} : vector<32x33xbf16> to vector<32x32xbf16>
    %314 = arith.truncf %311 : vector<6x32xf32> to vector<6x32xbf16>
    %cst_96 = arith.constant dense<0.000000e+00> : vector<6x32xf32>
    %315 = tpu.matmul %314, %313, %cst_96 {dimension_numbers = #tpu.dot_dimension_numbers<[1], [0], [0], [1], [0, 0, 1, 1], [], []>} : vector<6x32xbf16>, vector<32x32xbf16>, vector<6x32xf32> -> vector<6x32xf32>
    %316 = vector.extract_strided_slice %1 {offsets = [2, 0], sizes = [1, 32], strides = [1, 1]} : vector<4x32xf32> to vector<1x32xf32>
    %317 = vector.broadcast %316 : vector<1x32xf32> to vector<6x32xf32>
    %318 = arith.addf %315, %317 : vector<6x32xf32>
    %319 = math.tanh %318 : vector<6x32xf32>
    %320 = vector.extract_strided_slice %312 {offsets = [0, 32], sizes = [32, 1], strides = [1, 1]} : vector<32x33xbf16> to vector<32x1xbf16>
    %321 = arith.truncf %319 : vector<6x32xf32> to vector<6x32xbf16>
    %cst_97 = arith.constant dense<0.000000e+00> : vector<6x1xf32>
    %322 = tpu.matmul %321, %320, %cst_97 {dimension_numbers = #tpu.dot_dimension_numbers<[1], [0], [0], [1], [0, 0, 1, 1], [], []>} : vector<6x32xbf16>, vector<32x1xbf16>, vector<6x1xf32> -> vector<6x1xf32>
    %323 = vector.extract_strided_slice %1 {offsets = [3, 0], sizes = [1, 1], strides = [1, 1]} : vector<4x32xf32> to vector<1x1xf32>
    %324 = vector.broadcast %323 : vector<1x1xf32> to vector<6x1xf32>
    %325 = arith.addf %322, %324 : vector<6x1xf32>
    %c0_98 = arith.constant 0 : index
    %c0_99 = arith.constant 0 : index
    %326 = vector.load %arg9[%c0_98, %c0_99] : memref<6x1xf32, #tpu.memory_space<vmem>>, vector<6x1xf32>
    tpu.vector_store %arg9[%c0_98, %c0_99], %325 {strides = array<i32>} : memref<6x1xf32, #tpu.memory_space<vmem>>, vector<6x1xf32>,
    return
  }
}

</mosaic_0001>

<llo_original>
// kernel: mul.12
$region0: #{mul.12}
  %s0 = inlined_call_operand.vmem [shape: f32[6,8], index: 0, kind: input, shape index: {}]
  %s1 = inlined_call_operand.vmem [shape: f32[48], index: 1, kind: output, shape index: {}]
  $region1: #{mul.12} parent=0
    #allocation0 [shape = 'u8[4096]{0}', space=vmem, size = 0x1000, scoped, tag = 'scoped mem for output reshape']
    %v2 = vld [vmem:[%s0] sm:$0x1]
    %vm3 = vcmask 64512
    %4 = vst.msk [vmem:[#allocation0] sm:$0x1] %vm3, %v2
    %s5 = scalar_lea.vmem %s0, 5
    %v6 = vld [vmem:[%s5] sm:$0x1]
    %7 = vrot.lane.b32.xlu0 %v6, 40
    %v8 = vpop.permute.xlu0 %7
    %vm9 = vcmask 392512
    %10 = vst.msk [vmem:[#allocation0] sm:$0x1] %vm9, %v8
    %s11 = scalar_lea.vmem %s0, 4
    %v12 = vld [vmem:[%s11] sm:$0x1]
    %13 = vrot.lane.b32.xlu0 %v12, 32
    %v14 = vpop.permute.xlu0 %13
    %vm15 = vcmask 326912
    %16 = vst.msk [vmem:[#allocation0] sm:$0x1] %vm15, %v14
    %s17 = scalar_lea.vmem %s0, 3
    %v18 = vld [vmem:[%s17] sm:$0x1]
    %19 = vrot.lane.b32.xlu0 %v18, 24
    %v20 = vpop.permute.xlu0 %19
    %vm21 = vcmask 261312
    %22 = vst.msk [vmem:[#allocation0] sm:$0x1] %vm21, %v20
    %s23 = scalar_lea.vmem %s0, 2
    %v24 = vld [vmem:[%s23] sm:$0x1]
    %25 = vrot.lane.b32.xlu0 %v24, 16
    %v26 = vpop.permute.xlu0 %25
    %vm27 = vcmask 195712
    %28 = vst.msk [vmem:[#allocation0] sm:$0x1] %vm27, %v26
    %s29 = scalar_lea.vmem %s0, 1
    %v30 = vld [vmem:[%s29] sm:$0x1]
    %31 = vrot.lane.b32.xlu0 %v30, 8
    %v32 = vpop.permute.xlu0 %31
    %vm33 = vcmask 130112
    %34 = vst.msk [vmem:[#allocation0] sm:$0x1] %vm33, %v32
    %s36 = sshllo.u32 0, 1
    %v38 = vld [vmem:[#allocation0] sm:%s36]
    %s39 = sshllo.u32 0, 1
    %40 = vst [vmem:[%s1] sm:%s39] %v38

// kernel: bert_cross_forward.1
$region0: #{bert_cross_forward.1}
  #allocation0 [shape = 'u32[]', space=smem, size = 0x4, offset = 0x4, fixed_abs, tag = 'smem constant byte address 0x4 - core index']
  #allocation1 [shape = 'u32[144,128]{1,0:T(1,128)}', space=vmem, size = 0x12000, scoped, tag = 'internal scratch']
  %s0 = inlined_call_operand.vmem [shape: f32[48,32], index: 0, kind: input, shape index: {}]
  %s1 = inlined_call_operand.vmem [shape: f32[48,48], index: 1, kind: input, shape index: {}]
  %s2 = inlined_call_operand.vmem [shape: f32[4,32], index: 2, kind: input, shape index: {}]
  %s3 = inlined_call_operand.vmem [shape: f32[2,8,128], index: 3, kind: input, shape index: {}]
  %s4 = inlined_call_operand.vmem [shape: bf16[2,32,96], index: 4, kind: input, shape index: {}]
  %s5 = inlined_call_operand.vmem [shape: bf16[2,32,32], index: 5, kind: input, shape index: {}]
  %s6 = inlined_call_operand.vmem [shape: bf16[2,32,64], index: 6, kind: input, shape index: {}]
  %s7 = inlined_call_operand.vmem [shape: bf16[2,64,32], index: 7, kind: input, shape index: {}]
  %s8 = inlined_call_operand.vmem [shape: bf16[32,33], index: 8, kind: input, shape index: {}]
  %s9 = inlined_call_operand.vmem [shape: f32[6,1], index: 9, kind: output, shape index: {}]
  %s10 = sld [smem:[#allocation0]]
  $region46: #{bert_cross_forward.1} parent=0
    _
  %s12 = ssub.s32 1, %s10
  %s13 = scalar_select 0, %s12, %s10
  // Predicated region
  $region2: #{bert_cross_forward.1} parent=0 // pred_check
    _
  $region3: #{bert_cross_forward.1} parent=0 // pred_check_branch
    %15 = sbr.rel (0) target = $region5
  $region4: #{bert_cross_forward.1} parent=0 // pred_region
    _
  $region5: #{bert_cross_forward.1} parent=0 // pred_fallthru
    _
  // Predicated region
  $region6: #{bert_cross_forward.1} parent=0 // pred_check
    _
  $region7: #{bert_cross_forward.1} parent=0 // pred_check_branch
    %17 = sbr.rel (0) target = $region9
  $region8: #{bert_cross_forward.1} parent=0 // pred_region
    _
  $region9: #{bert_cross_forward.1} parent=0 // pred_fallthru
    _
  // Predicated region
  $region10: #{bert_cross_forward.1} parent=0 // pred_check
    _
  $region11: #{bert_cross_forward.1} parent=0 // pred_check_branch
    %19 = sbr.rel (0) target = $region13
  $region12: #{bert_cross_forward.1} parent=0 // pred_region
    _
  $region13: #{bert_cross_forward.1} parent=0 // pred_fallthru
    _
  // Predicated region
  $region14: #{bert_cross_forward.1} parent=0 // pred_check
    _
  $region15: #{bert_cross_forward.1} parent=0 // pred_check_branch
    %21 = sbr.rel (0) target = $region17
  $region16: #{bert_cross_forward.1} parent=0 // pred_region
    _
  $region17: #{bert_cross_forward.1} parent=0 // pred_fallthru
    _
  // Predicated region
  $region18: #{bert_cross_forward.1} parent=0 // pred_check
    _
  $region19: #{bert_cross_forward.1} parent=0 // pred_check_branch
    %23 = sbr.rel (0) target = $region21
  $region20: #{bert_cross_forward.1} parent=0 // pred_region
    _
  $region21: #{bert_cross_forward.1} parent=0 // pred_fallthru
    _
  // Predicated region
  $region22: #{bert_cross_forward.1} parent=0 // pred_check
    _
  $region23: #{bert_cross_forward.1} parent=0 // pred_check_branch
    %25 = sbr.rel (0) target = $region25
  $region24: #{bert_cross_forward.1} parent=0 // pred_region
    _
  $region25: #{bert_cross_forward.1} parent=0 // pred_fallthru
    _
  // Predicated region
  $region26: #{bert_cross_forward.1} parent=0 // pred_check
    _
  $region27: #{bert_cross_forward.1} parent=0 // pred_check_branch
    %27 = sbr.rel (0) target = $region29
  $region28: #{bert_cross_forward.1} parent=0 // pred_region
    _
  $region29: #{bert_cross_forward.1} parent=0 // pred_fallthru
    _
  // Predicated region
  $region30: #{bert_cross_forward.1} parent=0 // pred_check
    _
  $region31: #{bert_cross_forward.1} parent=0 // pred_check_branch
    %29 = sbr.rel (0) target = $region33
  $region32: #{bert_cross_forward.1} parent=0 // pred_region
    _
  $region33: #{bert_cross_forward.1} parent=0 // pred_fallthru
    _
  // Predicated region
  $region34: #{bert_cross_forward.1} parent=0 // pred_check
    _
  $region35: #{bert_cross_forward.1} parent=0 // pred_check_branch
    %31 = sbr.rel (0) target = $region37
  $region36: #{bert_cross_forward.1} parent=0 // pred_region
    _
  $region37: #{bert_cross_forward.1} parent=0 // pred_fallthru
    _
  %v33 = vld [vmem:[%s1] sm:$0xff]
  %v34 = vld [vmem:[%s1 + $0x8] sm:$0xff]
  %v35 = vld [vmem:[%s1 + $0x10] sm:$0xff]
  %v36 = vld [vmem:[%s1 + $0x18] sm:$0xff]
  %v37 = vld [vmem:[%s1 + $0x20] sm:$0xff]
  %v38 = vld [vmem:[%s1 + $0x28] sm:$0xff]
  %v39 = vld [vmem:[%s2] sm:$0xf]
  %v40 = vld [vmem:[%s0] sm:$0xff]
  %v41 = vld [vmem:[%s0 + $0x8] sm:$0xff]
  %v42 = vld [vmem:[%s0 + $0x10] sm:$0xff]
  %v43 = vld [vmem:[%s0 + $0x18] sm:$0xff]
  %v44 = vld [vmem:[%s0 + $0x20] sm:$0xff]
  %v45 = vld [vmem:[%s0 + $0x28] sm:$0xff]
  %vm46 = vcmask 261120
  %v47 = vsel %vm46, %v40, 0.0
  %48 = vadd.xlane.f32.xlu0 %v47
  %v49 = vpop.xlane.xlu0 %48
  %v50 = vsel %vm46, %v41, 0.0
  %51 = vadd.xlane.f32.xlu0 %v50
  %v52 = vpop.xlane.xlu0 %51
  %v53 = vsel %vm46, %v42, 0.0
  %54 = vadd.xlane.f32.xlu0 %v53
  %v55 = vpop.xlane.xlu0 %54
  %v56 = vsel %vm46, %v43, 0.0
  %57 = vadd.xlane.f32.xlu0 %v56
  %v58 = vpop.xlane.xlu0 %57
  %v59 = vsel %vm46, %v44, 0.0
  %60 = vadd.xlane.f32.xlu0 %v59
  %v61 = vpop.xlane.xlu0 %60
  %v62 = vsel %vm46, %v45, 0.0
  %63 = vadd.xlane.f32.xlu0 %v62
  %v64 = vpop.xlane.xlu0 %63
  %v65 = vrcp.pop 32.0
  %v66 = vmul.f32 %v49, %v65
  %v67 = vmul.f32 %v52, %v65
  %v68 = vmul.f32 %v55, %v65
  %v69 = vmul.f32 %v58, %v65
  %v70 = vmul.f32 %v61, %v65
  %v71 = vmul.f32 %v64, %v65
  %v72 = vsub.f32 %v40, %v66
  %v73 = vsub.f32 %v41, %v67
  %v74 = vsub.f32 %v42, %v68
  %v75 = vsub.f32 %v43, %v69
  %v76 = vsub.f32 %v44, %v70
  %v77 = vsub.f32 %v45, %v71
  %v78 = vmul.f32 %v72, %v72
  %v79 = vmul.f32 %v73, %v73
  %v80 = vmul.f32 %v74, %v74
  %v81 = vmul.f32 %v75, %v75
  %v82 = vmul.f32 %v76, %v76
  %v83 = vmul.f32 %v77, %v77
  %v84 = vsel %vm46, %v78, 0.0
  %85 = vadd.xlane.f32.xlu0 %v84
  %v86 = vpop.xlane.xlu0 %85
  %v87 = vsel %vm46, %v79, 0.0
  %88 = vadd.xlane.f32.xlu0 %v87
  %v89 = vpop.xlane.xlu0 %88
  %v90 = vsel %vm46, %v80, 0.0
  %91 = vadd.xlane.f32.xlu0 %v90
  %v92 = vpop.xlane.xlu0 %91
  %v93 = vsel %vm46, %v81, 0.0
  %94 = vadd.xlane.f32.xlu0 %v93
  %v95 = vpop.xlane.xlu0 %94
  %v96 = vsel %vm46, %v82, 0.0
  %97 = vadd.xlane.f32.xlu0 %v96
  %v98 = vpop.xlane.xlu0 %97
  %v99 = vsel %vm46, %v83, 0.0
  %100 = vadd.xlane.f32.xlu0 %v99
  %v101 = vpop.xlane.xlu0 %100
  %v102 = vmul.f32 %v86, %v65
  %v103 = vmul.f32 %v89, %v65
  %v104 = vmul.f32 %v92, %v65
  %v105 = vmul.f32 %v95, %v65
  %v106 = vmul.f32 %v98, %v65
  %v107 = vmul.f32 %v101, %v65
  %v108 = vadd.f32 %v102, 1e-12
  %v109 = vadd.f32 %v103, 1e-12
  %v110 = vadd.f32 %v104, 1e-12
  %v111 = vadd.f32 %v105, 1e-12
  %v112 = vadd.f32 %v106, 1e-12
  %v113 = vadd.f32 %v107, 1e-12
  %v114 = vrsqrt.pop %v108
  %v115 = vrsqrt.pop %v109
  %v116 = vrsqrt.pop %v110
  %v117 = vrsqrt.pop %v111
  %v118 = vrsqrt.pop %v112
  %v119 = vrsqrt.pop %v113
  %v120 = vmul.f32 %v72, %v114
  %v121 = vmul.f32 %v73, %v115
  %v122 = vmul.f32 %v74, %v116
  %v123 = vmul.f32 %v75, %v117
  %v124 = vmul.f32 %v76, %v118
  %v125 = vmul.f32 %v77, %v119
  %v126 = vlaneseq
  %v127 = vshrl.u32 %v126, 7
  %v128 = vsub.s32 0, %v127
  %v129 = vrot.slane %v39, %v128
  %v130 = vmul.f32 %v120, %v129
  %v131 = vmul.f32 %v121, %v129
  %v132 = vmul.f32 %v122, %v129
  %v133 = vmul.f32 %v123, %v129
  %v134 = vmul.f32 %v124, %v129
  %v135 = vmul.f32 %v125, %v129
  %v136 = vlaneseq
  %v137 = vshrl.u32 %v136, 7
  %v138 = vsub.s32 1, %v137
  %v139 = vrot.slane %v39, %v138
  %v140 = vadd.f32 %v130, %v139
  %v141 = vadd.f32 %v131, %v139
  %v142 = vadd.f32 %v132, %v139
  %v143 = vadd.f32 %v133, %v139
  %v144 = vadd.f32 %v134, %v139
  %v145 = vadd.f32 %v135, %v139
  %v146 = vld [vmem:[%s3] sm:$0xff]
  %v147 = vld [vmem:[%s4] sm:$0xf]
  %v148 = vld [vmem:[%s4 + $0x4] sm:$0xf]
  %v149 = vld [vmem:[%s4 + $0x8] sm:$0xf]
  %v150 = vld [vmem:[%s4 + $0xc] sm:$0xf]
  %v151 = vpack.c.bf16 %v141, %v140
  %v152 = vpack.c.bf16 %v143, %v142
  %v153 = vpack.c.bf16 %v145, %v144
  %v154 = vlaneseq
  %v155 = vshrl.u32 %v154, 7
  %v156 = vsub.s32 0, %v155
  %v157 = vrot.slane %v146, %v156
  %v162 = vunpack.c.l.b16 %v147
  %v163 = vunpack.c.l.b16 %v148
  %v164 = vunpack.c.l.b16 %v149
  %v165 = vunpack.c.l.b16 %v150
  %v166 = vpack.c.b16 %v163, %v162
  %v167 = vpack.c.b16 %v165, %v164
  %v171 = vsel %vm46, %v151, 0
  %v174 = vsel %vm46, %v152, 0
  %v177 = vsel %vm46, %v153, 0
  %179 = vmatprep.subr.bf16.mxu0 0
  %180 = vmatpush1.bf16.msra.mxu0 %v166
  %181 = vmatprep.subr.bf16.mxu0 0
  %182 = vmatpush1.bf16.msra.mxu0 %v167
  %183 = vmatprep.subr.bf16.mxu0 0
  %184 = vmatpush1.bf16.msra.mxu0 0
  %185 = vmatprep.subr.bf16.mxu0 0
  %186 = vmatpush1.bf16.msra.mxu0 0
  %187 = vmatprep.subr.bf16.mxu0 0
  %188 = vmatpush1.bf16.msra.mxu0 0
  %189 = vmatprep.subr.bf16.mxu0 0
  %190 = vmatpush1.bf16.msra.mxu0 0
  %191 = vmatprep.subr.bf16.mxu0 0
  %192 = vmatpush1.bf16.msra.mxu0 0
  %193 = vmatprep.subr.bf16.mxu0 0
  %194 = vmatpush1.bf16.msra.mxu0 0
  %195 = vmatprep.subr.bf16.mxu0 0
  %196 = vmatpush1.bf16.msra.mxu0 0
  %197 = vmatprep.subr.bf16.mxu0 0
  %198 = vmatpush1.bf16.msra.mxu0 0
  %199 = vmatprep.subr.bf16.mxu0 0
  %200 = vmatpush1.bf16.msra.mxu0 0
  %201 = vmatprep.subr.bf16.mxu0 0
  %202 = vmatpush1.bf16.msra.mxu0 0
  %203 = vmatprep.subr.bf16.mxu0 0
  %204 = vmatpush1.bf16.msra.mxu0 0
  %205 = vmatprep.subr.bf16.mxu0 0
  %206 = vmatpush1.bf16.msra.mxu0 0
  %207 = vmatprep.subr.bf16.mxu0 0
  %208 = vmatpush1.bf16.msra.mxu0 0
  %209 = vmatprep.subr.bf16.mxu0 0
  %210 = vmatpush1.bf16.msra.mxu0 0
  %211 = vmatprep.mubr.bf16.mxu0 0
  %212 = vmatmul.mubr.bf16.gmra.mrb[0].mxu0 %v171
  %v213 = vpop.f32.mrb[0].mxu0
  %v214 = vadd.f32 %v157, %v213
  %v215 = vpop.f32.mrb[0].mxu0
  %v216 = vpop.f32.mrb[0].mxu0
  %v217 = vadd.f32 %v157, %v216
  %v218 = vpop.f32.mrb[0].mxu0
  %219 = vmatprep.mubr.bf16.mxu0 0
  %220 = vmatmul.mubr.bf16.gmra.mrb[0].mxu0 %v174
  %v221 = vpop.f32.mrb[0].mxu0
  %v222 = vadd.f32 %v157, %v221
  %v223 = vpop.f32.mrb[0].mxu0
  %v224 = vpop.f32.mrb[0].mxu0
  %v225 = vadd.f32 %v157, %v224
  %v226 = vpop.f32.mrb[0].mxu0
  %227 = vmatprep.mubr.bf16.mxu0 0
  %228 = vmatmul.mubr.bf16.gmra.mrb[0].mxu0 %v177
  %v229 = vpop.f32.mrb[0].mxu0
  %v230 = vadd.f32 %v157, %v229
  %v231 = vpop.f32.mrb[0].mxu0
  %v232 = vpop.f32.mrb[0].mxu0
  %v233 = vadd.f32 %v157, %v232
  %v234 = vpop.f32.mrb[0].mxu0
  %235 = vdwg.mxu0
  %v236 = vpack.c.bf16 %v217, %v214
  %v237 = vpack.c.bf16 %v225, %v222
  %v238 = vpack.c.bf16 %v233, %v230
  %242 = vrot.lane.b32.xlu0 %v236, 96
  %v243 = vpop.permute.xlu0 %242
  %244 = vrot.lane.b32.xlu0 %v237, 96
  %v245 = vpop.permute.xlu0 %244
  %246 = vrot.lane.b32.xlu0 %v238, 96
  %v247 = vpop.permute.xlu0 %246
  %vm248 = vcmask 64512
  %v250 = vsel %vm248, %v236, 0
  %v253 = vsel %vm248, %v237, 0
  %v256 = vsel %vm248, %v238, 0
  %v259 = vsel %vm248, %v243, 0
  %v262 = vsel %vm248, %v245, 0
  %v265 = vsel %vm248, %v247, 0
  %267 = vmatprep.subr.bf16.mxu0 0
  %268 = vmatpush1.bf16.xpose.msra.mxu0 %v259
  %269 = vmatprep.subr.bf16.mxu0 0
  %270 = vmatpush1.bf16.xpose.msra.mxu0 %v262
  %271 = vmatprep.subr.bf16.mxu0 0
  %272 = vmatpush1.bf16.xpose.msra.mxu0 %v265
  %273 = vmatprep.subr.bf16.mxu0 0
  %274 = vmatpush1.bf16.xpose.msra.mxu0 0
  %275 = vmatprep.subr.bf16.mxu0 0
  %276 = vmatpush1.bf16.xpose.msra.mxu0 0
  %277 = vmatprep.subr.bf16.mxu0 0
  %278 = vmatpush1.bf16.xpose.msra.mxu0 0
  %279 = vmatprep.subr.bf16.mxu0 0
  %280 = vmatpush1.bf16.xpose.msra.mxu0 0
  %281 = vmatprep.subr.bf16.mxu0 0
  %282 = vmatpush1.bf16.xpose.msra.mxu0 0
  %283 = vmatprep.subr.bf16.mxu0 0
  %284 = vmatpush1.bf16.xpose.msra.mxu0 0
  %285 = vmatprep.subr.bf16.mxu0 0
  %286 = vmatpush1.bf16.xpose.msra.mxu0 0
  %287 = vmatprep.subr.bf16.mxu0 0
  %288 = vmatpush1.bf16.xpose.msra.mxu0 0
  %289 = vmatprep.subr.bf16.mxu0 0
  %290 = vmatpush1.bf16.xpose.msra.mxu0 0
  %291 = vmatprep.subr.bf16.mxu0 0
  %292 = vmatpush1.bf16.xpose.msra.mxu0 0
  %293 = vmatprep.subr.bf16.mxu0 0
  %294 = vmatpush1.bf16.xpose.msra.mxu0 0
  %295 = vmatprep.subr.bf16.mxu0 0
  %296 = vmatpush1.bf16.xpose.msra.mxu0 0
  %297 = vmatprep.subr.bf16.mxu0 0
  %298 = vmatpush1.bf16.xpose.msra.mxu0 0
  %299 = vmatprep.mubr.bf16.mxu0 0
  %300 = vmatmul.mubr.bf16.gmra.mrb[0].mxu0 %v250
  %v301 = vpop.f32.mrb[0].mxu0
  %v302 = vadd.f32 %v33, %v301
  %v303 = vpop.f32.mrb[0].mxu0
  %v304 = vpop.f32.mrb[0].mxu0
  %v305 = vadd.f32 %v34, %v304
  %v306 = vpop.f32.mrb[0].mxu0
  %307 = vmatprep.mubr.bf16.mxu0 0
  %308 = vmatmul.mubr.bf16.gmra.mrb[0].mxu0 %v253
  %v309 = vpop.f32.mrb[0].mxu0
  %v310 = vadd.f32 %v35, %v309
  %v311 = vpop.f32.mrb[0].mxu0
  %v312 = vpop.f32.mrb[0].mxu0
  %v313 = vadd.f32 %v36, %v312
  %v314 = vpop.f32.mrb[0].mxu0
  %315 = vmatprep.mubr.bf16.mxu0 0
  %316 = vmatmul.mubr.bf16.gmra.mrb[0].mxu0 %v256
  %v317 = vpop.f32.mrb[0].mxu0
  %v318 = vadd.f32 %v37, %v317
  %v319 = vpop.f32.mrb[0].mxu0
  %v320 = vpop.f32.mrb[0].mxu0
  %v321 = vadd.f32 %v38, %v320
  %v322 = vpop.f32.mrb[0].mxu0
  %323 = vdwg.mxu0
  %324 = vrot.lane.b32.xlu0 %v236, 120
  %v325 = vpop.permute.xlu0 %324
  %326 = vrot.lane.b32.xlu0 %v237, 120
  %v327 = vpop.permute.xlu0 %326
  %328 = vrot.lane.b32.xlu0 %v238, 120
  %v329 = vpop.permute.xlu0 %328
  %330 = vrot.lane.b32.xlu0 %v236, 88
  %v331 = vpop.permute.xlu0 %330
  %332 = vrot.lane.b32.xlu0 %v237, 88
  %v333 = vpop.permute.xlu0 %332
  %334 = vrot.lane.b32.xlu0 %v238, 88
  %v335 = vpop.permute.xlu0 %334
  %v337 = vsel %vm248, %v325, 0
  %v340 = vsel %vm248, %v327, 0
  %v343 = vsel %vm248, %v329, 0
  %v346 = vsel %vm248, %v331, 0
  %v349 = vsel %vm248, %v333, 0
  %v352 = vsel %vm248, %v335, 0
  %354 = vmatprep.subr.bf16.mxu0 0
  %355 = vmatpush1.bf16.xpose.msra.mxu0 %v346
  %356 = vmatprep.subr.bf16.mxu0 0
  %357 = vmatpush1.bf16.xpose.msra.mxu0 %v349
  %358 = vmatprep.subr.bf16.mxu0 0
  %359 = vmatpush1.bf16.xpose.msra.mxu0 %v352
  %360 = vmatprep.subr.bf16.mxu0 0
  %361 = vmatpush1.bf16.xpose.msra.mxu0 0
  %362 = vmatprep.subr.bf16.mxu0 0
  %363 = vmatpush1.bf16.xpose.msra.mxu0 0
  %364 = vmatprep.subr.bf16.mxu0 0
  %365 = vmatpush1.bf16.xpose.msra.mxu0 0
  %366 = vmatprep.subr.bf16.mxu0 0
  %367 = vmatpush1.bf16.xpose.msra.mxu0 0
  %368 = vmatprep.subr.bf16.mxu0 0
  %369 = vmatpush1.bf16.xpose.msra.mxu0 0
  %370 = vmatprep.subr.bf16.mxu0 0
  %371 = vmatpush1.bf16.xpose.msra.mxu0 0
  %372 = vmatprep.subr.bf16.mxu0 0
  %373 = vmatpush1.bf16.xpose.msra.mxu0 0
  %374 = vmatprep.subr.bf16.mxu0 0
  %375 = vmatpush1.bf16.xpose.msra.mxu0 0
  %376 = vmatprep.subr.bf16.mxu0 0
  %377 = vmatpush1.bf16.xpose.msra.mxu0 0
  %378 = vmatprep.subr.bf16.mxu0 0
  %379 = vmatpush1.bf16.xpose.msra.mxu0 0
  %380 = vmatprep.subr.bf16.mxu0 0
  %381 = vmatpush1.bf16.xpose.msra.mxu0 0
  %382 = vmatprep.subr.bf16.mxu0 0
  %383 = vmatpush1.bf16.xpose.msra.mxu0 0
  %384 = vmatprep.subr.bf16.mxu0 0
  %385 = vmatpush1.bf16.xpose.msra.mxu0 0
  %386 = vmatprep.mubr.bf16.mxu0 0
  %387 = vmatmul.mubr.bf16.gmra.mrb[0].mxu0 %v337
  %v388 = vpop.f32.mrb[0].mxu0
  %v389 = vadd.f32 %v33, %v388
  %v390 = vpop.f32.mrb[0].mxu0
  %v391 = vpop.f32.mrb[0].mxu0
  %v392 = vadd.f32 %v34, %v391
  %v393 = vpop.f32.mrb[0].mxu0
  %394 = vmatprep.mubr.bf16.mxu0 0
  %395 = vmatmul.mubr.bf16.gmra.mrb[0].mxu0 %v340
  %v396 = vpop.f32.mrb[0].mxu0
  %v397 = vadd.f32 %v35, %v396
  %v398 = vpop.f32.mrb[0].mxu0
  %v399 = vpop.f32.mrb[0].mxu0
  %v400 = vadd.f32 %v36, %v399
  %v401 = vpop.f32.mrb[0].mxu0
  %402 = vmatprep.mubr.bf16.mxu0 0
  %403 = vmatmul.mubr.bf16.gmra.mrb[0].mxu0 %v343
  %v404 = vpop.f32.mrb[0].mxu0
  %v405 = vadd.f32 %v37, %v404
  %v406 = vpop.f32.mrb[0].mxu0
  %v407 = vpop.f32.mrb[0].mxu0
  %v408 = vadd.f32 %v38, %v407
  %v409 = vpop.f32.mrb[0].mxu0
  %410 = vdwg.mxu0
  %411 = vrot.lane.b32.xlu0 %v236, 112
  %v412 = vpop.permute.xlu0 %411
  %413 = vrot.lane.b32.xlu0 %v237, 112
  %v414 = vpop.permute.xlu0 %413
  %415 = vrot.lane.b32.xlu0 %v238, 112
  %v416 = vpop.permute.xlu0 %415
  %417 = vrot.lane.b32.xlu0 %v236, 80
  %v418 = vpop.permute.xlu0 %417
  %419 = vrot.lane.b32.xlu0 %v237, 80
  %v420 = vpop.permute.xlu0 %419
  %421 = vrot.lane.b32.xlu0 %v238, 80
  %v422 = vpop.permute.xlu0 %421
  %v424 = vsel %vm248, %v412, 0
  %v427 = vsel %vm248, %v414, 0
  %v430 = vsel %vm248, %v416, 0
  %v433 = vsel %vm248, %v418, 0
  %v436 = vsel %vm248, %v420, 0
  %v439 = vsel %vm248, %v422, 0
  %441 = vmatprep.subr.bf16.mxu0 0
  %442 = vmatpush1.bf16.xpose.msra.mxu0 %v433
  %443 = vmatprep.subr.bf16.mxu0 0
  %444 = vmatpush1.bf16.xpose.msra.mxu0 %v436
  %445 = vmatprep.subr.bf16.mxu0 0
  %446 = vmatpush1.bf16.xpose.msra.mxu0 %v439
  %447 = vmatprep.subr.bf16.mxu0 0
  %448 = vmatpush1.bf16.xpose.msra.mxu0 0
  %449 = vmatprep.subr.bf16.mxu0 0
  %450 = vmatpush1.bf16.xpose.msra.mxu0 0
  %451 = vmatprep.subr.bf16.mxu0 0
  %452 = vmatpush1.bf16.xpose.msra.mxu0 0
  %453 = vmatprep.subr.bf16.mxu0 0
  %454 = vmatpush1.bf16.xpose.msra.mxu0 0
  %455 = vmatprep.subr.bf16.mxu0 0
  %456 = vmatpush1.bf16.xpose.msra.mxu0 0
  %457 = vmatprep.subr.bf16.mxu0 0
  %458 = vmatpush1.bf16.xpose.msra.mxu0 0
  %459 = vmatprep.subr.bf16.mxu0 0
  %460 = vmatpush1.bf16.xpose.msra.mxu0 0
  %461 = vmatprep.subr.bf16.mxu0 0
  %462 = vmatpush1.bf16.xpose.msra.mxu0 0
  %463 = vmatprep.subr.bf16.mxu0 0
  %464 = vmatpush1.bf16.xpose.msra.mxu0 0
  %465 = vmatprep.subr.bf16.mxu0 0
  %466 = vmatpush1.bf16.xpose.msra.mxu0 0
  %467 = vmatprep.subr.bf16.mxu0 0
  %468 = vmatpush1.bf16.xpose.msra.mxu0 0
  %469 = vmatprep.subr.bf16.mxu0 0
  %470 = vmatpush1.bf16.xpose.msra.mxu0 0
  %471 = vmatprep.subr.bf16.mxu0 0
  %472 = vmatpush1.bf16.xpose.msra.mxu0 0
  %473 = vmatprep.mubr.bf16.mxu0 0
  %474 = vmatmul.mubr.bf16.gmra.mrb[0].mxu0 %v424
  %v475 = vpop.f32.mrb[0].mxu0
  %v476 = vadd.f32 %v33, %v475
  %v477 = vpop.f32.mrb[0].mxu0
  %v478 = vpop.f32.mrb[0].mxu0
  %v479 = vadd.f32 %v34, %v478
  %v480 = vpop.f32.mrb[0].mxu0
  %481 = vmatprep.mubr.bf16.mxu0 0
  %482 = vmatmul.mubr.bf16.gmra.mrb[0].mxu0 %v427
  %v483 = vpop.f32.mrb[0].mxu0
  %v484 = vadd.f32 %v35, %v483
  %v485 = vpop.f32.mrb[0].mxu0
  %v486 = vpop.f32.mrb[0].mxu0
  %v487 = vadd.f32 %v36, %v486
  %v488 = vpop.f32.mrb[0].mxu0
  %489 = vmatprep.mubr.bf16.mxu0 0
  %490 = vmatmul.mubr.bf16.gmra.mrb[0].mxu0 %v430
  %v491 = vpop.f32.mrb[0].mxu0
  %v492 = vadd.f32 %v37, %v491
  %v493 = vpop.f32.mrb[0].mxu0
  %v494 = vpop.f32.mrb[0].mxu0
  %v495 = vadd.f32 %v38, %v494
  %v496 = vpop.f32.mrb[0].mxu0
  %497 = vdwg.mxu0
  %498 = vrot.lane.b32.xlu0 %v236, 104
  %v499 = vpop.permute.xlu0 %498
  %500 = vrot.lane.b32.xlu0 %v237, 104
  %v501 = vpop.permute.xlu0 %500
  %502 = vrot.lane.b32.xlu0 %v238, 104
  %v503 = vpop.permute.xlu0 %502
  %504 = vrot.lane.b32.xlu0 %v236, 72
  %v505 = vpop.permute.xlu0 %504
  %506 = vrot.lane.b32.xlu0 %v237, 72
  %v507 = vpop.permute.xlu0 %506
  %508 = vrot.lane.b32.xlu0 %v238, 72
  %v509 = vpop.permute.xlu0 %508
  %v511 = vsel %vm248, %v499, 0
  %v514 = vsel %vm248, %v501, 0
  %v517 = vsel %vm248, %v503, 0
  %v520 = vsel %vm248, %v505, 0
  %v523 = vsel %vm248, %v507, 0
  %v526 = vsel %vm248, %v509, 0
  %528 = vmatprep.subr.bf16.mxu0 0
  %529 = vmatpush1.bf16.xpose.msra.mxu0 %v520
  %530 = vmatprep.subr.bf16.mxu0 0
  %531 = vmatpush1.bf16.xpose.msra.mxu0 %v523
  %532 = vmatprep.subr.bf16.mxu0 0
  %533 = vmatpush1.bf16.xpose.msra.mxu0 %v526
  %534 = vmatprep.subr.bf16.mxu0 0
  %535 = vmatpush1.bf16.xpose.msra.mxu0 0
  %536 = vmatprep.subr.bf16.mxu0 0
  %537 = vmatpush1.bf16.xpose.msra.mxu0 0
  %538 = vmatprep.subr.bf16.mxu0 0
  %539 = vmatpush1.bf16.xpose.msra.mxu0 0
  %540 = vmatprep.subr.bf16.mxu0 0
  %541 = vmatpush1.bf16.xpose.msra.mxu0 0
  %542 = vmatprep.subr.bf16.mxu0 0
  %543 = vmatpush1.bf16.xpose.msra.mxu0 0
  %544 = vmatprep.subr.bf16.mxu0 0
  %545 = vmatpush1.bf16.xpose.msra.mxu0 0
  %546 = vmatprep.subr.bf16.mxu0 0
  %547 = vmatpush1.bf16.xpose.msra.mxu0 0
  %548 = vmatprep.subr.bf16.mxu0 0
  %549 = vmatpush1.bf16.xpose.msra.mxu0 0
  %550 = vmatprep.subr.bf16.mxu0 0
  %551 = vmatpush1.bf16.xpose.msra.mxu0 0
  %552 = vmatprep.subr.bf16.mxu0 0
  %553 = vmatpush1.bf16.xpose.msra.mxu0 0
  %554 = vmatprep.subr.bf16.mxu0 0
  %555 = vmatpush1.bf16.xpose.msra.mxu0 0
  %556 = vmatprep.subr.bf16.mxu0 0
  %557 = vmatpush1.bf16.xpose.msra.mxu0 0
  %558 = vmatprep.subr.bf16.mxu0 0
  %559 = vmatpush1.bf16.xpose.msra.mxu0 0
  %560 = vmatprep.mubr.bf16.mxu0 0
  %561 = vmatmul.mubr.bf16.gmra.mrb[0].mxu0 %v511
  %v562 = vpop.f32.mrb[0].mxu0
  %v563 = vadd.f32 %v33, %v562
  %v564 = vpop.f32.mrb[0].mxu0
  %v565 = vpop.f32.mrb[0].mxu0
  %v566 = vadd.f32 %v34, %v565
  %v567 = vpop.f32.mrb[0].mxu0
  %568 = vmatprep.mubr.bf16.mxu0 0
  %569 = vmatmul.mubr.bf16.gmra.mrb[0].mxu0 %v514
  %v570 = vpop.f32.mrb[0].mxu0
  %v571 = vadd.f32 %v35, %v570
  %v572 = vpop.f32.mrb[0].mxu0
  %v573 = vpop.f32.mrb[0].mxu0
  %v574 = vadd.f32 %v36, %v573
  %v575 = vpop.f32.mrb[0].mxu0
  %576 = vmatprep.mubr.bf16.mxu0 0
  %577 = vmatmul.mubr.bf16.gmra.mrb[0].mxu0 %v517
  %v578 = vpop.f32.mrb[0].mxu0
  %v579 = vadd.f32 %v37, %v578
  %v580 = vpop.f32.mrb[0].mxu0
  %v581 = vpop.f32.mrb[0].mxu0
  %v582 = vadd.f32 %v38, %v581
  %v583 = vpop.f32.mrb[0].mxu0
  %584 = vdwg.mxu0
  %vm585 = vcmask 392192
  %v586 = vsel %vm585, %v302, -inf
  %587 = vmax.xlane.f32.xlu0 %v586
  %v588 = vpop.xlane.xlu0 %587
  %v589 = vsel %vm585, %v305, -inf
  %590 = vmax.xlane.f32.xlu0 %v589
  %v591 = vpop.xlane.xlu0 %590
  %v592 = vsel %vm585, %v310, -inf
  %593 = vmax.xlane.f32.xlu0 %v592
  %v594 = vpop.xlane.xlu0 %593
  %v595 = vsel %vm585, %v313, -inf
  %596 = vmax.xlane.f32.xlu0 %v595
  %v597 = vpop.xlane.xlu0 %596
  %v598 = vsel %vm585, %v318, -inf
  %599 = vmax.xlane.f32.xlu0 %v598
  %v600 = vpop.xlane.xlu0 %599
  %v601 = vsel %vm585, %v321, -inf
  %602 = vmax.xlane.f32.xlu0 %v601
  %v603 = vpop.xlane.xlu0 %602
  %v604 = vsel %vm585, %v389, -inf
  %605 = vmax.xlane.f32.xlu0 %v604
  %v606 = vpop.xlane.xlu0 %605
  %v607 = vsel %vm585, %v392, -inf
  %608 = vmax.xlane.f32.xlu0 %v607
  %v609 = vpop.xlane.xlu0 %608
  %v610 = vsel %vm585, %v397, -inf
  %611 = vmax.xlane.f32.xlu0 %v610
  %v612 = vpop.xlane.xlu0 %611
  %v613 = vsel %vm585, %v400, -inf
  %614 = vmax.xlane.f32.xlu0 %v613
  %v615 = vpop.xlane.xlu0 %614
  %v616 = vsel %vm585, %v405, -inf
  %617 = vmax.xlane.f32.xlu0 %v616
  %v618 = vpop.xlane.xlu0 %617
  %v619 = vsel %vm585, %v408, -inf
  %620 = vmax.xlane.f32.xlu0 %v619
  %v621 = vpop.xlane.xlu0 %620
  %v622 = vsel %vm585, %v476, -inf
  %623 = vmax.xlane.f32.xlu0 %v622
  %v624 = vpop.xlane.xlu0 %623
  %v625 = vsel %vm585, %v479, -inf
  %626 = vmax.xlane.f32.xlu0 %v625
  %v627 = vpop.xlane.xlu0 %626
  %v628 = vsel %vm585, %v484, -inf
  %629 = vmax.xlane.f32.xlu0 %v628
  %v630 = vpop.xlane.xlu0 %629
  %v631 = vsel %vm585, %v487, -inf
  %632 = vmax.xlane.f32.xlu0 %v631
  %v633 = vpop.xlane.xlu0 %632
  %v634 = vsel %vm585, %v492, -inf
  %635 = vmax.xlane.f32.xlu0 %v634
  %v636 = vpop.xlane.xlu0 %635
  %v637 = vsel %vm585, %v495, -inf
  %638 = vmax.xlane.f32.xlu0 %v637
  %v639 = vpop.xlane.xlu0 %638
  %v640 = vsel %vm585, %v563, -inf
  %641 = vmax.xlane.f32.xlu0 %v640
  %v642 = vpop.xlane.xlu0 %641
  %v643 = vsel %vm585, %v566, -inf
  %644 = vmax.xlane.f32.xlu0 %v643
  %v645 = vpop.xlane.xlu0 %644
  %v646 = vsel %vm585, %v571, -inf
  %647 = vmax.xlane.f32.xlu0 %v646
  %v648 = vpop.xlane.xlu0 %647
  %v649 = vsel %vm585, %v574, -inf
  %650 = vmax.xlane.f32.xlu0 %v649
  %v651 = vpop.xlane.xlu0 %650
  %v652 = vsel %vm585, %v579, -inf
  %653 = vmax.xlane.f32.xlu0 %v652
  %v654 = vpop.xlane.xlu0 %653
  %v655 = vsel %vm585, %v582, -inf
  %656 = vmax.xlane.f32.xlu0 %v655
  %v657 = vpop.xlane.xlu0 %656
  %v658 = vsub.f32 %v302, %v588
  %v659 = vsub.f32 %v305, %v591
  %v660 = vsub.f32 %v310, %v594
  %v661 = vsub.f32 %v313, %v597
  %v662 = vsub.f32 %v318, %v600
  %v663 = vsub.f32 %v321, %v603
  %v664 = vsub.f32 %v389, %v606
  %v665 = vsub.f32 %v392, %v609
  %v666 = vsub.f32 %v397, %v612
  %v667 = vsub.f32 %v400, %v615
  %v668 = vsub.f32 %v405, %v618
  %v669 = vsub.f32 %v408, %v621
  %v670 = vsub.f32 %v476, %v624
  %v671 = vsub.f32 %v479, %v627
  %v672 = vsub.f32 %v484, %v630
  %v673 = vsub.f32 %v487, %v633
  %v674 = vsub.f32 %v492, %v636
  %v675 = vsub.f32 %v495, %v639
  %v676 = vsub.f32 %v563, %v642
  %v677 = vsub.f32 %v566, %v645
  %v678 = vsub.f32 %v571, %v648
  %v679 = vsub.f32 %v574, %v651
  %v680 = vsub.f32 %v579, %v654
  %v681 = vsub.f32 %v582, %v657
  %v682 = vmul.f32 %v658, 1.442695
  %v683 = vpow.pop %v682
  %v684 = vmul.f32 %v659, 1.442695
  %v685 = vpow.pop %v684
  %v686 = vmul.f32 %v660, 1.442695
  %v687 = vpow.pop %v686
  %v688 = vmul.f32 %v661, 1.442695
  %v689 = vpow.pop %v688
  %v690 = vmul.f32 %v662, 1.442695
  %v691 = vpow.pop %v690
  %v692 = vmul.f32 %v663, 1.442695
  %v693 = vpow.pop %v692
  %v694 = vmul.f32 %v664, 1.442695
  %v695 = vpow.pop %v694
  %v696 = vmul.f32 %v665, 1.442695
  %v697 = vpow.pop %v696
  %v698 = vmul.f32 %v666, 1.442695
  %v699 = vpow.pop %v698
  %v700 = vmul.f32 %v667, 1.442695
  %v701 = vpow.pop %v700
  %v702 = vmul.f32 %v668, 1.442695
  %v703 = vpow.pop %v702
  %v704 = vmul.f32 %v669, 1.442695
  %v705 = vpow.pop %v704
  %v706 = vmul.f32 %v670, 1.442695
  %v707 = vpow.pop %v706
  %v708 = vmul.f32 %v671, 1.442695
  %v709 = vpow.pop %v708
  %v710 = vmul.f32 %v672, 1.442695
  %v711 = vpow.pop %v710
  %v712 = vmul.f32 %v673, 1.442695
  %v713 = vpow.pop %v712
  %v714 = vmul.f32 %v674, 1.442695
  %v715 = vpow.pop %v714
  %v716 = vmul.f32 %v675, 1.442695
  %v717 = vpow.pop %v716
  %v718 = vmul.f32 %v676, 1.442695
  %v719 = vpow.pop %v718
  %v720 = vmul.f32 %v677, 1.442695
  %v721 = vpow.pop %v720
  %v722 = vmul.f32 %v678, 1.442695
  %v723 = vpow.pop %v722
  %v724 = vmul.f32 %v679, 1.442695
  %v725 = vpow.pop %v724
  %v726 = vmul.f32 %v680, 1.442695
  %v727 = vpow.pop %v726
  %v728 = vmul.f32 %v681, 1.442695
  %v729 = vpow.pop %v728
  %v730 = vsel %vm585, %v683, 0.0
  %731 = vadd.xlane.f32.xlu0 %v730
  %v732 = vpop.xlane.xlu0 %731
  %v733 = vsel %vm585, %v685, 0.0
  %734 = vadd.xlane.f32.xlu0 %v733
  %v735 = vpop.xlane.xlu0 %734
  %v736 = vsel %vm585, %v687, 0.0
  %737 = vadd.xlane.f32.xlu0 %v736
  %v738 = vpop.xlane.xlu0 %737
  %v739 = vsel %vm585, %v689, 0.0
  %740 = vadd.xlane.f32.xlu0 %v739
  %v741 = vpop.xlane.xlu0 %740
  %v742 = vsel %vm585, %v691, 0.0
  %743 = vadd.xlane.f32.xlu0 %v742
  %v744 = vpop.xlane.xlu0 %743
  %v745 = vsel %vm585, %v693, 0.0
  %746 = vadd.xlane.f32.xlu0 %v745
  %v747 = vpop.xlane.xlu0 %746
  %v748 = vsel %vm585, %v695, 0.0
  %749 = vadd.xlane.f32.xlu0 %v748
  %v750 = vpop.xlane.xlu0 %749
  %v751 = vsel %vm585, %v697, 0.0
  %752 = vadd.xlane.f32.xlu0 %v751
  %v753 = vpop.xlane.xlu0 %752
  %v754 = vsel %vm585, %v699, 0.0
  %755 = vadd.xlane.f32.xlu0 %v754
  %v756 = vpop.xlane.xlu0 %755
  %v757 = vsel %vm585, %v701, 0.0
  %758 = vadd.xlane.f32.xlu0 %v757
  %v759 = vpop.xlane.xlu0 %758
  %v760 = vsel %vm585, %v703, 0.0
  %761 = vadd.xlane.f32.xlu0 %v760
  %v762 = vpop.xlane.xlu0 %761
  %v763 = vsel %vm585, %v705, 0.0
  %764 = vadd.xlane.f32.xlu0 %v763
  %v765 = vpop.xlane.xlu0 %764
  %v766 = vsel %vm585, %v707, 0.0
  %767 = vadd.xlane.f32.xlu0 %v766
  %v768 = vpop.xlane.xlu0 %767
  %v769 = vsel %vm585, %v709, 0.0
  %770 = vadd.xlane.f32.xlu0 %v769
  %v771 = vpop.xlane.xlu0 %770
  %v772 = vsel %vm585, %v711, 0.0
  %773 = vadd.xlane.f32.xlu0 %v772
  %v774 = vpop.xlane.xlu0 %773
  %v775 = vsel %vm585, %v713, 0.0
  %776 = vadd.xlane.f32.xlu0 %v775
  %v777 = vpop.xlane.xlu0 %776
  %v778 = vsel %vm585, %v715, 0.0
  %779 = vadd.xlane.f32.xlu0 %v778
  %v780 = vpop.xlane.xlu0 %779
  %v781 = vsel %vm585, %v717, 0.0
  %782 = vadd.xlane.f32.xlu0 %v781
  %v783 = vpop.xlane.xlu0 %782
  %v784 = vsel %vm585, %v719, 0.0
  %785 = vadd.xlane.f32.xlu0 %v784
  %v786 = vpop.xlane.xlu0 %785
  %v787 = vsel %vm585, %v721, 0.0
  %788 = vadd.xlane.f32.xlu0 %v787
  %v789 = vpop.xlane.xlu0 %788
  %v790 = vsel %vm585, %v723, 0.0
  %791 = vadd.xlane.f32.xlu0 %v790
  %v792 = vpop.xlane.xlu0 %791
  %v793 = vsel %vm585, %v725, 0.0
  %794 = vadd.xlane.f32.xlu0 %v793
  %v795 = vpop.xlane.xlu0 %794
  %v796 = vsel %vm585, %v727, 0.0
  %797 = vadd.xlane.f32.xlu0 %v796
  %v798 = vpop.xlane.xlu0 %797
  %v799 = vsel %vm585, %v729, 0.0
  %800 = vadd.xlane.f32.xlu0 %v799
  %v801 = vpop.xlane.xlu0 %800
  %v802 = vrcp.pop %v732
  %v803 = vrcp.pop %v735
  %v804 = vrcp.pop %v738
  %v805 = vrcp.pop %v741
  %v806 = vrcp.pop %v744
  %v807 = vrcp.pop %v747
  %v808 = vrcp.pop %v750
  %v809 = vrcp.pop %v753
  %v810 = vrcp.pop %v756
  %v811 = vrcp.pop %v759
  %v812 = vrcp.pop %v762
  %v813 = vrcp.pop %v765
  %v814 = vrcp.pop %v768
  %v815 = vrcp.pop %v771
  %v816 = vrcp.pop %v774
  %v817 = vrcp.pop %v777
  %v818 = vrcp.pop %v780
  %v819 = vrcp.pop %v783
  %v820 = vrcp.pop %v786
  %v821 = vrcp.pop %v789
  %v822 = vrcp.pop %v792
  %v823 = vrcp.pop %v795
  %v824 = vrcp.pop %v798
  %v825 = vrcp.pop %v801
  %v826 = vmul.f32 %v683, %v802
  %v827 = vmul.f32 %v685, %v803
  %v828 = vmul.f32 %v687, %v804
  %v829 = vmul.f32 %v689, %v805
  %v830 = vmul.f32 %v691, %v806
  %v831 = vmul.f32 %v693, %v807
  %v832 = vmul.f32 %v695, %v808
  %v833 = vmul.f32 %v697, %v809
  %v834 = vmul.f32 %v699, %v810
  %v835 = vmul.f32 %v701, %v811
  %v836 = vmul.f32 %v703, %v812
  %v837 = vmul.f32 %v705, %v813
  %v838 = vmul.f32 %v707, %v814
  %v839 = vmul.f32 %v709, %v815
  %v840 = vmul.f32 %v711, %v816
  %v841 = vmul.f32 %v713, %v817
  %v842 = vmul.f32 %v715, %v818
  %v843 = vmul.f32 %v717, %v819
  %v844 = vmul.f32 %v719, %v820
  %v845 = vmul.f32 %v721, %v821
  %v846 = vmul.f32 %v723, %v822
  %v847 = vmul.f32 %v725, %v823
  %v848 = vmul.f32 %v727, %v824
  %v849 = vmul.f32 %v729, %v825
  %v850 = vpack.c.bf16 %v827, %v826
  %v851 = vpack.c.bf16 %v829, %v828
  %v852 = vpack.c.bf16 %v831, %v830
  %v853 = vpack.c.bf16 %v833, %v832
  %v854 = vpack.c.bf16 %v835, %v834
  %v855 = vpack.c.bf16 %v837, %v836
  %v856 = vpack.c.bf16 %v839, %v838
  %v857 = vpack.c.bf16 %v841, %v840
  %v858 = vpack.c.bf16 %v843, %v842
  %v859 = vpack.c.bf16 %v845, %v844
  %v860 = vpack.c.bf16 %v847, %v846
  %v861 = vpack.c.bf16 %v849, %v848
  %862 = vrot.lane.b32.xlu0 %v236, 64
  %v863 = vpop.permute.xlu0 %862
  %864 = vrot.lane.b32.xlu0 %v237, 64
  %v865 = vpop.permute.xlu0 %864
  %866 = vrot.lane.b32.xlu0 %v238, 64
  %v867 = vpop.permute.xlu0 %866
  %v872 = vsel %vm585, %v850, 0
  %v875 = vsel %vm585, %v851, 0
  %v878 = vsel %vm585, %v852, 0
  %880 = vmatprep.subr.bf16.mxu0 0
  %881 = vmatpush1.bf16.msra.mxu0 %v863
  %882 = vmatprep.subr.bf16.mxu0 0
  %883 = vmatpush1.bf16.msra.mxu0 %v865
  %884 = vmatprep.subr.bf16.mxu0 0
  %885 = vmatpush1.bf16.msra.mxu0 %v867
  %886 = vmatprep.subr.bf16.mxu0 0
  %887 = vmatpush1.bf16.msra.mxu0 0
  %888 = vmatprep.subr.bf16.mxu0 0
  %889 = vmatpush1.bf16.msra.mxu0 0
  %890 = vmatprep.subr.bf16.mxu0 0
  %891 = vmatpush1.bf16.msra.mxu0 0
  %892 = vmatprep.subr.bf16.mxu0 0
  %893 = vmatpush1.bf16.msra.mxu0 0
  %894 = vmatprep.subr.bf16.mxu0 0
  %895 = vmatpush1.bf16.msra.mxu0 0
  %896 = vmatprep.subr.bf16.mxu0 0
  %897 = vmatpush1.bf16.msra.mxu0 0
  %898 = vmatprep.subr.bf16.mxu0 0
  %899 = vmatpush1.bf16.msra.mxu0 0
  %900 = vmatprep.subr.bf16.mxu0 0
  %901 = vmatpush1.bf16.msra.mxu0 0
  %902 = vmatprep.subr.bf16.mxu0 0
  %903 = vmatpush1.bf16.msra.mxu0 0
  %904 = vmatprep.subr.bf16.mxu0 0
  %905 = vmatpush1.bf16.msra.mxu0 0
  %906 = vmatprep.subr.bf16.mxu0 0
  %907 = vmatpush1.bf16.msra.mxu0 0
  %908 = vmatprep.subr.bf16.mxu0 0
  %909 = vmatpush1.bf16.msra.mxu0 0
  %910 = vmatprep.subr.bf16.mxu0 0
  %911 = vmatpush1.bf16.msra.mxu0 0
  %912 = vmatprep.mubr.bf16.mxu0 0
  %913 = vmatmul.mubr.bf16.gmra.mrb[0].mxu0 %v872
  %v914 = vpop.f32.mrb[0].mxu0
  %v915 = vadd.f32 0.0, %v914
  %v916 = vpop.f32.mrb[0].mxu0
  %v917 = vpop.f32.mrb[0].mxu0
  %v918 = vadd.f32 0.0, %v917
  %v919 = vpop.f32.mrb[0].mxu0
  %920 = vmatprep.mubr.bf16.mxu0 0
  %921 = vmatmul.mubr.bf16.gmra.mrb[0].mxu0 %v875
  %v922 = vpop.f32.mrb[0].mxu0
  %v923 = vadd.f32 0.0, %v922
  %v924 = vpop.f32.mrb[0].mxu0
  %v925 = vpop.f32.mrb[0].mxu0
  %v926 = vadd.f32 0.0, %v925
  %v927 = vpop.f32.mrb[0].mxu0
  %928 = vmatprep.mubr.bf16.mxu0 0
  %929 = vmatmul.mubr.bf16.gmra.mrb[0].mxu0 %v878
  %v930 = vpop.f32.mrb[0].mxu0
  %v931 = vadd.f32 0.0, %v930
  %v932 = vpop.f32.mrb[0].mxu0
  %v933 = vpop.f32.mrb[0].mxu0
  %v934 = vadd.f32 0.0, %v933
  %v935 = vpop.f32.mrb[0].mxu0
  %936 = vdwg.mxu0
  %937 = vrot.lane.b32.xlu0 %v236, 56
  %v938 = vpop.permute.xlu0 %937
  %939 = vrot.lane.b32.xlu0 %v237, 56
  %v940 = vpop.permute.xlu0 %939
  %941 = vrot.lane.b32.xlu0 %v238, 56
  %v942 = vpop.permute.xlu0 %941
  %v947 = vsel %vm585, %v853, 0
  %v950 = vsel %vm585, %v854, 0
  %v953 = vsel %vm585, %v855, 0
  %955 = vmatprep.subr.bf16.mxu0 0
  %956 = vmatpush1.bf16.msra.mxu0 %v938
  %957 = vmatprep.subr.bf16.mxu0 0
  %958 = vmatpush1.bf16.msra.mxu0 %v940
  %959 = vmatprep.subr.bf16.mxu0 0
  %960 = vmatpush1.bf16.msra.mxu0 %v942
  %961 = vmatprep.subr.bf16.mxu0 0
  %962 = vmatpush1.bf16.msra.mxu0 0
  %963 = vmatprep.subr.bf16.mxu0 0
  %964 = vmatpush1.bf16.msra.mxu0 0
  %965 = vmatprep.subr.bf16.mxu0 0
  %966 = vmatpush1.bf16.msra.mxu0 0
  %967 = vmatprep.subr.bf16.mxu0 0
  %968 = vmatpush1.bf16.msra.mxu0 0
  %969 = vmatprep.subr.bf16.mxu0 0
  %970 = vmatpush1.bf16.msra.mxu0 0
  %971 = vmatprep.subr.bf16.mxu0 0
  %972 = vmatpush1.bf16.msra.mxu0 0
  %973 = vmatprep.subr.bf16.mxu0 0
  %974 = vmatpush1.bf16.msra.mxu0 0
  %975 = vmatprep.subr.bf16.mxu0 0
  %976 = vmatpush1.bf16.msra.mxu0 0
  %977 = vmatprep.subr.bf16.mxu0 0
  %978 = vmatpush1.bf16.msra.mxu0 0
  %979 = vmatprep.subr.bf16.mxu0 0
  %980 = vmatpush1.bf16.msra.mxu0 0
  %981 = vmatprep.subr.bf16.mxu0 0
  %982 = vmatpush1.bf16.msra.mxu0 0
  %983 = vmatprep.subr.bf16.mxu0 0
  %984 = vmatpush1.bf16.msra.mxu0 0
  %985 = vmatprep.subr.bf16.mxu0 0
  %986 = vmatpush1.bf16.msra.mxu0 0
  %987 = vmatprep.mubr.bf16.mxu0 0
  %988 = vmatmul.mubr.bf16.gmra.mrb[0].mxu0 %v947
  %v989 = vpop.f32.mrb[0].mxu0
  %v990 = vadd.f32 0.0, %v989
  %v991 = vpop.f32.mrb[0].mxu0
  %v992 = vpop.f32.mrb[0].mxu0
  %v993 = vadd.f32 0.0, %v992
  %v994 = vpop.f32.mrb[0].mxu0
  %995 = vmatprep.mubr.bf16.mxu0 0
  %996 = vmatmul.mubr.bf16.gmra.mrb[0].mxu0 %v950
  %v997 = vpop.f32.mrb[0].mxu0
  %v998 = vadd.f32 0.0, %v997
  %v999 = vpop.f32.mrb[0].mxu0
  %v1000 = vpop.f32.mrb[0].mxu0
  %v1001 = vadd.f32 0.0, %v1000
  %v1002 = vpop.f32.mrb[0].mxu0
  %1003 = vmatprep.mubr.bf16.mxu0 0
  %1004 = vmatmul.mubr.bf16.gmra.mrb[0].mxu0 %v953
  %v1005 = vpop.f32.mrb[0].mxu0
  %v1006 = vadd.f32 0.0, %v1005
  %v1007 = vpop.f32.mrb[0].mxu0
  %v1008 = vpop.f32.mrb[0].mxu0
  %v1009 = vadd.f32 0.0, %v1008
  %v1010 = vpop.f32.mrb[0].mxu0
  %1011 = vdwg.mxu0
  %1012 = vrot.lane.b32.xlu0 %v236, 48
  %v1013 = vpop.permute.xlu0 %1012
  %1014 = vrot.lane.b32.xlu0 %v237, 48
  %v1015 = vpop.permute.xlu0 %1014
  %1016 = vrot.lane.b32.xlu0 %v238, 48
  %v1017 = vpop.permute.xlu0 %1016
  %v1022 = vsel %vm585, %v856, 0
  %v1025 = vsel %vm585, %v857, 0
  %v1028 = vsel %vm585, %v858, 0
  %1030 = vmatprep.subr.bf16.mxu0 0
  %1031 = vmatpush1.bf16.msra.mxu0 %v1013
  %1032 = vmatprep.subr.bf16.mxu0 0
  %1033 = vmatpush1.bf16.msra.mxu0 %v1015
  %1034 = vmatprep.subr.bf16.mxu0 0
  %1035 = vmatpush1.bf16.msra.mxu0 %v1017
  %1036 = vmatprep.subr.bf16.mxu0 0
  %1037 = vmatpush1.bf16.msra.mxu0 0
  %1038 = vmatprep.subr.bf16.mxu0 0
  %1039 = vmatpush1.bf16.msra.mxu0 0
  %1040 = vmatprep.subr.bf16.mxu0 0
  %1041 = vmatpush1.bf16.msra.mxu0 0
  %1042 = vmatprep.subr.bf16.mxu0 0
  %1043 = vmatpush1.bf16.msra.mxu0 0
  %1044 = vmatprep.subr.bf16.mxu0 0
  %1045 = vmatpush1.bf16.msra.mxu0 0
  %1046 = vmatprep.subr.bf16.mxu0 0
  %1047 = vmatpush1.bf16.msra.mxu0 0
  %1048 = vmatprep.subr.bf16.mxu0 0
  %1049 = vmatpush1.bf16.msra.mxu0 0
  %1050 = vmatprep.subr.bf16.mxu0 0
  %1051 = vmatpush1.bf16.msra.mxu0 0
  %1052 = vmatprep.subr.bf16.mxu0 0
  %1053 = vmatpush1.bf16.msra.mxu0 0
  %1054 = vmatprep.subr.bf16.mxu0 0
  %1055 = vmatpush1.bf16.msra.mxu0 0
  %1056 = vmatprep.subr.bf16.mxu0 0
  %1057 = vmatpush1.bf16.msra.mxu0 0
  %1058 = vmatprep.subr.bf16.mxu0 0
  %1059 = vmatpush1.bf16.msra.mxu0 0
  %1060 = vmatprep.subr.bf16.mxu0 0
  %1061 = vmatpush1.bf16.msra.mxu0 0
  %1062 = vmatprep.mubr.bf16.mxu0 0
  %1063 = vmatmul.mubr.bf16.gmra.mrb[0].mxu0 %v1022
  %v1064 = vpop.f32.mrb[0].mxu0
  %v1065 = vadd.f32 0.0, %v1064
  %v1066 = vpop.f32.mrb[0].mxu0
  %v1067 = vpop.f32.mrb[0].mxu0
  %v1068 = vadd.f32 0.0, %v1067
  %v1069 = vpop.f32.mrb[0].mxu0
  %1070 = vmatprep.mubr.bf16.mxu0 0
  %1071 = vmatmul.mubr.bf16.gmra.mrb[0].mxu0 %v1025
  %v1072 = vpop.f32.mrb[0].mxu0
  %v1073 = vadd.f32 0.0, %v1072
  %v1074 = vpop.f32.mrb[0].mxu0
  %v1075 = vpop.f32.mrb[0].mxu0
  %v1076 = vadd.f32 0.0, %v1075
  %v1077 = vpop.f32.mrb[0].mxu0
  %1078 = vmatprep.mubr.bf16.mxu0 0
  %1079 = vmatmul.mubr.bf16.gmra.mrb[0].mxu0 %v1028
  %v1080 = vpop.f32.mrb[0].mxu0
  %v1081 = vadd.f32 0.0, %v1080
  %v1082 = vpop.f32.mrb[0].mxu0
  %v1083 = vpop.f32.mrb[0].mxu0
  %v1084 = vadd.f32 0.0, %v1083
  %v1085 = vpop.f32.mrb[0].mxu0
  %1086 = vdwg.mxu0
  %1087 = vrot.lane.b32.xlu0 %v236, 40
  %v1088 = vpop.permute.xlu0 %1087
  %1089 = vrot.lane.b32.xlu0 %v237, 40
  %v1090 = vpop.permute.xlu0 %1089
  %1091 = vrot.lane.b32.xlu0 %v238, 40
  %v1092 = vpop.permute.xlu0 %1091
  %v1097 = vsel %vm585, %v859, 0
  %v1100 = vsel %vm585, %v860, 0
  %v1103 = vsel %vm585, %v861, 0
  %1105 = vmatprep.subr.bf16.mxu0 0
  %1106 = vmatpush1.bf16.msra.mxu0 %v1088
  %1107 = vmatprep.subr.bf16.mxu0 0
  %1108 = vmatpush1.bf16.msra.mxu0 %v1090
  %1109 = vmatprep.subr.bf16.mxu0 0
  %1110 = vmatpush1.bf16.msra.mxu0 %v1092
  %1111 = vmatprep.subr.bf16.mxu0 0
  %1112 = vmatpush1.bf16.msra.mxu0 0
  %1113 = vmatprep.subr.bf16.mxu0 0
  %1114 = vmatpush1.bf16.msra.mxu0 0
  %1115 = vmatprep.subr.bf16.mxu0 0
  %1116 = vmatpush1.bf16.msra.mxu0 0
  %1117 = vmatprep.subr.bf16.mxu0 0
  %1118 = vmatpush1.bf16.msra.mxu0 0
  %1119 = vmatprep.subr.bf16.mxu0 0
  %1120 = vmatpush1.bf16.msra.mxu0 0
  %1121 = vmatprep.subr.bf16.mxu0 0
  %1122 = vmatpush1.bf16.msra.mxu0 0
  %1123 = vmatprep.subr.bf16.mxu0 0
  %1124 = vmatpush1.bf16.msra.mxu0 0
  %1125 = vmatprep.subr.bf16.mxu0 0
  %1126 = vmatpush1.bf16.msra.mxu0 0
  %1127 = vmatprep.subr.bf16.mxu0 0
  %1128 = vmatpush1.bf16.msra.mxu0 0
  %1129 = vmatprep.subr.bf16.mxu0 0
  %1130 = vmatpush1.bf16.msra.mxu0 0
  %1131 = vmatprep.subr.bf16.mxu0 0
  %1132 = vmatpush1.bf16.msra.mxu0 0
  %1133 = vmatprep.subr.bf16.mxu0 0
  %1134 = vmatpush1.bf16.msra.mxu0 0
  %1135 = vmatprep.subr.bf16.mxu0 0
  %1136 = vmatpush1.bf16.msra.mxu0 0
  %1137 = vmatprep.mubr.bf16.mxu0 0
  %1138 = vmatmul.mubr.bf16.gmra.mrb[0].mxu0 %v1097
  %v1139 = vpop.f32.mrb[0].mxu0
  %v1140 = vadd.f32 0.0, %v1139
  %v1141 = vpop.f32.mrb[0].mxu0
  %v1142 = vpop.f32.mrb[0].mxu0
  %v1143 = vadd.f32 0.0, %v1142
  %v1144 = vpop.f32.mrb[0].mxu0
  %1145 = vmatprep.mubr.bf16.mxu0 0
  %1146 = vmatmul.mubr.bf16.gmra.mrb[0].mxu0 %v1100
  %v1147 = vpop.f32.mrb[0].mxu0
  %v1148 = vadd.f32 0.0, %v1147
  %v1149 = vpop.f32.mrb[0].mxu0
  %v1150 = vpop.f32.mrb[0].mxu0
  %v1151 = vadd.f32 0.0, %v1150
  %v1152 = vpop.f32.mrb[0].mxu0
  %1153 = vmatprep.mubr.bf16.mxu0 0
  %1154 = vmatmul.mubr.bf16.gmra.mrb[0].mxu0 %v1103
  %v1155 = vpop.f32.mrb[0].mxu0
  %v1156 = vadd.f32 0.0, %v1155
  %v1157 = vpop.f32.mrb[0].mxu0
  %v1158 = vpop.f32.mrb[0].mxu0
  %v1159 = vadd.f32 0.0, %v1158
  %v1160 = vpop.f32.mrb[0].mxu0
  %1161 = vdwg.mxu0
  %1168 = vrot.lane.b32.xlu0 %v990, 8
  %v1169 = vpop.permute.xlu0 %1168
  %1170 = vrot.lane.b32.xlu0 %v993, 8
  %v1171 = vpop.permute.xlu0 %1170
  %1172 = vrot.lane.b32.xlu0 %v998, 8
  %v1173 = vpop.permute.xlu0 %1172
  %1174 = vrot.lane.b32.xlu0 %v1001, 8
  %v1175 = vpop.permute.xlu0 %1174
  %1176 = vrot.lane.b32.xlu0 %v1006, 8
  %v1177 = vpop.permute.xlu0 %1176
  %1178 = vrot.lane.b32.xlu0 %v1009, 8
  %v1179 = vpop.permute.xlu0 %1178
  %1192 = vrot.lane.b32.xlu0 %v1065, 16
  %v1193 = vpop.permute.xlu0 %1192
  %1194 = vrot.lane.b32.xlu0 %v1068, 16
  %v1195 = vpop.permute.xlu0 %1194
  %1196 = vrot.lane.b32.xlu0 %v1073, 16
  %v1197 = vpop.permute.xlu0 %1196
  %1198 = vrot.lane.b32.xlu0 %v1076, 16
  %v1199 = vpop.permute.xlu0 %1198
  %1200 = vrot.lane.b32.xlu0 %v1081, 16
  %v1201 = vpop.permute.xlu0 %1200
  %1202 = vrot.lane.b32.xlu0 %v1084, 16
  %v1203 = vpop.permute.xlu0 %1202
  %1216 = vrot.lane.b32.xlu0 %v1140, 24
  %v1217 = vpop.permute.xlu0 %1216
  %1218 = vrot.lane.b32.xlu0 %v1143, 24
  %v1219 = vpop.permute.xlu0 %1218
  %1220 = vrot.lane.b32.xlu0 %v1148, 24
  %v1221 = vpop.permute.xlu0 %1220
  %1222 = vrot.lane.b32.xlu0 %v1151, 24
  %v1223 = vpop.permute.xlu0 %1222
  %1224 = vrot.lane.b32.xlu0 %v1156, 24
  %v1225 = vpop.permute.xlu0 %1224
  %1226 = vrot.lane.b32.xlu0 %v1159, 24
  %v1227 = vpop.permute.xlu0 %1226
  %v1234 = vsel %vm248, %v915, %v1169
  %v1235 = vsel %vm248, %v918, %v1171
  %v1236 = vsel %vm248, %v923, %v1173
  %v1237 = vsel %vm248, %v926, %v1175
  %v1238 = vsel %vm248, %v931, %v1177
  %v1239 = vsel %vm248, %v934, %v1179
  %vm1240 = vcmask 130048
  %v1241 = vsel %vm1240, %v1234, %v1193
  %v1242 = vsel %vm1240, %v1235, %v1195
  %v1243 = vsel %vm1240, %v1236, %v1197
  %v1244 = vsel %vm1240, %v1237, %v1199
  %v1245 = vsel %vm1240, %v1238, %v1201
  %v1246 = vsel %vm1240, %v1239, %v1203
  %vm1247 = vcmask 195584
  %v1248 = vsel %vm1247, %v1241, %v1217
  %v1249 = vsel %vm1247, %v1242, %v1219
  %v1250 = vsel %vm1247, %v1243, %v1221
  %v1251 = vsel %vm1247, %v1244, %v1223
  %v1252 = vsel %vm1247, %v1245, %v1225
  %v1253 = vsel %vm1247, %v1246, %v1227
  %v1254 = vld [vmem:[%s5] sm:$0xf]
  %v1255 = vld [vmem:[%s5 + $0x4] sm:$0xf]
  %v1256 = vld [vmem:[%s5 + $0x8] sm:$0xf]
  %v1257 = vld [vmem:[%s5 + $0xc] sm:$0xf]
  %v1258 = vpack.c.bf16 %v1249, %v1248
  %v1259 = vpack.c.bf16 %v1251, %v1250
  %v1260 = vpack.c.bf16 %v1253, %v1252
  %v1261 = vlaneseq
  %v1262 = vshrl.u32 %v1261, 7
  %v1263 = vsub.s32 1, %v1262
  %v1264 = vrot.slane %v146, %v1263
  %v1269 = vunpack.c.l.b16 %v1254
  %v1270 = vunpack.c.l.b16 %v1255
  %v1271 = vunpack.c.l.b16 %v1256
  %v1272 = vunpack.c.l.b16 %v1257
  %v1273 = vpack.c.b16 %v1270, %v1269
  %v1274 = vpack.c.b16 %v1272, %v1271
  %v1278 = vsel %vm46, %v1258, 0
  %v1281 = vsel %vm46, %v1259, 0
  %v1284 = vsel %vm46, %v1260, 0
  %1286 = vmatprep.subr.bf16.mxu0 0
  %1287 = vmatpush1.bf16.msra.mxu0 %v1273
  %1288 = vmatprep.subr.bf16.mxu0 0
  %1289 = vmatpush1.bf16.msra.mxu0 %v1274
  %1290 = vmatprep.subr.bf16.mxu0 0
  %1291 = vmatpush1.bf16.msra.mxu0 0
  %1292 = vmatprep.subr.bf16.mxu0 0
  %1293 = vmatpush1.bf16.msra.mxu0 0
  %1294 = vmatprep.subr.bf16.mxu0 0
  %1295 = vmatpush1.bf16.msra.mxu0 0
  %1296 = vmatprep.subr.bf16.mxu0 0
  %1297 = vmatpush1.bf16.msra.mxu0 0
  %1298 = vmatprep.subr.bf16.mxu0 0
  %1299 = vmatpush1.bf16.msra.mxu0 0
  %1300 = vmatprep.subr.bf16.mxu0 0
  %1301 = vmatpush1.bf16.msra.mxu0 0
  %1302 = vmatprep.subr.bf16.mxu0 0
  %1303 = vmatpush1.bf16.msra.mxu0 0
  %1304 = vmatprep.subr.bf16.mxu0 0
  %1305 = vmatpush1.bf16.msra.mxu0 0
  %1306 = vmatprep.subr.bf16.mxu0 0
  %1307 = vmatpush1.bf16.msra.mxu0 0
  %1308 = vmatprep.subr.bf16.mxu0 0
  %1309 = vmatpush1.bf16.msra.mxu0 0
  %1310 = vmatprep.subr.bf16.mxu0 0
  %1311 = vmatpush1.bf16.msra.mxu0 0
  %1312 = vmatprep.subr.bf16.mxu0 0
  %1313 = vmatpush1.bf16.msra.mxu0 0
  %1314 = vmatprep.subr.bf16.mxu0 0
  %1315 = vmatpush1.bf16.msra.mxu0 0
  %1316 = vmatprep.subr.bf16.mxu0 0
  %1317 = vmatpush1.bf16.msra.mxu0 0
  %1318 = vmatprep.mubr.bf16.mxu0 0
  %1319 = vmatmul.mubr.bf16.gmra.mrb[0].mxu0 %v1278
  %v1320 = vpop.f32.mrb[0].mxu0
  %v1321 = vadd.f32 %v1264, %v1320
  %v1322 = vpop.f32.mrb[0].mxu0
  %v1323 = vpop.f32.mrb[0].mxu0
  %v1324 = vadd.f32 %v1264, %v1323
  %v1325 = vpop.f32.mrb[0].mxu0
  %1326 = vmatprep.mubr.bf16.mxu0 0
  %1327 = vmatmul.mubr.bf16.gmra.mrb[0].mxu0 %v1281
  %v1328 = vpop.f32.mrb[0].mxu0
  %v1329 = vadd.f32 %v1264, %v1328
  %v1330 = vpop.f32.mrb[0].mxu0
  %v1331 = vpop.f32.mrb[0].mxu0
  %v1332 = vadd.f32 %v1264, %v1331
  %v1333 = vpop.f32.mrb[0].mxu0
  %1334 = vmatprep.mubr.bf16.mxu0 0
  %1335 = vmatmul.mubr.bf16.gmra.mrb[0].mxu0 %v1284
  %v1336 = vpop.f32.mrb[0].mxu0
  %v1337 = vadd.f32 %v1264, %v1336
  %v1338 = vpop.f32.mrb[0].mxu0
  %v1339 = vpop.f32.mrb[0].mxu0
  %v1340 = vadd.f32 %v1264, %v1339
  %v1341 = vpop.f32.mrb[0].mxu0
  %1342 = vdwg.mxu0
  %v1343 = vadd.f32 %v140, %v1321
  %v1344 = vadd.f32 %v141, %v1324
  %v1345 = vadd.f32 %v142, %v1329
  %v1346 = vadd.f32 %v143, %v1332
  %v1347 = vadd.f32 %v144, %v1337
  %v1348 = vadd.f32 %v145, %v1340
  %v1349 = vsel %vm46, %v1343, 0.0
  %1350 = vadd.xlane.f32.xlu0 %v1349
  %v1351 = vpop.xlane.xlu0 %1350
  %v1352 = vsel %vm46, %v1344, 0.0
  %1353 = vadd.xlane.f32.xlu0 %v1352
  %v1354 = vpop.xlane.xlu0 %1353
  %v1355 = vsel %vm46, %v1345, 0.0
  %1356 = vadd.xlane.f32.xlu0 %v1355
  %v1357 = vpop.xlane.xlu0 %1356
  %v1358 = vsel %vm46, %v1346, 0.0
  %1359 = vadd.xlane.f32.xlu0 %v1358
  %v1360 = vpop.xlane.xlu0 %1359
  %v1361 = vsel %vm46, %v1347, 0.0
  %1362 = vadd.xlane.f32.xlu0 %v1361
  %v1363 = vpop.xlane.xlu0 %1362
  %v1364 = vsel %vm46, %v1348, 0.0
  %1365 = vadd.xlane.f32.xlu0 %v1364
  %v1366 = vpop.xlane.xlu0 %1365
  %v1367 = vmul.f32 %v1351, %v65
  %v1368 = vmul.f32 %v1354, %v65
  %v1369 = vmul.f32 %v1357, %v65
  %v1370 = vmul.f32 %v1360, %v65
  %v1371 = vmul.f32 %v1363, %v65
  %v1372 = vmul.f32 %v1366, %v65
  %v1373 = vsub.f32 %v1343, %v1367
  %v1374 = vsub.f32 %v1344, %v1368
  %v1375 = vsub.f32 %v1345, %v1369
  %v1376 = vsub.f32 %v1346, %v1370
  %v1377 = vsub.f32 %v1347, %v1371
  %v1378 = vsub.f32 %v1348, %v1372
  %v1379 = vmul.f32 %v1373, %v1373
  %v1380 = vmul.f32 %v1374, %v1374
  %v1381 = vmul.f32 %v1375, %v1375
  %v1382 = vmul.f32 %v1376, %v1376
  %v1383 = vmul.f32 %v1377, %v1377
  %v1384 = vmul.f32 %v1378, %v1378
  %v1385 = vsel %vm46, %v1379, 0.0
  %1386 = vadd.xlane.f32.xlu0 %v1385
  %v1387 = vpop.xlane.xlu0 %1386
  %v1388 = vsel %vm46, %v1380, 0.0
  %1389 = vadd.xlane.f32.xlu0 %v1388
  %v1390 = vpop.xlane.xlu0 %1389
  %v1391 = vsel %vm46, %v1381, 0.0
  %1392 = vadd.xlane.f32.xlu0 %v1391
  %v1393 = vpop.xlane.xlu0 %1392
  %v1394 = vsel %vm46, %v1382, 0.0
  %1395 = vadd.xlane.f32.xlu0 %v1394
  %v1396 = vpop.xlane.xlu0 %1395
  %v1397 = vsel %vm46, %v1383, 0.0
  %1398 = vadd.xlane.f32.xlu0 %v1397
  %v1399 = vpop.xlane.xlu0 %1398
  %v1400 = vsel %vm46, %v1384, 0.0
  %1401 = vadd.xlane.f32.xlu0 %v1400
  %v1402 = vpop.xlane.xlu0 %1401
  %v1403 = vmul.f32 %v1387, %v65
  %v1404 = vmul.f32 %v1390, %v65
  %v1405 = vmul.f32 %v1393, %v65
  %v1406 = vmul.f32 %v1396, %v65
  %v1407 = vmul.f32 %v1399, %v65
  %v1408 = vmul.f32 %v1402, %v65
  %v1409 = vadd.f32 %v1403, 1e-12
  %v1410 = vadd.f32 %v1404, 1e-12
  %v1411 = vadd.f32 %v1405, 1e-12
  %v1412 = vadd.f32 %v1406, 1e-12
  %v1413 = vadd.f32 %v1407, 1e-12
  %v1414 = vadd.f32 %v1408, 1e-12
  %v1415 = vrsqrt.pop %v1409
  %v1416 = vrsqrt.pop %v1410
  %v1417 = vrsqrt.pop %v1411
  %v1418 = vrsqrt.pop %v1412
  %v1419 = vrsqrt.pop %v1413
  %v1420 = vrsqrt.pop %v1414
  %v1421 = vmul.f32 %v1373, %v1415
  %v1422 = vmul.f32 %v1374, %v1416
  %v1423 = vmul.f32 %v1375, %v1417
  %v1424 = vmul.f32 %v1376, %v1418
  %v1425 = vmul.f32 %v1377, %v1419
  %v1426 = vmul.f32 %v1378, %v1420
  %v1427 = vlaneseq
  %v1428 = vshrl.u32 %v1427, 7
  %v1429 = vsub.s32 2, %v1428
  %v1430 = vrot.slane %v146, %v1429
  %v1431 = vmul.f32 %v1421, %v1430
  %v1432 = vmul.f32 %v1422, %v1430
  %v1433 = vmul.f32 %v1423, %v1430
  %v1434 = vmul.f32 %v1424, %v1430
  %v1435 = vmul.f32 %v1425, %v1430
  %v1436 = vmul.f32 %v1426, %v1430
  %v1437 = vlaneseq
  %v1438 = vshrl.u32 %v1437, 7
  %v1439 = vsub.s32 3, %v1438
  %v1440 = vrot.slane %v146, %v1439
  %v1441 = vadd.f32 %v1431, %v1440
  %v1442 = vadd.f32 %v1432, %v1440
  %v1443 = vadd.f32 %v1433, %v1440
  %v1444 = vadd.f32 %v1434, %v1440
  %v1445 = vadd.f32 %v1435, %v1440
  %v1446 = vadd.f32 %v1436, %v1440
  %v1447 = vld [vmem:[%s6] sm:$0xf]
  %v1448 = vld [vmem:[%s6 + $0x4] sm:$0xf]
  %v1449 = vld [vmem:[%s6 + $0x8] sm:$0xf]
  %v1450 = vld [vmem:[%s6 + $0xc] sm:$0xf]
  %v1451 = vpack.c.bf16 %v1442, %v1441
  %v1452 = vpack.c.bf16 %v1444, %v1443
  %v1453 = vpack.c.bf16 %v1446, %v1445
  %v1454 = vlaneseq
  %v1455 = vshrl.u32 %v1454, 7
  %v1456 = vsub.s32 4, %v1455
  %v1457 = vrot.slane %v146, %v1456
  %v1462 = vunpack.c.l.b16 %v1447
  %v1463 = vunpack.c.l.b16 %v1448
  %v1464 = vunpack.c.l.b16 %v1449
  %v1465 = vunpack.c.l.b16 %v1450
  %v1466 = vpack.c.b16 %v1463, %v1462
  %v1467 = vpack.c.b16 %v1465, %v1464
  %v1471 = vsel %vm46, %v1451, 0
  %v1474 = vsel %vm46, %v1452, 0
  %v1477 = vsel %vm46, %v1453, 0
  %1479 = vmatprep.subr.bf16.mxu0 0
  %1480 = vmatpush1.bf16.msra.mxu0 %v1466
  %1481 = vmatprep.subr.bf16.mxu0 0
  %1482 = vmatpush1.bf16.msra.mxu0 %v1467
  %1483 = vmatprep.subr.bf16.mxu0 0
  %1484 = vmatpush1.bf16.msra.mxu0 0
  %1485 = vmatprep.subr.bf16.mxu0 0
  %1486 = vmatpush1.bf16.msra.mxu0 0
  %1487 = vmatprep.subr.bf16.mxu0 0
  %1488 = vmatpush1.bf16.msra.mxu0 0
  %1489 = vmatprep.subr.bf16.mxu0 0
  %1490 = vmatpush1.bf16.msra.mxu0 0
  %1491 = vmatprep.subr.bf16.mxu0 0
  %1492 = vmatpush1.bf16.msra.mxu0 0
  %1493 = vmatprep.subr.bf16.mxu0 0
  %1494 = vmatpush1.bf16.msra.mxu0 0
  %1495 = vmatprep.subr.bf16.mxu0 0
  %1496 = vmatpush1.bf16.msra.mxu0 0
  %1497 = vmatprep.subr.bf16.mxu0 0
  %1498 = vmatpush1.bf16.msra.mxu0 0
  %1499 = vmatprep.subr.bf16.mxu0 0
  %1500 = vmatpush1.bf16.msra.mxu0 0
  %1501 = vmatprep.subr.bf16.mxu0 0
  %1502 = vmatpush1.bf16.msra.mxu0 0
  %1503 = vmatprep.subr.bf16.mxu0 0
  %1504 = vmatpush1.bf16.msra.mxu0 0
  %1505 = vmatprep.subr.bf16.mxu0 0
  %1506 = vmatpush1.bf16.msra.mxu0 0
  %1507 = vmatprep.subr.bf16.mxu0 0
  %1508 = vmatpush1.bf16.msra.mxu0 0
  %1509 = vmatprep.subr.bf16.mxu0 0
  %1510 = vmatpush1.bf16.msra.mxu0 0
  %1511 = vmatprep.mubr.bf16.mxu0 0
  %1512 = vmatmul.mubr.bf16.gmra.mrb[0].mxu0 %v1471
  %v1513 = vpop.f32.mrb[0].mxu0
  %v1514 = vadd.f32 %v1457, %v1513
  %v1515 = vpop.f32.mrb[0].mxu0
  %v1516 = vpop.f32.mrb[0].mxu0
  %v1517 = vadd.f32 %v1457, %v1516
  %v1518 = vpop.f32.mrb[0].mxu0
  %1519 = vmatprep.mubr.bf16.mxu0 0
  %1520 = vmatmul.mubr.bf16.gmra.mrb[0].mxu0 %v1474
  %v1521 = vpop.f32.mrb[0].mxu0
  %v1522 = vadd.f32 %v1457, %v1521
  %v1523 = vpop.f32.mrb[0].mxu0
  %v1524 = vpop.f32.mrb[0].mxu0
  %v1525 = vadd.f32 %v1457, %v1524
  %v1526 = vpop.f32.mrb[0].mxu0
  %1527 = vmatprep.mubr.bf16.mxu0 0
  %1528 = vmatmul.mubr.bf16.gmra.mrb[0].mxu0 %v1477
  %v1529 = vpop.f32.mrb[0].mxu0
  %v1530 = vadd.f32 %v1457, %v1529
  %v1531 = vpop.f32.mrb[0].mxu0
  %v1532 = vpop.f32.mrb[0].mxu0
  %v1533 = vadd.f32 %v1457, %v1532
  %v1534 = vpop.f32.mrb[0].mxu0
  %1535 = vdwg.mxu0
  %v1536 = vmul.f32 %v1514, 0.5
  %v1537 = vmul.f32 %v1517, 0.5
  %v1538 = vmul.f32 %v1522, 0.5
  %v1539 = vmul.f32 %v1525, 0.5
  %v1540 = vmul.f32 %v1530, 0.5
  %v1541 = vmul.f32 %v1533, 0.5
  %v1542 = vmul.f32 %v1514, 0.044715
  %v1543 = vmul.f32 %v1517, 0.044715
  %v1544 = vmul.f32 %v1522, 0.044715
  %v1545 = vmul.f32 %v1525, 0.044715
  %v1546 = vmul.f32 %v1530, 0.044715
  %v1547 = vmul.f32 %v1533, 0.044715
  %v1548 = vmul.f32 %v1542, %v1514
  %v1549 = vmul.f32 %v1543, %v1517
  %v1550 = vmul.f32 %v1544, %v1522
  %v1551 = vmul.f32 %v1545, %v1525
  %v1552 = vmul.f32 %v1546, %v1530
  %v1553 = vmul.f32 %v1547, %v1533
  %v1554 = vmul.f32 %v1548, %v1514
  %v1555 = vmul.f32 %v1549, %v1517
  %v1556 = vmul.f32 %v1550, %v1522
  %v1557 = vmul.f32 %v1551, %v1525
  %v1558 = vmul.f32 %v1552, %v1530
  %v1559 = vmul.f32 %v1553, %v1533
  %v1560 = vadd.f32 %v1514, %v1554
  %v1561 = vadd.f32 %v1517, %v1555
  %v1562 = vadd.f32 %v1522, %v1556
  %v1563 = vadd.f32 %v1525, %v1557
  %v1564 = vadd.f32 %v1530, %v1558
  %v1565 = vadd.f32 %v1533, %v1559
  %v1566 = vmul.f32 %v1560, 0.7978846
  %v1567 = vmul.f32 %v1561, 0.7978846
  %v1568 = vmul.f32 %v1562, 0.7978846
  %v1569 = vmul.f32 %v1563, 0.7978846
  %v1570 = vmul.f32 %v1564, 0.7978846
  %v1571 = vmul.f32 %v1565, 0.7978846
  %v1572 = vtanh.pop %v1566
  %v1573 = vtanh.pop %v1567
  %v1574 = vtanh.pop %v1568
  %v1575 = vtanh.pop %v1569
  %v1576 = vtanh.pop %v1570
  %v1577 = vtanh.pop %v1571
  %v1578 = vadd.f32 %v1572, 1.0
  %v1579 = vadd.f32 %v1573, 1.0
  %v1580 = vadd.f32 %v1574, 1.0
  %v1581 = vadd.f32 %v1575, 1.0
  %v1582 = vadd.f32 %v1576, 1.0
  %v1583 = vadd.f32 %v1577, 1.0
  %v1584 = vmul.f32 %v1536, %v1578
  %v1585 = vmul.f32 %v1537, %v1579
  %v1586 = vmul.f32 %v1538, %v1580
  %v1587 = vmul.f32 %v1539, %v1581
  %v1588 = vmul.f32 %v1540, %v1582
  %v1589 = vmul.f32 %v1541, %v1583
  %v1590 = vld [vmem:[%s7] sm:$0xf]
  %v1591 = vld [vmem:[%s7 + $0x4] sm:$0xf]
  %v1592 = vld [vmem:[%s7 + $0x8] sm:$0xf]
  %v1593 = vld [vmem:[%s7 + $0xc] sm:$0xf]
  %v1594 = vld [vmem:[%s7 + $0x10] sm:$0xf]
  %v1595 = vld [vmem:[%s7 + $0x14] sm:$0xf]
  %v1596 = vld [vmem:[%s7 + $0x18] sm:$0xf]
  %v1597 = vld [vmem:[%s7 + $0x1c] sm:$0xf]
  %v1598 = vpack.c.bf16 %v1585, %v1584
  %v1599 = vpack.c.bf16 %v1587, %v1586
  %v1600 = vpack.c.bf16 %v1589, %v1588
  %v1601 = vlaneseq
  %v1602 = vshrl.u32 %v1601, 7
  %v1603 = vsub.s32 5, %v1602
  %v1604 = vrot.slane %v146, %v1603
  %v1613 = vunpack.c.l.b16 %v1590
  %v1614 = vunpack.c.l.b16 %v1591
  %v1615 = vunpack.c.l.b16 %v1592
  %v1616 = vunpack.c.l.b16 %v1593
  %v1617 = vunpack.c.l.b16 %v1594
  %v1618 = vunpack.c.l.b16 %v1595
  %v1619 = vunpack.c.l.b16 %v1596
  %v1620 = vunpack.c.l.b16 %v1597
  %v1621 = vpack.c.b16 %v1614, %v1613
  %v1622 = vpack.c.b16 %v1616, %v1615
  %v1623 = vpack.c.b16 %v1618, %v1617
  %v1624 = vpack.c.b16 %v1620, %v1619
  %vm1629 = vcmask 523264
  %v1631 = vsel %vm1629, %v1598, 0
  %v1634 = vsel %vm1629, %v1599, 0
  %v1637 = vsel %vm1629, %v1600, 0
  %1639 = vmatprep.subr.bf16.mxu0 0
  %1640 = vmatpush1.bf16.msra.mxu0 %v1621
  %1641 = vmatprep.subr.bf16.mxu0 0
  %1642 = vmatpush1.bf16.msra.mxu0 %v1622
  %1643 = vmatprep.subr.bf16.mxu0 0
  %1644 = vmatpush1.bf16.msra.mxu0 %v1623
  %1645 = vmatprep.subr.bf16.mxu0 0
  %1646 = vmatpush1.bf16.msra.mxu0 %v1624
  %1647 = vmatprep.subr.bf16.mxu0 0
  %1648 = vmatpush1.bf16.msra.mxu0 0
  %1649 = vmatprep.subr.bf16.mxu0 0
  %1650 = vmatpush1.bf16.msra.mxu0 0
  %1651 = vmatprep.subr.bf16.mxu0 0
  %1652 = vmatpush1.bf16.msra.mxu0 0
  %1653 = vmatprep.subr.bf16.mxu0 0
  %1654 = vmatpush1.bf16.msra.mxu0 0
  %1655 = vmatprep.subr.bf16.mxu0 0
  %1656 = vmatpush1.bf16.msra.mxu0 0
  %1657 = vmatprep.subr.bf16.mxu0 0
  %1658 = vmatpush1.bf16.msra.mxu0 0
  %1659 = vmatprep.subr.bf16.mxu0 0
  %1660 = vmatpush1.bf16.msra.mxu0 0
  %1661 = vmatprep.subr.bf16.mxu0 0
  %1662 = vmatpush1.bf16.msra.mxu0 0
  %1663 = vmatprep.subr.bf16.mxu0 0
  %1664 = vmatpush1.bf16.msra.mxu0 0
  %1665 = vmatprep.subr.bf16.mxu0 0
  %1666 = vmatpush1.bf16.msra.mxu0 0
  %1667 = vmatprep.subr.bf16.mxu0 0
  %1668 = vmatpush1.bf16.msra.mxu0 0
  %1669 = vmatprep.subr.bf16.mxu0 0
  %1670 = vmatpush1.bf16.msra.mxu0 0
  %1671 = vmatprep.mubr.bf16.mxu0 0
  %1672 = vmatmul.mubr.bf16.gmra.mrb[0].mxu0 %v1631
  %v1673 = vpop.f32.mrb[0].mxu0
  %v1674 = vadd.f32 %v1604, %v1673
  %v1675 = vpop.f32.mrb[0].mxu0
  %v1676 = vpop.f32.mrb[0].mxu0
  %v1677 = vadd.f32 %v1604, %v1676
  %v1678 = vpop.f32.mrb[0].mxu0
  %1679 = vmatprep.mubr.bf16.mxu0 0
  %1680 = vmatmul.mubr.bf16.gmra.mrb[0].mxu0 %v1634
  %v1681 = vpop.f32.mrb[0].mxu0
  %v1682 = vadd.f32 %v1604, %v1681
  %v1683 = vpop.f32.mrb[0].mxu0
  %v1684 = vpop.f32.mrb[0].mxu0
  %v1685 = vadd.f32 %v1604, %v1684
  %v1686 = vpop.f32.mrb[0].mxu0
  %1687 = vmatprep.mubr.bf16.mxu0 0
  %1688 = vmatmul.mubr.bf16.gmra.mrb[0].mxu0 %v1637
  %v1689 = vpop.f32.mrb[0].mxu0
  %v1690 = vadd.f32 %v1604, %v1689
  %v1691 = vpop.f32.mrb[0].mxu0
  %v1692 = vpop.f32.mrb[0].mxu0
  %v1693 = vadd.f32 %v1604, %v1692
  %v1694 = vpop.f32.mrb[0].mxu0
  %1695 = vdwg.mxu0
  %v1696 = vadd.f32 %v1441, %v1674
  %v1697 = vadd.f32 %v1442, %v1677
  %v1698 = vadd.f32 %v1443, %v1682
  %v1699 = vadd.f32 %v1444, %v1685
  %v1700 = vadd.f32 %v1445, %v1690
  %v1701 = vadd.f32 %v1446, %v1693
  %v1702 = vsel %vm46, %v1696, 0.0
  %1703 = vadd.xlane.f32.xlu0 %v1702
  %v1704 = vpop.xlane.xlu0 %1703
  %v1705 = vsel %vm46, %v1697, 0.0
  %1706 = vadd.xlane.f32.xlu0 %v1705
  %v1707 = vpop.xlane.xlu0 %1706
  %v1708 = vsel %vm46, %v1698, 0.0
  %1709 = vadd.xlane.f32.xlu0 %v1708
  %v1710 = vpop.xlane.xlu0 %1709
  %v1711 = vsel %vm46, %v1699, 0.0
  %1712 = vadd.xlane.f32.xlu0 %v1711
  %v1713 = vpop.xlane.xlu0 %1712
  %v1714 = vsel %vm46, %v1700, 0.0
  %1715 = vadd.xlane.f32.xlu0 %v1714
  %v1716 = vpop.xlane.xlu0 %1715
  %v1717 = vsel %vm46, %v1701, 0.0
  %1718 = vadd.xlane.f32.xlu0 %v1717
  %v1719 = vpop.xlane.xlu0 %1718
  %v1720 = vmul.f32 %v1704, %v65
  %v1721 = vmul.f32 %v1707, %v65
  %v1722 = vmul.f32 %v1710, %v65
  %v1723 = vmul.f32 %v1713, %v65
  %v1724 = vmul.f32 %v1716, %v65
  %v1725 = vmul.f32 %v1719, %v65
  %v1726 = vsub.f32 %v1696, %v1720
  %v1727 = vsub.f32 %v1697, %v1721
  %v1728 = vsub.f32 %v1698, %v1722
  %v1729 = vsub.f32 %v1699, %v1723
  %v1730 = vsub.f32 %v1700, %v1724
  %v1731 = vsub.f32 %v1701, %v1725
  %v1732 = vmul.f32 %v1726, %v1726
  %v1733 = vmul.f32 %v1727, %v1727
  %v1734 = vmul.f32 %v1728, %v1728
  %v1735 = vmul.f32 %v1729, %v1729
  %v1736 = vmul.f32 %v1730, %v1730
  %v1737 = vmul.f32 %v1731, %v1731
  %v1738 = vsel %vm46, %v1732, 0.0
  %1739 = vadd.xlane.f32.xlu0 %v1738
  %v1740 = vpop.xlane.xlu0 %1739
  %v1741 = vsel %vm46, %v1733, 0.0
  %1742 = vadd.xlane.f32.xlu0 %v1741
  %v1743 = vpop.xlane.xlu0 %1742
  %v1744 = vsel %vm46, %v1734, 0.0
  %1745 = vadd.xlane.f32.xlu0 %v1744
  %v1746 = vpop.xlane.xlu0 %1745
  %v1747 = vsel %vm46, %v1735, 0.0
  %1748 = vadd.xlane.f32.xlu0 %v1747
  %v1749 = vpop.xlane.xlu0 %1748
  %v1750 = vsel %vm46, %v1736, 0.0
  %1751 = vadd.xlane.f32.xlu0 %v1750
  %v1752 = vpop.xlane.xlu0 %1751
  %v1753 = vsel %vm46, %v1737, 0.0
  %1754 = vadd.xlane.f32.xlu0 %v1753
  %v1755 = vpop.xlane.xlu0 %1754
  %v1756 = vmul.f32 %v1740, %v65
  %v1757 = vmul.f32 %v1743, %v65
  %v1758 = vmul.f32 %v1746, %v65
  %v1759 = vmul.f32 %v1749, %v65
  %v1760 = vmul.f32 %v1752, %v65
  %v1761 = vmul.f32 %v1755, %v65
  %v1762 = vadd.f32 %v1756, 1e-12
  %v1763 = vadd.f32 %v1757, 1e-12
  %v1764 = vadd.f32 %v1758, 1e-12
  %v1765 = vadd.f32 %v1759, 1e-12
  %v1766 = vadd.f32 %v1760, 1e-12
  %v1767 = vadd.f32 %v1761, 1e-12
  %v1768 = vrsqrt.pop %v1762
  %v1769 = vrsqrt.pop %v1763
  %v1770 = vrsqrt.pop %v1764
  %v1771 = vrsqrt.pop %v1765
  %v1772 = vrsqrt.pop %v1766
  %v1773 = vrsqrt.pop %v1767
  %v1774 = vmul.f32 %v1726, %v1768
  %v1775 = vmul.f32 %v1727, %v1769
  %v1776 = vmul.f32 %v1728, %v1770
  %v1777 = vmul.f32 %v1729, %v1771
  %v1778 = vmul.f32 %v1730, %v1772
  %v1779 = vmul.f32 %v1731, %v1773
  %v1780 = vlaneseq
  %v1781 = vshrl.u32 %v1780, 7
  %v1782 = vsub.s32 6, %v1781
  %v1783 = vrot.slane %v146, %v1782
  %v1784 = vmul.f32 %v1774, %v1783
  %v1785 = vmul.f32 %v1775, %v1783
  %v1786 = vmul.f32 %v1776, %v1783
  %v1787 = vmul.f32 %v1777, %v1783
  %v1788 = vmul.f32 %v1778, %v1783
  %v1789 = vmul.f32 %v1779, %v1783
  %v1790 = vlaneseq
  %v1791 = vshrl.u32 %v1790, 7
  %v1792 = vsub.s32 7, %v1791
  %v1793 = vrot.slane %v146, %v1792
  %v1794 = vadd.f32 %v1784, %v1793
  %v1795 = vadd.f32 %v1785, %v1793
  %v1796 = vadd.f32 %v1786, %v1793
  %v1797 = vadd.f32 %v1787, %v1793
  %v1798 = vadd.f32 %v1788, %v1793
  %v1799 = vadd.f32 %v1789, %v1793
  %s1800 = scalar_lea.vmem %s3, 8
  %v1801 = vld [vmem:[%s1800] sm:$0xff]
  %s1802 = scalar_lea.vmem %s4, 16
  %v1803 = vld [vmem:[%s1802] sm:$0xf]
  %v1804 = vld [vmem:[%s1802 + $0x4] sm:$0xf]
  %v1805 = vld [vmem:[%s1802 + $0x8] sm:$0xf]
  %v1806 = vld [vmem:[%s1802 + $0xc] sm:$0xf]
  %v1807 = vpack.c.bf16 %v1795, %v1794
  %v1808 = vpack.c.bf16 %v1797, %v1796
  %v1809 = vpack.c.bf16 %v1799, %v1798
  %v1810 = vlaneseq
  %v1811 = vshrl.u32 %v1810, 7
  %v1812 = vsub.s32 0, %v1811
  %v1813 = vrot.slane %v1801, %v1812
  %v1818 = vunpack.c.l.b16 %v1803
  %v1819 = vunpack.c.l.b16 %v1804
  %v1820 = vunpack.c.l.b16 %v1805
  %v1821 = vunpack.c.l.b16 %v1806
  %v1822 = vpack.c.b16 %v1819, %v1818
  %v1823 = vpack.c.b16 %v1821, %v1820
  %v1827 = vsel %vm46, %v1807, 0
  %v1830 = vsel %vm46, %v1808, 0
  %v1833 = vsel %vm46, %v1809, 0
  %1835 = vmatprep.subr.bf16.mxu0 0
  %1836 = vmatpush1.bf16.msra.mxu0 %v1822
  %1837 = vmatprep.subr.bf16.mxu0 0
  %1838 = vmatpush1.bf16.msra.mxu0 %v1823
  %1839 = vmatprep.subr.bf16.mxu0 0
  %1840 = vmatpush1.bf16.msra.mxu0 0
  %1841 = vmatprep.subr.bf16.mxu0 0
  %1842 = vmatpush1.bf16.msra.mxu0 0
  %1843 = vmatprep.subr.bf16.mxu0 0
  %1844 = vmatpush1.bf16.msra.mxu0 0
  %1845 = vmatprep.subr.bf16.mxu0 0
  %1846 = vmatpush1.bf16.msra.mxu0 0
  %1847 = vmatprep.subr.bf16.mxu0 0
  %1848 = vmatpush1.bf16.msra.mxu0 0
  %1849 = vmatprep.subr.bf16.mxu0 0
  %1850 = vmatpush1.bf16.msra.mxu0 0
  %1851 = vmatprep.subr.bf16.mxu0 0
  %1852 = vmatpush1.bf16.msra.mxu0 0
  %1853 = vmatprep.subr.bf16.mxu0 0
  %1854 = vmatpush1.bf16.msra.mxu0 0
  %1855 = vmatprep.subr.bf16.mxu0 0
  %1856 = vmatpush1.bf16.msra.mxu0 0
  %1857 = vmatprep.subr.bf16.mxu0 0
  %1858 = vmatpush1.bf16.msra.mxu0 0
  %1859 = vmatprep.subr.bf16.mxu0 0
  %1860 = vmatpush1.bf16.msra.mxu0 0
  %1861 = vmatprep.subr.bf16.mxu0 0
  %1862 = vmatpush1.bf16.msra.mxu0 0
  %1863 = vmatprep.subr.bf16.mxu0 0
  %1864 = vmatpush1.bf16.msra.mxu0 0
  %1865 = vmatprep.subr.bf16.mxu0 0
  %1866 = vmatpush1.bf16.msra.mxu0 0
  %1867 = vmatprep.mubr.bf16.mxu0 0
  %1868 = vmatmul.mubr.bf16.gmra.mrb[0].mxu0 %v1827
  %v1869 = vpop.f32.mrb[0].mxu0
  %v1870 = vadd.f32 %v1813, %v1869
  %v1871 = vpop.f32.mrb[0].mxu0
  %v1872 = vpop.f32.mrb[0].mxu0
  %v1873 = vadd.f32 %v1813, %v1872
  %v1874 = vpop.f32.mrb[0].mxu0
  %1875 = vmatprep.mubr.bf16.mxu0 0
  %1876 = vmatmul.mubr.bf16.gmra.mrb[0].mxu0 %v1830
  %v1877 = vpop.f32.mrb[0].mxu0
  %v1878 = vadd.f32 %v1813, %v1877
  %v1879 = vpop.f32.mrb[0].mxu0
  %v1880 = vpop.f32.mrb[0].mxu0
  %v1881 = vadd.f32 %v1813, %v1880
  %v1882 = vpop.f32.mrb[0].mxu0
  %1883 = vmatprep.mubr.bf16.mxu0 0
  %1884 = vmatmul.mubr.bf16.gmra.mrb[0].mxu0 %v1833
  %v1885 = vpop.f32.mrb[0].mxu0
  %v1886 = vadd.f32 %v1813, %v1885
  %v1887 = vpop.f32.mrb[0].mxu0
  %v1888 = vpop.f32.mrb[0].mxu0
  %v1889 = vadd.f32 %v1813, %v1888
  %v1890 = vpop.f32.mrb[0].mxu0
  %1891 = vdwg.mxu0
  %v1892 = vpack.c.bf16 %v1873, %v1870
  %v1893 = vpack.c.bf16 %v1881, %v1878
  %v1894 = vpack.c.bf16 %v1889, %v1886
  %1898 = vrot.lane.b32.xlu0 %v1892, 96
  %v1899 = vpop.permute.xlu0 %1898
  %1900 = vrot.lane.b32.xlu0 %v1893, 96
  %v1901 = vpop.permute.xlu0 %1900
  %1902 = vrot.lane.b32.xlu0 %v1894, 96
  %v1903 = vpop.permute.xlu0 %1902
  %v1905 = vsel %vm248, %v1892, 0
  %v1908 = vsel %vm248, %v1893, 0
  %v1911 = vsel %vm248, %v1894, 0
  %v1914 = vsel %vm248, %v1899, 0
  %v1917 = vsel %vm248, %v1901, 0
  %v1920 = vsel %vm248, %v1903, 0
  %1922 = vmatprep.subr.bf16.mxu0 0
  %1923 = vmatpush1.bf16.xpose.msra.mxu0 %v1914
  %1924 = vmatprep.subr.bf16.mxu0 0
  %1925 = vmatpush1.bf16.xpose.msra.mxu0 %v1917
  %1926 = vmatprep.subr.bf16.mxu0 0
  %1927 = vmatpush1.bf16.xpose.msra.mxu0 %v1920
  %1928 = vmatprep.subr.bf16.mxu0 0
  %1929 = vmatpush1.bf16.xpose.msra.mxu0 0
  %1930 = vmatprep.subr.bf16.mxu0 0
  %1931 = vmatpush1.bf16.xpose.msra.mxu0 0
  %1932 = vmatprep.subr.bf16.mxu0 0
  %1933 = vmatpush1.bf16.xpose.msra.mxu0 0
  %1934 = vmatprep.subr.bf16.mxu0 0
  %1935 = vmatpush1.bf16.xpose.msra.mxu0 0
  %1936 = vmatprep.subr.bf16.mxu0 0
  %1937 = vmatpush1.bf16.xpose.msra.mxu0 0
  %1938 = vmatprep.subr.bf16.mxu0 0
  %1939 = vmatpush1.bf16.xpose.msra.mxu0 0
  %1940 = vmatprep.subr.bf16.mxu0 0
  %1941 = vmatpush1.bf16.xpose.msra.mxu0 0
  %1942 = vmatprep.subr.bf16.mxu0 0
  %1943 = vmatpush1.bf16.xpose.msra.mxu0 0
  %1944 = vmatprep.subr.bf16.mxu0 0
  %1945 = vmatpush1.bf16.xpose.msra.mxu0 0
  %1946 = vmatprep.subr.bf16.mxu0 0
  %1947 = vmatpush1.bf16.xpose.msra.mxu0 0
  %1948 = vmatprep.subr.bf16.mxu0 0
  %1949 = vmatpush1.bf16.xpose.msra.mxu0 0
  %1950 = vmatprep.subr.bf16.mxu0 0
  %1951 = vmatpush1.bf16.xpose.msra.mxu0 0
  %1952 = vmatprep.subr.bf16.mxu0 0
  %1953 = vmatpush1.bf16.xpose.msra.mxu0 0
  %1954 = vmatprep.mubr.bf16.mxu0 0
  %1955 = vmatmul.mubr.bf16.gmra.mrb[0].mxu0 %v1905
  %v1956 = vpop.f32.mrb[0].mxu0
  %v1957 = vadd.f32 %v33, %v1956
  %v1958 = vpop.f32.mrb[0].mxu0
  %v1959 = vpop.f32.mrb[0].mxu0
  %v1960 = vadd.f32 %v34, %v1959
  %v1961 = vpop.f32.mrb[0].mxu0
  %1962 = vmatprep.mubr.bf16.mxu0 0
  %1963 = vmatmul.mubr.bf16.gmra.mrb[0].mxu0 %v1908
  %v1964 = vpop.f32.mrb[0].mxu0
  %v1965 = vadd.f32 %v35, %v1964
  %v1966 = vpop.f32.mrb[0].mxu0
  %v1967 = vpop.f32.mrb[0].mxu0
  %v1968 = vadd.f32 %v36, %v1967
  %v1969 = vpop.f32.mrb[0].mxu0
  %1970 = vmatprep.mubr.bf16.mxu0 0
  %1971 = vmatmul.mubr.bf16.gmra.mrb[0].mxu0 %v1911
  %v1972 = vpop.f32.mrb[0].mxu0
  %v1973 = vadd.f32 %v37, %v1972
  %v1974 = vpop.f32.mrb[0].mxu0
  %v1975 = vpop.f32.mrb[0].mxu0
  %v1976 = vadd.f32 %v38, %v1975
  %v1977 = vpop.f32.mrb[0].mxu0
  %1978 = vdwg.mxu0
  %1979 = vrot.lane.b32.xlu0 %v1892, 120
  %v1980 = vpop.permute.xlu0 %1979
  %1981 = vrot.lane.b32.xlu0 %v1893, 120
  %v1982 = vpop.permute.xlu0 %1981
  %1983 = vrot.lane.b32.xlu0 %v1894, 120
  %v1984 = vpop.permute.xlu0 %1983
  %1985 = vrot.lane.b32.xlu0 %v1892, 88
  %v1986 = vpop.permute.xlu0 %1985
  %1987 = vrot.lane.b32.xlu0 %v1893, 88
  %v1988 = vpop.permute.xlu0 %1987
  %1989 = vrot.lane.b32.xlu0 %v1894, 88
  %v1990 = vpop.permute.xlu0 %1989
  %v1992 = vsel %vm248, %v1980, 0
  %v1995 = vsel %vm248, %v1982, 0
  %v1998 = vsel %vm248, %v1984, 0
  %v2001 = vsel %vm248, %v1986, 0
  %v2004 = vsel %vm248, %v1988, 0
  %v2007 = vsel %vm248, %v1990, 0
  %2009 = vmatprep.subr.bf16.mxu0 0
  %2010 = vmatpush1.bf16.xpose.msra.mxu0 %v2001
  %2011 = vmatprep.subr.bf16.mxu0 0
  %2012 = vmatpush1.bf16.xpose.msra.mxu0 %v2004
  %2013 = vmatprep.subr.bf16.mxu0 0
  %2014 = vmatpush1.bf16.xpose.msra.mxu0 %v2007
  %2015 = vmatprep.subr.bf16.mxu0 0
  %2016 = vmatpush1.bf16.xpose.msra.mxu0 0
  %2017 = vmatprep.subr.bf16.mxu0 0
  %2018 = vmatpush1.bf16.xpose.msra.mxu0 0
  %2019 = vmatprep.subr.bf16.mxu0 0
  %2020 = vmatpush1.bf16.xpose.msra.mxu0 0
  %2021 = vmatprep.subr.bf16.mxu0 0
  %2022 = vmatpush1.bf16.xpose.msra.mxu0 0
  %2023 = vmatprep.subr.bf16.mxu0 0
  %2024 = vmatpush1.bf16.xpose.msra.mxu0 0
  %2025 = vmatprep.subr.bf16.mxu0 0
  %2026 = vmatpush1.bf16.xpose.msra.mxu0 0
  %2027 = vmatprep.subr.bf16.mxu0 0
  %2028 = vmatpush1.bf16.xpose.msra.mxu0 0
  %2029 = vmatprep.subr.bf16.mxu0 0
  %2030 = vmatpush1.bf16.xpose.msra.mxu0 0
  %2031 = vmatprep.subr.bf16.mxu0 0
  %2032 = vmatpush1.bf16.xpose.msra.mxu0 0
  %2033 = vmatprep.subr.bf16.mxu0 0
  %2034 = vmatpush1.bf16.xpose.msra.mxu0 0
  %2035 = vmatprep.subr.bf16.mxu0 0
  %2036 = vmatpush1.bf16.xpose.msra.mxu0 0
  %2037 = vmatprep.subr.bf16.mxu0 0
  %2038 = vmatpush1.bf16.xpose.msra.mxu0 0
  %2039 = vmatprep.subr.bf16.mxu0 0
  %2040 = vmatpush1.bf16.xpose.msra.mxu0 0
  %2041 = vmatprep.mubr.bf16.mxu0 0
  %2042 = vmatmul.mubr.bf16.gmra.mrb[0].mxu0 %v1992
  %v2043 = vpop.f32.mrb[0].mxu0
  %v2044 = vadd.f32 %v33, %v2043
  %v2045 = vpop.f32.mrb[0].mxu0
  %v2046 = vpop.f32.mrb[0].mxu0
  %v2047 = vadd.f32 %v34, %v2046
  %v2048 = vpop.f32.mrb[0].mxu0
  %2049 = vmatprep.mubr.bf16.mxu0 0
  %2050 = vmatmul.mubr.bf16.gmra.mrb[0].mxu0 %v1995
  %v2051 = vpop.f32.mrb[0].mxu0
  %v2052 = vadd.f32 %v35, %v2051
  %v2053 = vpop.f32.mrb[0].mxu0
  %v2054 = vpop.f32.mrb[0].mxu0
  %v2055 = vadd.f32 %v36, %v2054
  %v2056 = vpop.f32.mrb[0].mxu0
  %2057 = vmatprep.mubr.bf16.mxu0 0
  %2058 = vmatmul.mubr.bf16.gmra.mrb[0].mxu0 %v1998
  %v2059 = vpop.f32.mrb[0].mxu0
  %v2060 = vadd.f32 %v37, %v2059
  %v2061 = vpop.f32.mrb[0].mxu0
  %v2062 = vpop.f32.mrb[0].mxu0
  %v2063 = vadd.f32 %v38, %v2062
  %v2064 = vpop.f32.mrb[0].mxu0
  %2065 = vdwg.mxu0
  %2066 = vrot.lane.b32.xlu0 %v1892, 112
  %v2067 = vpop.permute.xlu0 %2066
  %2068 = vrot.lane.b32.xlu0 %v1893, 112
  %v2069 = vpop.permute.xlu0 %2068
  %2070 = vrot.lane.b32.xlu0 %v1894, 112
  %v2071 = vpop.permute.xlu0 %2070
  %2072 = vrot.lane.b32.xlu0 %v1892, 80
  %v2073 = vpop.permute.xlu0 %2072
  %2074 = vrot.lane.b32.xlu0 %v1893, 80
  %v2075 = vpop.permute.xlu0 %2074
  %2076 = vrot.lane.b32.xlu0 %v1894, 80
  %v2077 = vpop.permute.xlu0 %2076
  %v2079 = vsel %vm248, %v2067, 0
  %v2082 = vsel %vm248, %v2069, 0
  %v2085 = vsel %vm248, %v2071, 0
  %v2088 = vsel %vm248, %v2073, 0
  %v2091 = vsel %vm248, %v2075, 0
  %v2094 = vsel %vm248, %v2077, 0
  %2096 = vmatprep.subr.bf16.mxu0 0
  %2097 = vmatpush1.bf16.xpose.msra.mxu0 %v2088
  %2098 = vmatprep.subr.bf16.mxu0 0
  %2099 = vmatpush1.bf16.xpose.msra.mxu0 %v2091
  %2100 = vmatprep.subr.bf16.mxu0 0
  %2101 = vmatpush1.bf16.xpose.msra.mxu0 %v2094
  %2102 = vmatprep.subr.bf16.mxu0 0
  %2103 = vmatpush1.bf16.xpose.msra.mxu0 0
  %2104 = vmatprep.subr.bf16.mxu0 0
  %2105 = vmatpush1.bf16.xpose.msra.mxu0 0
  %2106 = vmatprep.subr.bf16.mxu0 0
  %2107 = vmatpush1.bf16.xpose.msra.mxu0 0
  %2108 = vmatprep.subr.bf16.mxu0 0
  %2109 = vmatpush1.bf16.xpose.msra.mxu0 0
  %2110 = vmatprep.subr.bf16.mxu0 0
  %2111 = vmatpush1.bf16.xpose.msra.mxu0 0
  %2112 = vmatprep.subr.bf16.mxu0 0
  %2113 = vmatpush1.bf16.xpose.msra.mxu0 0
  %2114 = vmatprep.subr.bf16.mxu0 0
  %2115 = vmatpush1.bf16.xpose.msra.mxu0 0
  %2116 = vmatprep.subr.bf16.mxu0 0
  %2117 = vmatpush1.bf16.xpose.msra.mxu0 0
  %2118 = vmatprep.subr.bf16.mxu0 0
  %2119 = vmatpush1.bf16.xpose.msra.mxu0 0
  %2120 = vmatprep.subr.bf16.mxu0 0
  %2121 = vmatpush1.bf16.xpose.msra.mxu0 0
  %2122 = vmatprep.subr.bf16.mxu0 0
  %2123 = vmatpush1.bf16.xpose.msra.mxu0 0
  %2124 = vmatprep.subr.bf16.mxu0 0
  %2125 = vmatpush1.bf16.xpose.msra.mxu0 0
  %2126 = vmatprep.subr.bf16.mxu0 0
  %2127 = vmatpush1.bf16.xpose.msra.mxu0 0
  %2128 = vmatprep.mubr.bf16.mxu0 0
  %2129 = vmatmul.mubr.bf16.gmra.mrb[0].mxu0 %v2079
  %v2130 = vpop.f32.mrb[0].mxu0
  %v2131 = vadd.f32 %v33, %v2130
  %v2132 = vpop.f32.mrb[0].mxu0
  %v2133 = vpop.f32.mrb[0].mxu0
  %v2134 = vadd.f32 %v34, %v2133
  %v2135 = vpop.f32.mrb[0].mxu0
  %2136 = vmatprep.mubr.bf16.mxu0 0
  %2137 = vmatmul.mubr.bf16.gmra.mrb[0].mxu0 %v2082
  %v2138 = vpop.f32.mrb[0].mxu0
  %v2139 = vadd.f32 %v35, %v2138
  %v2140 = vpop.f32.mrb[0].mxu0
  %v2141 = vpop.f32.mrb[0].mxu0
  %v2142 = vadd.f32 %v36, %v2141
  %v2143 = vpop.f32.mrb[0].mxu0
  %2144 = vmatprep.mubr.bf16.mxu0 0
  %2145 = vmatmul.mubr.bf16.gmra.mrb[0].mxu0 %v2085
  %v2146 = vpop.f32.mrb[0].mxu0
  %v2147 = vadd.f32 %v37, %v2146
  %v2148 = vpop.f32.mrb[0].mxu0
  %v2149 = vpop.f32.mrb[0].mxu0
  %v2150 = vadd.f32 %v38, %v2149
  %v2151 = vpop.f32.mrb[0].mxu0
  %2152 = vdwg.mxu0
  %2153 = vrot.lane.b32.xlu0 %v1892, 104
  %v2154 = vpop.permute.xlu0 %2153
  %2155 = vrot.lane.b32.xlu0 %v1893, 104
  %v2156 = vpop.permute.xlu0 %2155
  %2157 = vrot.lane.b32.xlu0 %v1894, 104
  %v2158 = vpop.permute.xlu0 %2157
  %2159 = vrot.lane.b32.xlu0 %v1892, 72
  %v2160 = vpop.permute.xlu0 %2159
  %2161 = vrot.lane.b32.xlu0 %v1893, 72
  %v2162 = vpop.permute.xlu0 %2161
  %2163 = vrot.lane.b32.xlu0 %v1894, 72
  %v2164 = vpop.permute.xlu0 %2163
  %v2166 = vsel %vm248, %v2154, 0
  %v2169 = vsel %vm248, %v2156, 0
  %v2172 = vsel %vm248, %v2158, 0
  %v2175 = vsel %vm248, %v2160, 0
  %v2178 = vsel %vm248, %v2162, 0
  %v2181 = vsel %vm248, %v2164, 0
  %2183 = vmatprep.subr.bf16.mxu0 0
  %2184 = vmatpush1.bf16.xpose.msra.mxu0 %v2175
  %2185 = vmatprep.subr.bf16.mxu0 0
  %2186 = vmatpush1.bf16.xpose.msra.mxu0 %v2178
  %2187 = vmatprep.subr.bf16.mxu0 0
  %2188 = vmatpush1.bf16.xpose.msra.mxu0 %v2181
  %2189 = vmatprep.subr.bf16.mxu0 0
  %2190 = vmatpush1.bf16.xpose.msra.mxu0 0
  %2191 = vmatprep.subr.bf16.mxu0 0
  %2192 = vmatpush1.bf16.xpose.msra.mxu0 0
  %2193 = vmatprep.subr.bf16.mxu0 0
  %2194 = vmatpush1.bf16.xpose.msra.mxu0 0
  %2195 = vmatprep.subr.bf16.mxu0 0
  %2196 = vmatpush1.bf16.xpose.msra.mxu0 0
  %2197 = vmatprep.subr.bf16.mxu0 0
  %2198 = vmatpush1.bf16.xpose.msra.mxu0 0
  %2199 = vmatprep.subr.bf16.mxu0 0
  %2200 = vmatpush1.bf16.xpose.msra.mxu0 0
  %2201 = vmatprep.subr.bf16.mxu0 0
  %2202 = vmatpush1.bf16.xpose.msra.mxu0 0
  %2203 = vmatprep.subr.bf16.mxu0 0
  %2204 = vmatpush1.bf16.xpose.msra.mxu0 0
  %2205 = vmatprep.subr.bf16.mxu0 0
  %2206 = vmatpush1.bf16.xpose.msra.mxu0 0
  %2207 = vmatprep.subr.bf16.mxu0 0
  %2208 = vmatpush1.bf16.xpose.msra.mxu0 0
  %2209 = vmatprep.subr.bf16.mxu0 0
  %2210 = vmatpush1.bf16.xpose.msra.mxu0 0
  %2211 = vmatprep.subr.bf16.mxu0 0
  %2212 = vmatpush1.bf16.xpose.msra.mxu0 0
  %2213 = vmatprep.subr.bf16.mxu0 0
  %2214 = vmatpush1.bf16.xpose.msra.mxu0 0
  %2215 = vmatprep.mubr.bf16.mxu0 0
  %2216 = vmatmul.mubr.bf16.gmra.mrb[0].mxu0 %v2166
  %v2217 = vpop.f32.mrb[0].mxu0
  %v2218 = vadd.f32 %v33, %v2217
  %v2219 = vpop.f32.mrb[0].mxu0
  %v2220 = vpop.f32.mrb[0].mxu0
  %v2221 = vadd.f32 %v34, %v2220
  %v2222 = vpop.f32.mrb[0].mxu0
  %2223 = vmatprep.mubr.bf16.mxu0 0
  %2224 = vmatmul.mubr.bf16.gmra.mrb[0].mxu0 %v2169
  %v2225 = vpop.f32.mrb[0].mxu0
  %v2226 = vadd.f32 %v35, %v2225
  %v2227 = vpop.f32.mrb[0].mxu0
  %v2228 = vpop.f32.mrb[0].mxu0
  %v2229 = vadd.f32 %v36, %v2228
  %v2230 = vpop.f32.mrb[0].mxu0
  %2231 = vmatprep.mubr.bf16.mxu0 0
  %2232 = vmatmul.mubr.bf16.gmra.mrb[0].mxu0 %v2172
  %v2233 = vpop.f32.mrb[0].mxu0
  %v2234 = vadd.f32 %v37, %v2233
  %v2235 = vpop.f32.mrb[0].mxu0
  %v2236 = vpop.f32.mrb[0].mxu0
  %v2237 = vadd.f32 %v38, %v2236
  %v2238 = vpop.f32.mrb[0].mxu0
  %2239 = vdwg.mxu0
  %v2240 = vsel %vm585, %v1957, -inf
  %2241 = vmax.xlane.f32.xlu0 %v2240
  %v2242 = vpop.xlane.xlu0 %2241
  %v2243 = vsel %vm585, %v1960, -inf
  %2244 = vmax.xlane.f32.xlu0 %v2243
  %v2245 = vpop.xlane.xlu0 %2244
  %v2246 = vsel %vm585, %v1965, -inf
  %2247 = vmax.xlane.f32.xlu0 %v2246
  %v2248 = vpop.xlane.xlu0 %2247
  %v2249 = vsel %vm585, %v1968, -inf
  %2250 = vmax.xlane.f32.xlu0 %v2249
  %v2251 = vpop.xlane.xlu0 %2250
  %v2252 = vsel %vm585, %v1973, -inf
  %2253 = vmax.xlane.f32.xlu0 %v2252
  %v2254 = vpop.xlane.xlu0 %2253
  %v2255 = vsel %vm585, %v1976, -inf
  %2256 = vmax.xlane.f32.xlu0 %v2255
  %v2257 = vpop.xlane.xlu0 %2256
  %v2258 = vsel %vm585, %v2044, -inf
  %2259 = vmax.xlane.f32.xlu0 %v2258
  %v2260 = vpop.xlane.xlu0 %2259
  %v2261 = vsel %vm585, %v2047, -inf
  %2262 = vmax.xlane.f32.xlu0 %v2261
  %v2263 = vpop.xlane.xlu0 %2262
  %v2264 = vsel %vm585, %v2052, -inf
  %2265 = vmax.xlane.f32.xlu0 %v2264
  %v2266 = vpop.xlane.xlu0 %2265
  %v2267 = vsel %vm585, %v2055, -inf
  %2268 = vmax.xlane.f32.xlu0 %v2267
  %v2269 = vpop.xlane.xlu0 %2268
  %v2270 = vsel %vm585, %v2060, -inf
  %2271 = vmax.xlane.f32.xlu0 %v2270
  %v2272 = vpop.xlane.xlu0 %2271
  %v2273 = vsel %vm585, %v2063, -inf
  %2274 = vmax.xlane.f32.xlu0 %v2273
  %v2275 = vpop.xlane.xlu0 %2274
  %v2276 = vsel %vm585, %v2131, -inf
  %2277 = vmax.xlane.f32.xlu0 %v2276
  %v2278 = vpop.xlane.xlu0 %2277
  %v2279 = vsel %vm585, %v2134, -inf
  %2280 = vmax.xlane.f32.xlu0 %v2279
  %v2281 = vpop.xlane.xlu0 %2280
  %v2282 = vsel %vm585, %v2139, -inf
  %2283 = vmax.xlane.f32.xlu0 %v2282
  %v2284 = vpop.xlane.xlu0 %2283
  %v2285 = vsel %vm585, %v2142, -inf
  %2286 = vmax.xlane.f32.xlu0 %v2285
  %v2287 = vpop.xlane.xlu0 %2286
  %v2288 = vsel %vm585, %v2147, -inf
  %2289 = vmax.xlane.f32.xlu0 %v2288
  %v2290 = vpop.xlane.xlu0 %2289
  %v2291 = vsel %vm585, %v2150, -inf
  %2292 = vmax.xlane.f32.xlu0 %v2291
  %v2293 = vpop.xlane.xlu0 %2292
  %v2294 = vsel %vm585, %v2218, -inf
  %2295 = vmax.xlane.f32.xlu0 %v2294
  %v2296 = vpop.xlane.xlu0 %2295
  %v2297 = vsel %vm585, %v2221, -inf
  %2298 = vmax.xlane.f32.xlu0 %v2297
  %v2299 = vpop.xlane.xlu0 %2298
  %v2300 = vsel %vm585, %v2226, -inf
  %2301 = vmax.xlane.f32.xlu0 %v2300
  %v2302 = vpop.xlane.xlu0 %2301
  %v2303 = vsel %vm585, %v2229, -inf
  %2304 = vmax.xlane.f32.xlu0 %v2303
  %v2305 = vpop.xlane.xlu0 %2304
  %v2306 = vsel %vm585, %v2234, -inf
  %2307 = vmax.xlane.f32.xlu0 %v2306
  %v2308 = vpop.xlane.xlu0 %2307
  %v2309 = vsel %vm585, %v2237, -inf
  %2310 = vmax.xlane.f32.xlu0 %v2309
  %v2311 = vpop.xlane.xlu0 %2310
  %v2312 = vsub.f32 %v1957, %v2242
  %v2313 = vsub.f32 %v1960, %v2245
  %v2314 = vsub.f32 %v1965, %v2248
  %v2315 = vsub.f32 %v1968, %v2251
  %v2316 = vsub.f32 %v1973, %v2254
  %v2317 = vsub.f32 %v1976, %v2257
  %v2318 = vsub.f32 %v2044, %v2260
  %v2319 = vsub.f32 %v2047, %v2263
  %v2320 = vsub.f32 %v2052, %v2266
  %v2321 = vsub.f32 %v2055, %v2269
  %v2322 = vsub.f32 %v2060, %v2272
  %v2323 = vsub.f32 %v2063, %v2275
  %v2324 = vsub.f32 %v2131, %v2278
  %v2325 = vsub.f32 %v2134, %v2281
  %v2326 = vsub.f32 %v2139, %v2284
  %v2327 = vsub.f32 %v2142, %v2287
  %v2328 = vsub.f32 %v2147, %v2290
  %v2329 = vsub.f32 %v2150, %v2293
  %v2330 = vsub.f32 %v2218, %v2296
  %v2331 = vsub.f32 %v2221, %v2299
  %v2332 = vsub.f32 %v2226, %v2302
  %v2333 = vsub.f32 %v2229, %v2305
  %v2334 = vsub.f32 %v2234, %v2308
  %v2335 = vsub.f32 %v2237, %v2311
  %v2336 = vmul.f32 %v2312, 1.442695
  %v2337 = vpow.pop %v2336
  %v2338 = vmul.f32 %v2313, 1.442695
  %v2339 = vpow.pop %v2338
  %v2340 = vmul.f32 %v2314, 1.442695
  %v2341 = vpow.pop %v2340
  %v2342 = vmul.f32 %v2315, 1.442695
  %v2343 = vpow.pop %v2342
  %v2344 = vmul.f32 %v2316, 1.442695
  %v2345 = vpow.pop %v2344
  %v2346 = vmul.f32 %v2317, 1.442695
  %v2347 = vpow.pop %v2346
  %v2348 = vmul.f32 %v2318, 1.442695
  %v2349 = vpow.pop %v2348
  %v2350 = vmul.f32 %v2319, 1.442695
  %v2351 = vpow.pop %v2350
  %v2352 = vmul.f32 %v2320, 1.442695
  %v2353 = vpow.pop %v2352
  %v2354 = vmul.f32 %v2321, 1.442695
  %v2355 = vpow.pop %v2354
  %v2356 = vmul.f32 %v2322, 1.442695
  %v2357 = vpow.pop %v2356
  %v2358 = vmul.f32 %v2323, 1.442695
  %v2359 = vpow.pop %v2358
  %v2360 = vmul.f32 %v2324, 1.442695
  %v2361 = vpow.pop %v2360
  %v2362 = vmul.f32 %v2325, 1.442695
  %v2363 = vpow.pop %v2362
  %v2364 = vmul.f32 %v2326, 1.442695
  %v2365 = vpow.pop %v2364
  %v2366 = vmul.f32 %v2327, 1.442695
  %v2367 = vpow.pop %v2366
  %v2368 = vmul.f32 %v2328, 1.442695
  %v2369 = vpow.pop %v2368
  %v2370 = vmul.f32 %v2329, 1.442695
  %v2371 = vpow.pop %v2370
  %v2372 = vmul.f32 %v2330, 1.442695
  %v2373 = vpow.pop %v2372
  %v2374 = vmul.f32 %v2331, 1.442695
  %v2375 = vpow.pop %v2374
  %v2376 = vmul.f32 %v2332, 1.442695
  %v2377 = vpow.pop %v2376
  %v2378 = vmul.f32 %v2333, 1.442695
  %v2379 = vpow.pop %v2378
  %v2380 = vmul.f32 %v2334, 1.442695
  %v2381 = vpow.pop %v2380
  %v2382 = vmul.f32 %v2335, 1.442695
  %v2383 = vpow.pop %v2382
  %v2384 = vsel %vm585, %v2337, 0.0
  %2385 = vadd.xlane.f32.xlu0 %v2384
  %v2386 = vpop.xlane.xlu0 %2385
  %v2387 = vsel %vm585, %v2339, 0.0
  %2388 = vadd.xlane.f32.xlu0 %v2387
  %v2389 = vpop.xlane.xlu0 %2388
  %v2390 = vsel %vm585, %v2341, 0.0
  %2391 = vadd.xlane.f32.xlu0 %v2390
  %v2392 = vpop.xlane.xlu0 %2391
  %v2393 = vsel %vm585, %v2343, 0.0
  %2394 = vadd.xlane.f32.xlu0 %v2393
  %v2395 = vpop.xlane.xlu0 %2394
  %v2396 = vsel %vm585, %v2345, 0.0
  %2397 = vadd.xlane.f32.xlu0 %v2396
  %v2398 = vpop.xlane.xlu0 %2397
  %v2399 = vsel %vm585, %v2347, 0.0
  %2400 = vadd.xlane.f32.xlu0 %v2399
  %v2401 = vpop.xlane.xlu0 %2400
  %v2402 = vsel %vm585, %v2349, 0.0
  %2403 = vadd.xlane.f32.xlu0 %v2402
  %v2404 = vpop.xlane.xlu0 %2403
  %v2405 = vsel %vm585, %v2351, 0.0
  %2406 = vadd.xlane.f32.xlu0 %v2405
  %v2407 = vpop.xlane.xlu0 %2406
  %v2408 = vsel %vm585, %v2353, 0.0
  %2409 = vadd.xlane.f32.xlu0 %v2408
  %v2410 = vpop.xlane.xlu0 %2409
  %v2411 = vsel %vm585, %v2355, 0.0
  %2412 = vadd.xlane.f32.xlu0 %v2411
  %v2413 = vpop.xlane.xlu0 %2412
  %v2414 = vsel %vm585, %v2357, 0.0
  %2415 = vadd.xlane.f32.xlu0 %v2414
  %v2416 = vpop.xlane.xlu0 %2415
  %v2417 = vsel %vm585, %v2359, 0.0
  %2418 = vadd.xlane.f32.xlu0 %v2417
  %v2419 = vpop.xlane.xlu0 %2418
  %v2420 = vsel %vm585, %v2361, 0.0
  %2421 = vadd.xlane.f32.xlu0 %v2420
  %v2422 = vpop.xlane.xlu0 %2421
  %v2423 = vsel %vm585, %v2363, 0.0
  %2424 = vadd.xlane.f32.xlu0 %v2423
  %v2425 = vpop.xlane.xlu0 %2424
  %v2426 = vsel %vm585, %v2365, 0.0
  %2427 = vadd.xlane.f32.xlu0 %v2426
  %v2428 = vpop.xlane.xlu0 %2427
  %v2429 = vsel %vm585, %v2367, 0.0
  %2430 = vadd.xlane.f32.xlu0 %v2429
  %v2431 = vpop.xlane.xlu0 %2430
  %v2432 = vsel %vm585, %v2369, 0.0
  %2433 = vadd.xlane.f32.xlu0 %v2432
  %v2434 = vpop.xlane.xlu0 %2433
  %v2435 = vsel %vm585, %v2371, 0.0
  %2436 = vadd.xlane.f32.xlu0 %v2435
  %v2437 = vpop.xlane.xlu0 %2436
  %v2438 = vsel %vm585, %v2373, 0.0
  %2439 = vadd.xlane.f32.xlu0 %v2438
  %v2440 = vpop.xlane.xlu0 %2439
  %v2441 = vsel %vm585, %v2375, 0.0
  %2442 = vadd.xlane.f32.xlu0 %v2441
  %v2443 = vpop.xlane.xlu0 %2442
  %v2444 = vsel %vm585, %v2377, 0.0
  %2445 = vadd.xlane.f32.xlu0 %v2444
  %v2446 = vpop.xlane.xlu0 %2445
  %v2447 = vsel %vm585, %v2379, 0.0
  %2448 = vadd.xlane.f32.xlu0 %v2447
  %v2449 = vpop.xlane.xlu0 %2448
  %v2450 = vsel %vm585, %v2381, 0.0
  %2451 = vadd.xlane.f32.xlu0 %v2450
  %v2452 = vpop.xlane.xlu0 %2451
  %v2453 = vsel %vm585, %v2383, 0.0
  %2454 = vadd.xlane.f32.xlu0 %v2453
  %v2455 = vpop.xlane.xlu0 %2454
  %v2456 = vrcp.pop %v2386
  %v2457 = vrcp.pop %v2389
  %v2458 = vrcp.pop %v2392
  %v2459 = vrcp.pop %v2395
  %v2460 = vrcp.pop %v2398
  %v2461 = vrcp.pop %v2401
  %v2462 = vrcp.pop %v2404
  %v2463 = vrcp.pop %v2407
  %v2464 = vrcp.pop %v2410
  %v2465 = vrcp.pop %v2413
  %v2466 = vrcp.pop %v2416
  %v2467 = vrcp.pop %v2419
  %v2468 = vrcp.pop %v2422
  %v2469 = vrcp.pop %v2425
  %v2470 = vrcp.pop %v2428
  %v2471 = vrcp.pop %v2431
  %v2472 = vrcp.pop %v2434
  %v2473 = vrcp.pop %v2437
  %v2474 = vrcp.pop %v2440
  %v2475 = vrcp.pop %v2443
  %v2476 = vrcp.pop %v2446
  %v2477 = vrcp.pop %v2449
  %v2478 = vrcp.pop %v2452
  %v2479 = vrcp.pop %v2455
  %v2480 = vmul.f32 %v2337, %v2456
  %v2481 = vmul.f32 %v2339, %v2457
  %v2482 = vmul.f32 %v2341, %v2458
  %v2483 = vmul.f32 %v2343, %v2459
  %v2484 = vmul.f32 %v2345, %v2460
  %v2485 = vmul.f32 %v2347, %v2461
  %v2486 = vmul.f32 %v2349, %v2462
  %v2487 = vmul.f32 %v2351, %v2463
  %v2488 = vmul.f32 %v2353, %v2464
  %v2489 = vmul.f32 %v2355, %v2465
  %v2490 = vmul.f32 %v2357, %v2466
  %v2491 = vmul.f32 %v2359, %v2467
  %v2492 = vmul.f32 %v2361, %v2468
  %v2493 = vmul.f32 %v2363, %v2469
  %v2494 = vmul.f32 %v2365, %v2470
  %v2495 = vmul.f32 %v2367, %v2471
  %v2496 = vmul.f32 %v2369, %v2472
  %v2497 = vmul.f32 %v2371, %v2473
  %v2498 = vmul.f32 %v2373, %v2474
  %v2499 = vmul.f32 %v2375, %v2475
  %v2500 = vmul.f32 %v2377, %v2476
  %v2501 = vmul.f32 %v2379, %v2477
  %v2502 = vmul.f32 %v2381, %v2478
  %v2503 = vmul.f32 %v2383, %v2479
  %v2504 = vpack.c.bf16 %v2481, %v2480
  %v2505 = vpack.c.bf16 %v2483, %v2482
  %v2506 = vpack.c.bf16 %v2485, %v2484
  %v2507 = vpack.c.bf16 %v2487, %v2486
  %v2508 = vpack.c.bf16 %v2489, %v2488
  %v2509 = vpack.c.bf16 %v2491, %v2490
  %v2510 = vpack.c.bf16 %v2493, %v2492
  %v2511 = vpack.c.bf16 %v2495, %v2494
  %v2512 = vpack.c.bf16 %v2497, %v2496
  %v2513 = vpack.c.bf16 %v2499, %v2498
  %v2514 = vpack.c.bf16 %v2501, %v2500
  %v2515 = vpack.c.bf16 %v2503, %v2502
  %2516 = vrot.lane.b32.xlu0 %v1892, 64
  %v2517 = vpop.permute.xlu0 %2516
  %2518 = vrot.lane.b32.xlu0 %v1893, 64
  %v2519 = vpop.permute.xlu0 %2518
  %2520 = vrot.lane.b32.xlu0 %v1894, 64
  %v2521 = vpop.permute.xlu0 %2520
  %v2526 = vsel %vm585, %v2504, 0
  %v2529 = vsel %vm585, %v2505, 0
  %v2532 = vsel %vm585, %v2506, 0
  %2534 = vmatprep.subr.bf16.mxu0 0
  %2535 = vmatpush1.bf16.msra.mxu0 %v2517
  %2536 = vmatprep.subr.bf16.mxu0 0
  %2537 = vmatpush1.bf16.msra.mxu0 %v2519
  %2538 = vmatprep.subr.bf16.mxu0 0
  %2539 = vmatpush1.bf16.msra.mxu0 %v2521
  %2540 = vmatprep.subr.bf16.mxu0 0
  %2541 = vmatpush1.bf16.msra.mxu0 0
  %2542 = vmatprep.subr.bf16.mxu0 0
  %2543 = vmatpush1.bf16.msra.mxu0 0
  %2544 = vmatprep.subr.bf16.mxu0 0
  %2545 = vmatpush1.bf16.msra.mxu0 0
  %2546 = vmatprep.subr.bf16.mxu0 0
  %2547 = vmatpush1.bf16.msra.mxu0 0
  %2548 = vmatprep.subr.bf16.mxu0 0
  %2549 = vmatpush1.bf16.msra.mxu0 0
  %2550 = vmatprep.subr.bf16.mxu0 0
  %2551 = vmatpush1.bf16.msra.mxu0 0
  %2552 = vmatprep.subr.bf16.mxu0 0
  %2553 = vmatpush1.bf16.msra.mxu0 0
  %2554 = vmatprep.subr.bf16.mxu0 0
  %2555 = vmatpush1.bf16.msra.mxu0 0
  %2556 = vmatprep.subr.bf16.mxu0 0
  %2557 = vmatpush1.bf16.msra.mxu0 0
  %2558 = vmatprep.subr.bf16.mxu0 0
  %2559 = vmatpush1.bf16.msra.mxu0 0
  %2560 = vmatprep.subr.bf16.mxu0 0
  %2561 = vmatpush1.bf16.msra.mxu0 0
  %2562 = vmatprep.subr.bf16.mxu0 0
  %2563 = vmatpush1.bf16.msra.mxu0 0
  %2564 = vmatprep.subr.bf16.mxu0 0
  %2565 = vmatpush1.bf16.msra.mxu0 0
  %2566 = vmatprep.mubr.bf16.mxu0 0
  %2567 = vmatmul.mubr.bf16.gmra.mrb[0].mxu0 %v2526
  %v2568 = vpop.f32.mrb[0].mxu0
  %v2569 = vadd.f32 0.0, %v2568
  %v2570 = vpop.f32.mrb[0].mxu0
  %v2571 = vpop.f32.mrb[0].mxu0
  %v2572 = vadd.f32 0.0, %v2571
  %v2573 = vpop.f32.mrb[0].mxu0
  %2574 = vmatprep.mubr.bf16.mxu0 0
  %2575 = vmatmul.mubr.bf16.gmra.mrb[0].mxu0 %v2529
  %v2576 = vpop.f32.mrb[0].mxu0
  %v2577 = vadd.f32 0.0, %v2576
  %v2578 = vpop.f32.mrb[0].mxu0
  %v2579 = vpop.f32.mrb[0].mxu0
  %v2580 = vadd.f32 0.0, %v2579
  %v2581 = vpop.f32.mrb[0].mxu0
  %2582 = vmatprep.mubr.bf16.mxu0 0
  %2583 = vmatmul.mubr.bf16.gmra.mrb[0].mxu0 %v2532
  %v2584 = vpop.f32.mrb[0].mxu0
  %v2585 = vadd.f32 0.0, %v2584
  %v2586 = vpop.f32.mrb[0].mxu0
  %v2587 = vpop.f32.mrb[0].mxu0
  %v2588 = vadd.f32 0.0, %v2587
  %v2589 = vpop.f32.mrb[0].mxu0
  %2590 = vdwg.mxu0
  %2591 = vrot.lane.b32.xlu0 %v1892, 56
  %v2592 = vpop.permute.xlu0 %2591
  %2593 = vrot.lane.b32.xlu0 %v1893, 56
  %v2594 = vpop.permute.xlu0 %2593
  %2595 = vrot.lane.b32.xlu0 %v1894, 56
  %v2596 = vpop.permute.xlu0 %2595
  %v2601 = vsel %vm585, %v2507, 0
  %v2604 = vsel %vm585, %v2508, 0
  %v2607 = vsel %vm585, %v2509, 0
  %2609 = vmatprep.subr.bf16.mxu0 0
  %2610 = vmatpush1.bf16.msra.mxu0 %v2592
  %2611 = vmatprep.subr.bf16.mxu0 0
  %2612 = vmatpush1.bf16.msra.mxu0 %v2594
  %2613 = vmatprep.subr.bf16.mxu0 0
  %2614 = vmatpush1.bf16.msra.mxu0 %v2596
  %2615 = vmatprep.subr.bf16.mxu0 0
  %2616 = vmatpush1.bf16.msra.mxu0 0
  %2617 = vmatprep.subr.bf16.mxu0 0
  %2618 = vmatpush1.bf16.msra.mxu0 0
  %2619 = vmatprep.subr.bf16.mxu0 0
  %2620 = vmatpush1.bf16.msra.mxu0 0
  %2621 = vmatprep.subr.bf16.mxu0 0
  %2622 = vmatpush1.bf16.msra.mxu0 0
  %2623 = vmatprep.subr.bf16.mxu0 0
  %2624 = vmatpush1.bf16.msra.mxu0 0
  %2625 = vmatprep.subr.bf16.mxu0 0
  %2626 = vmatpush1.bf16.msra.mxu0 0
  %2627 = vmatprep.subr.bf16.mxu0 0
  %2628 = vmatpush1.bf16.msra.mxu0 0
  %2629 = vmatprep.subr.bf16.mxu0 0
  %2630 = vmatpush1.bf16.msra.mxu0 0
  %2631 = vmatprep.subr.bf16.mxu0 0
  %2632 = vmatpush1.bf16.msra.mxu0 0
  %2633 = vmatprep.subr.bf16.mxu0 0
  %2634 = vmatpush1.bf16.msra.mxu0 0
  %2635 = vmatprep.subr.bf16.mxu0 0
  %2636 = vmatpush1.bf16.msra.mxu0 0
  %2637 = vmatprep.subr.bf16.mxu0 0
  %2638 = vmatpush1.bf16.msra.mxu0 0
  %2639 = vmatprep.subr.bf16.mxu0 0
  %2640 = vmatpush1.bf16.msra.mxu0 0
  %2641 = vmatprep.mubr.bf16.mxu0 0
  %2642 = vmatmul.mubr.bf16.gmra.mrb[0].mxu0 %v2601
  %v2643 = vpop.f32.mrb[0].mxu0
  %v2644 = vadd.f32 0.0, %v2643
  %v2645 = vpop.f32.mrb[0].mxu0
  %v2646 = vpop.f32.mrb[0].mxu0
  %v2647 = vadd.f32 0.0, %v2646
  %v2648 = vpop.f32.mrb[0].mxu0
  %2649 = vmatprep.mubr.bf16.mxu0 0
  %2650 = vmatmul.mubr.bf16.gmra.mrb[0].mxu0 %v2604
  %v2651 = vpop.f32.mrb[0].mxu0
  %v2652 = vadd.f32 0.0, %v2651
  %v2653 = vpop.f32.mrb[0].mxu0
  %v2654 = vpop.f32.mrb[0].mxu0
  %v2655 = vadd.f32 0.0, %v2654
  %v2656 = vpop.f32.mrb[0].mxu0
  %2657 = vmatprep.mubr.bf16.mxu0 0
  %2658 = vmatmul.mubr.bf16.gmra.mrb[0].mxu0 %v2607
  %v2659 = vpop.f32.mrb[0].mxu0
  %v2660 = vadd.f32 0.0, %v2659
  %v2661 = vpop.f32.mrb[0].mxu0
  %v2662 = vpop.f32.mrb[0].mxu0
  %v2663 = vadd.f32 0.0, %v2662
  %v2664 = vpop.f32.mrb[0].mxu0
  %2665 = vdwg.mxu0
  %2666 = vrot.lane.b32.xlu0 %v1892, 48
  %v2667 = vpop.permute.xlu0 %2666
  %2668 = vrot.lane.b32.xlu0 %v1893, 48
  %v2669 = vpop.permute.xlu0 %2668
  %2670 = vrot.lane.b32.xlu0 %v1894, 48
  %v2671 = vpop.permute.xlu0 %2670
  %v2676 = vsel %vm585, %v2510, 0
  %v2679 = vsel %vm585, %v2511, 0
  %v2682 = vsel %vm585, %v2512, 0
  %2684 = vmatprep.subr.bf16.mxu0 0
  %2685 = vmatpush1.bf16.msra.mxu0 %v2667
  %2686 = vmatprep.subr.bf16.mxu0 0
  %2687 = vmatpush1.bf16.msra.mxu0 %v2669
  %2688 = vmatprep.subr.bf16.mxu0 0
  %2689 = vmatpush1.bf16.msra.mxu0 %v2671
  %2690 = vmatprep.subr.bf16.mxu0 0
  %2691 = vmatpush1.bf16.msra.mxu0 0
  %2692 = vmatprep.subr.bf16.mxu0 0
  %2693 = vmatpush1.bf16.msra.mxu0 0
  %2694 = vmatprep.subr.bf16.mxu0 0
  %2695 = vmatpush1.bf16.msra.mxu0 0
  %2696 = vmatprep.subr.bf16.mxu0 0
  %2697 = vmatpush1.bf16.msra.mxu0 0
  %2698 = vmatprep.subr.bf16.mxu0 0
  %2699 = vmatpush1.bf16.msra.mxu0 0
  %2700 = vmatprep.subr.bf16.mxu0 0
  %2701 = vmatpush1.bf16.msra.mxu0 0
  %2702 = vmatprep.subr.bf16.mxu0 0
  %2703 = vmatpush1.bf16.msra.mxu0 0
  %2704 = vmatprep.subr.bf16.mxu0 0
  %2705 = vmatpush1.bf16.msra.mxu0 0
  %2706 = vmatprep.subr.bf16.mxu0 0
  %2707 = vmatpush1.bf16.msra.mxu0 0
  %2708 = vmatprep.subr.bf16.mxu0 0
  %2709 = vmatpush1.bf16.msra.mxu0 0
  %2710 = vmatprep.subr.bf16.mxu0 0
  %2711 = vmatpush1.bf16.msra.mxu0 0
  %2712 = vmatprep.subr.bf16.mxu0 0
  %2713 = vmatpush1.bf16.msra.mxu0 0
  %2714 = vmatprep.subr.bf16.mxu0 0
  %2715 = vmatpush1.bf16.msra.mxu0 0
  %2716 = vmatprep.mubr.bf16.mxu0 0
  %2717 = vmatmul.mubr.bf16.gmra.mrb[0].mxu0 %v2676
  %v2718 = vpop.f32.mrb[0].mxu0
  %v2719 = vadd.f32 0.0, %v2718
  %v2720 = vpop.f32.mrb[0].mxu0
  %v2721 = vpop.f32.mrb[0].mxu0
  %v2722 = vadd.f32 0.0, %v2721
  %v2723 = vpop.f32.mrb[0].mxu0
  %2724 = vmatprep.mubr.bf16.mxu0 0
  %2725 = vmatmul.mubr.bf16.gmra.mrb[0].mxu0 %v2679
  %v2726 = vpop.f32.mrb[0].mxu0
  %v2727 = vadd.f32 0.0, %v2726
  %v2728 = vpop.f32.mrb[0].mxu0
  %v2729 = vpop.f32.mrb[0].mxu0
  %v2730 = vadd.f32 0.0, %v2729
  %v2731 = vpop.f32.mrb[0].mxu0
  %2732 = vmatprep.mubr.bf16.mxu0 0
  %2733 = vmatmul.mubr.bf16.gmra.mrb[0].mxu0 %v2682
  %v2734 = vpop.f32.mrb[0].mxu0
  %v2735 = vadd.f32 0.0, %v2734
  %v2736 = vpop.f32.mrb[0].mxu0
  %v2737 = vpop.f32.mrb[0].mxu0
  %v2738 = vadd.f32 0.0, %v2737
  %v2739 = vpop.f32.mrb[0].mxu0
  %2740 = vdwg.mxu0
  %2741 = vrot.lane.b32.xlu0 %v1892, 40
  %v2742 = vpop.permute.xlu0 %2741
  %2743 = vrot.lane.b32.xlu0 %v1893, 40
  %v2744 = vpop.permute.xlu0 %2743
  %2745 = vrot.lane.b32.xlu0 %v1894, 40
  %v2746 = vpop.permute.xlu0 %2745
  %v2751 = vsel %vm585, %v2513, 0
  %v2754 = vsel %vm585, %v2514, 0
  %v2757 = vsel %vm585, %v2515, 0
  %2759 = vmatprep.subr.bf16.mxu0 0
  %2760 = vmatpush1.bf16.msra.mxu0 %v2742
  %2761 = vmatprep.subr.bf16.mxu0 0
  %2762 = vmatpush1.bf16.msra.mxu0 %v2744
  %2763 = vmatprep.subr.bf16.mxu0 0
  %2764 = vmatpush1.bf16.msra.mxu0 %v2746
  %2765 = vmatprep.subr.bf16.mxu0 0
  %2766 = vmatpush1.bf16.msra.mxu0 0
  %2767 = vmatprep.subr.bf16.mxu0 0
  %2768 = vmatpush1.bf16.msra.mxu0 0
  %2769 = vmatprep.subr.bf16.mxu0 0
  %2770 = vmatpush1.bf16.msra.mxu0 0
  %2771 = vmatprep.subr.bf16.mxu0 0
  %2772 = vmatpush1.bf16.msra.mxu0 0
  %2773 = vmatprep.subr.bf16.mxu0 0
  %2774 = vmatpush1.bf16.msra.mxu0 0
  %2775 = vmatprep.subr.bf16.mxu0 0
  %2776 = vmatpush1.bf16.msra.mxu0 0
  %2777 = vmatprep.subr.bf16.mxu0 0
  %2778 = vmatpush1.bf16.msra.mxu0 0
  %2779 = vmatprep.subr.bf16.mxu0 0
  %2780 = vmatpush1.bf16.msra.mxu0 0
  %2781 = vmatprep.subr.bf16.mxu0 0
  %2782 = vmatpush1.bf16.msra.mxu0 0
  %2783 = vmatprep.subr.bf16.mxu0 0
  %2784 = vmatpush1.bf16.msra.mxu0 0
  %2785 = vmatprep.subr.bf16.mxu0 0
  %2786 = vmatpush1.bf16.msra.mxu0 0
  %2787 = vmatprep.subr.bf16.mxu0 0
  %2788 = vmatpush1.bf16.msra.mxu0 0
  %2789 = vmatprep.subr.bf16.mxu0 0
  %2790 = vmatpush1.bf16.msra.mxu0 0
  %2791 = vmatprep.mubr.bf16.mxu0 0
  %2792 = vmatmul.mubr.bf16.gmra.mrb[0].mxu0 %v2751
  %v2793 = vpop.f32.mrb[0].mxu0
  %v2794 = vadd.f32 0.0, %v2793
  %v2795 = vpop.f32.mrb[0].mxu0
  %v2796 = vpop.f32.mrb[0].mxu0
  %v2797 = vadd.f32 0.0, %v2796
  %v2798 = vpop.f32.mrb[0].mxu0
  %2799 = vmatprep.mubr.bf16.mxu0 0
  %2800 = vmatmul.mubr.bf16.gmra.mrb[0].mxu0 %v2754
  %v2801 = vpop.f32.mrb[0].mxu0
  %v2802 = vadd.f32 0.0, %v2801
  %v2803 = vpop.f32.mrb[0].mxu0
  %v2804 = vpop.f32.mrb[0].mxu0
  %v2805 = vadd.f32 0.0, %v2804
  %v2806 = vpop.f32.mrb[0].mxu0
  %2807 = vmatprep.mubr.bf16.mxu0 0
  %2808 = vmatmul.mubr.bf16.gmra.mrb[0].mxu0 %v2757
  %v2809 = vpop.f32.mrb[0].mxu0
  %v2810 = vadd.f32 0.0, %v2809
  %v2811 = vpop.f32.mrb[0].mxu0
  %v2812 = vpop.f32.mrb[0].mxu0
  %v2813 = vadd.f32 0.0, %v2812
  %v2814 = vpop.f32.mrb[0].mxu0
  %2815 = vdwg.mxu0
  %2822 = vrot.lane.b32.xlu0 %v2644, 8
  %v2823 = vpop.permute.xlu0 %2822
  %2824 = vrot.lane.b32.xlu0 %v2647, 8
  %v2825 = vpop.permute.xlu0 %2824
  %2826 = vrot.lane.b32.xlu0 %v2652, 8
  %v2827 = vpop.permute.xlu0 %2826
  %2828 = vrot.lane.b32.xlu0 %v2655, 8
  %v2829 = vpop.permute.xlu0 %2828
  %2830 = vrot.lane.b32.xlu0 %v2660, 8
  %v2831 = vpop.permute.xlu0 %2830
  %2832 = vrot.lane.b32.xlu0 %v2663, 8
  %v2833 = vpop.permute.xlu0 %2832
  %2846 = vrot.lane.b32.xlu0 %v2719, 16
  %v2847 = vpop.permute.xlu0 %2846
  %2848 = vrot.lane.b32.xlu0 %v2722, 16
  %v2849 = vpop.permute.xlu0 %2848
  %2850 = vrot.lane.b32.xlu0 %v2727, 16
  %v2851 = vpop.permute.xlu0 %2850
  %2852 = vrot.lane.b32.xlu0 %v2730, 16
  %v2853 = vpop.permute.xlu0 %2852
  %2854 = vrot.lane.b32.xlu0 %v2735, 16
  %v2855 = vpop.permute.xlu0 %2854
  %2856 = vrot.lane.b32.xlu0 %v2738, 16
  %v2857 = vpop.permute.xlu0 %2856
  %2870 = vrot.lane.b32.xlu0 %v2794, 24
  %v2871 = vpop.permute.xlu0 %2870
  %2872 = vrot.lane.b32.xlu0 %v2797, 24
  %v2873 = vpop.permute.xlu0 %2872
  %2874 = vrot.lane.b32.xlu0 %v2802, 24
  %v2875 = vpop.permute.xlu0 %2874
  %2876 = vrot.lane.b32.xlu0 %v2805, 24
  %v2877 = vpop.permute.xlu0 %2876
  %2878 = vrot.lane.b32.xlu0 %v2810, 24
  %v2879 = vpop.permute.xlu0 %2878
  %2880 = vrot.lane.b32.xlu0 %v2813, 24
  %v2881 = vpop.permute.xlu0 %2880
  %v2888 = vsel %vm248, %v2569, %v2823
  %v2889 = vsel %vm248, %v2572, %v2825
  %v2890 = vsel %vm248, %v2577, %v2827
  %v2891 = vsel %vm248, %v2580, %v2829
  %v2892 = vsel %vm248, %v2585, %v2831
  %v2893 = vsel %vm248, %v2588, %v2833
  %v2894 = vsel %vm1240, %v2888, %v2847
  %v2895 = vsel %vm1240, %v2889, %v2849
  %v2896 = vsel %vm1240, %v2890, %v2851
  %v2897 = vsel %vm1240, %v2891, %v2853
  %v2898 = vsel %vm1240, %v2892, %v2855
  %v2899 = vsel %vm1240, %v2893, %v2857
  %v2900 = vsel %vm1247, %v2894, %v2871
  %v2901 = vsel %vm1247, %v2895, %v2873
  %v2902 = vsel %vm1247, %v2896, %v2875
  %v2903 = vsel %vm1247, %v2897, %v2877
  %v2904 = vsel %vm1247, %v2898, %v2879
  %v2905 = vsel %vm1247, %v2899, %v2881
  %s2906 = scalar_lea.vmem %s5, 16
  %v2907 = vld [vmem:[%s2906] sm:$0xf]
  %v2908 = vld [vmem:[%s2906 + $0x4] sm:$0xf]
  %v2909 = vld [vmem:[%s2906 + $0x8] sm:$0xf]
  %v2910 = vld [vmem:[%s2906 + $0xc] sm:$0xf]
  %v2911 = vpack.c.bf16 %v2901, %v2900
  %v2912 = vpack.c.bf16 %v2903, %v2902
  %v2913 = vpack.c.bf16 %v2905, %v2904
  %v2914 = vlaneseq
  %v2915 = vshrl.u32 %v2914, 7
  %v2916 = vsub.s32 1, %v2915
  %v2917 = vrot.slane %v1801, %v2916
  %v2922 = vunpack.c.l.b16 %v2907
  %v2923 = vunpack.c.l.b16 %v2908
  %v2924 = vunpack.c.l.b16 %v2909
  %v2925 = vunpack.c.l.b16 %v2910
  %v2926 = vpack.c.b16 %v2923, %v2922
  %v2927 = vpack.c.b16 %v2925, %v2924
  %v2931 = vsel %vm46, %v2911, 0
  %v2934 = vsel %vm46, %v2912, 0
  %v2937 = vsel %vm46, %v2913, 0
  %2939 = vmatprep.subr.bf16.mxu0 0
  %2940 = vmatpush1.bf16.msra.mxu0 %v2926
  %2941 = vmatprep.subr.bf16.mxu0 0
  %2942 = vmatpush1.bf16.msra.mxu0 %v2927
  %2943 = vmatprep.subr.bf16.mxu0 0
  %2944 = vmatpush1.bf16.msra.mxu0 0
  %2945 = vmatprep.subr.bf16.mxu0 0
  %2946 = vmatpush1.bf16.msra.mxu0 0
  %2947 = vmatprep.subr.bf16.mxu0 0
  %2948 = vmatpush1.bf16.msra.mxu0 0
  %2949 = vmatprep.subr.bf16.mxu0 0
  %2950 = vmatpush1.bf16.msra.mxu0 0
  %2951 = vmatprep.subr.bf16.mxu0 0
  %2952 = vmatpush1.bf16.msra.mxu0 0
  %2953 = vmatprep.subr.bf16.mxu0 0
  %2954 = vmatpush1.bf16.msra.mxu0 0
  %2955 = vmatprep.subr.bf16.mxu0 0
  %2956 = vmatpush1.bf16.msra.mxu0 0
  %2957 = vmatprep.subr.bf16.mxu0 0
  %2958 = vmatpush1.bf16.msra.mxu0 0
  %2959 = vmatprep.subr.bf16.mxu0 0
  %2960 = vmatpush1.bf16.msra.mxu0 0
  %2961 = vmatprep.subr.bf16.mxu0 0
  %2962 = vmatpush1.bf16.msra.mxu0 0
  %2963 = vmatprep.subr.bf16.mxu0 0
  %2964 = vmatpush1.bf16.msra.mxu0 0
  %2965 = vmatprep.subr.bf16.mxu0 0
  %2966 = vmatpush1.bf16.msra.mxu0 0
  %2967 = vmatprep.subr.bf16.mxu0 0
  %2968 = vmatpush1.bf16.msra.mxu0 0
  %2969 = vmatprep.subr.bf16.mxu0 0
  %2970 = vmatpush1.bf16.msra.mxu0 0
  %2971 = vmatprep.mubr.bf16.mxu0 0
  %2972 = vmatmul.mubr.bf16.gmra.mrb[0].mxu0 %v2931
  %v2973 = vpop.f32.mrb[0].mxu0
  %v2974 = vadd.f32 %v2917, %v2973
  %v2975 = vpop.f32.mrb[0].mxu0
  %v2976 = vpop.f32.mrb[0].mxu0
  %v2977 = vadd.f32 %v2917, %v2976
  %v2978 = vpop.f32.mrb[0].mxu0
  %2979 = vmatprep.mubr.bf16.mxu0 0
  %2980 = vmatmul.mubr.bf16.gmra.mrb[0].mxu0 %v2934
  %v2981 = vpop.f32.mrb[0].mxu0
  %v2982 = vadd.f32 %v2917, %v2981
  %v2983 = vpop.f32.mrb[0].mxu0
  %v2984 = vpop.f32.mrb[0].mxu0
  %v2985 = vadd.f32 %v2917, %v2984
  %v2986 = vpop.f32.mrb[0].mxu0
  %2987 = vmatprep.mubr.bf16.mxu0 0
  %2988 = vmatmul.mubr.bf16.gmra.mrb[0].mxu0 %v2937
  %v2989 = vpop.f32.mrb[0].mxu0
  %v2990 = vadd.f32 %v2917, %v2989
  %v2991 = vpop.f32.mrb[0].mxu0
  %v2992 = vpop.f32.mrb[0].mxu0
  %v2993 = vadd.f32 %v2917, %v2992
  %v2994 = vpop.f32.mrb[0].mxu0
  %2995 = vdwg.mxu0
  %v2996 = vadd.f32 %v1794, %v2974
  %v2997 = vadd.f32 %v1795, %v2977
  %v2998 = vadd.f32 %v1796, %v2982
  %v2999 = vadd.f32 %v1797, %v2985
  %v3000 = vadd.f32 %v1798, %v2990
  %v3001 = vadd.f32 %v1799, %v2993
  %v3002 = vsel %vm46, %v2996, 0.0
  %3003 = vadd.xlane.f32.xlu0 %v3002
  %v3004 = vpop.xlane.xlu0 %3003
  %v3005 = vsel %vm46, %v2997, 0.0
  %3006 = vadd.xlane.f32.xlu0 %v3005
  %v3007 = vpop.xlane.xlu0 %3006
  %v3008 = vsel %vm46, %v2998, 0.0
  %3009 = vadd.xlane.f32.xlu0 %v3008
  %v3010 = vpop.xlane.xlu0 %3009
  %v3011 = vsel %vm46, %v2999, 0.0
  %3012 = vadd.xlane.f32.xlu0 %v3011
  %v3013 = vpop.xlane.xlu0 %3012
  %v3014 = vsel %vm46, %v3000, 0.0
  %3015 = vadd.xlane.f32.xlu0 %v3014
  %v3016 = vpop.xlane.xlu0 %3015
  %v3017 = vsel %vm46, %v3001, 0.0
  %3018 = vadd.xlane.f32.xlu0 %v3017
  %v3019 = vpop.xlane.xlu0 %3018
  %v3020 = vmul.f32 %v3004, %v65
  %v3021 = vmul.f32 %v3007, %v65
  %v3022 = vmul.f32 %v3010, %v65
  %v3023 = vmul.f32 %v3013, %v65
  %v3024 = vmul.f32 %v3016, %v65
  %v3025 = vmul.f32 %v3019, %v65
  %v3026 = vsub.f32 %v2996, %v3020
  %v3027 = vsub.f32 %v2997, %v3021
  %v3028 = vsub.f32 %v2998, %v3022
  %v3029 = vsub.f32 %v2999, %v3023
  %v3030 = vsub.f32 %v3000, %v3024
  %v3031 = vsub.f32 %v3001, %v3025
  %v3032 = vmul.f32 %v3026, %v3026
  %v3033 = vmul.f32 %v3027, %v3027
  %v3034 = vmul.f32 %v3028, %v3028
  %v3035 = vmul.f32 %v3029, %v3029
  %v3036 = vmul.f32 %v3030, %v3030
  %v3037 = vmul.f32 %v3031, %v3031
  %v3038 = vsel %vm46, %v3032, 0.0
  %3039 = vadd.xlane.f32.xlu0 %v3038
  %v3040 = vpop.xlane.xlu0 %3039
  %v3041 = vsel %vm46, %v3033, 0.0
  %3042 = vadd.xlane.f32.xlu0 %v3041
  %v3043 = vpop.xlane.xlu0 %3042
  %v3044 = vsel %vm46, %v3034, 0.0
  %3045 = vadd.xlane.f32.xlu0 %v3044
  %v3046 = vpop.xlane.xlu0 %3045
  %v3047 = vsel %vm46, %v3035, 0.0
  %3048 = vadd.xlane.f32.xlu0 %v3047
  %v3049 = vpop.xlane.xlu0 %3048
  %v3050 = vsel %vm46, %v3036, 0.0
  %3051 = vadd.xlane.f32.xlu0 %v3050
  %v3052 = vpop.xlane.xlu0 %3051
  %v3053 = vsel %vm46, %v3037, 0.0
  %3054 = vadd.xlane.f32.xlu0 %v3053
  %v3055 = vpop.xlane.xlu0 %3054
  %v3056 = vmul.f32 %v3040, %v65
  %v3057 = vmul.f32 %v3043, %v65
  %v3058 = vmul.f32 %v3046, %v65
  %v3059 = vmul.f32 %v3049, %v65
  %v3060 = vmul.f32 %v3052, %v65
  %v3061 = vmul.f32 %v3055, %v65
  %v3062 = vadd.f32 %v3056, 1e-12
  %v3063 = vadd.f32 %v3057, 1e-12
  %v3064 = vadd.f32 %v3058, 1e-12
  %v3065 = vadd.f32 %v3059, 1e-12
  %v3066 = vadd.f32 %v3060, 1e-12
  %v3067 = vadd.f32 %v3061, 1e-12
  %v3068 = vrsqrt.pop %v3062
  %v3069 = vrsqrt.pop %v3063
  %v3070 = vrsqrt.pop %v3064
  %v3071 = vrsqrt.pop %v3065
  %v3072 = vrsqrt.pop %v3066
  %v3073 = vrsqrt.pop %v3067
  %v3074 = vmul.f32 %v3026, %v3068
  %v3075 = vmul.f32 %v3027, %v3069
  %v3076 = vmul.f32 %v3028, %v3070
  %v3077 = vmul.f32 %v3029, %v3071
  %v3078 = vmul.f32 %v3030, %v3072
  %v3079 = vmul.f32 %v3031, %v3073
  %v3080 = vlaneseq
  %v3081 = vshrl.u32 %v3080, 7
  %v3082 = vsub.s32 2, %v3081
  %v3083 = vrot.slane %v1801, %v3082
  %v3084 = vmul.f32 %v3074, %v3083
  %v3085 = vmul.f32 %v3075, %v3083
  %v3086 = vmul.f32 %v3076, %v3083
  %v3087 = vmul.f32 %v3077, %v3083
  %v3088 = vmul.f32 %v3078, %v3083
  %v3089 = vmul.f32 %v3079, %v3083
  %v3090 = vlaneseq
  %v3091 = vshrl.u32 %v3090, 7
  %v3092 = vsub.s32 3, %v3091
  %v3093 = vrot.slane %v1801, %v3092
  %v3094 = vadd.f32 %v3084, %v3093
  %v3095 = vadd.f32 %v3085, %v3093
  %v3096 = vadd.f32 %v3086, %v3093
  %v3097 = vadd.f32 %v3087, %v3093
  %v3098 = vadd.f32 %v3088, %v3093
  %v3099 = vadd.f32 %v3089, %v3093
  %s3100 = scalar_lea.vmem %s6, 16
  %v3101 = vld [vmem:[%s3100] sm:$0xf]
  %v3102 = vld [vmem:[%s3100 + $0x4] sm:$0xf]
  %v3103 = vld [vmem:[%s3100 + $0x8] sm:$0xf]
  %v3104 = vld [vmem:[%s3100 + $0xc] sm:$0xf]
  %v3105 = vpack.c.bf16 %v3095, %v3094
  %v3106 = vpack.c.bf16 %v3097, %v3096
  %v3107 = vpack.c.bf16 %v3099, %v3098
  %v3108 = vlaneseq
  %v3109 = vshrl.u32 %v3108, 7
  %v3110 = vsub.s32 4, %v3109
  %v3111 = vrot.slane %v1801, %v3110
  %v3116 = vunpack.c.l.b16 %v3101
  %v3117 = vunpack.c.l.b16 %v3102
  %v3118 = vunpack.c.l.b16 %v3103
  %v3119 = vunpack.c.l.b16 %v3104
  %v3120 = vpack.c.b16 %v3117, %v3116
  %v3121 = vpack.c.b16 %v3119, %v3118
  %v3125 = vsel %vm46, %v3105, 0
  %v3128 = vsel %vm46, %v3106, 0
  %v3131 = vsel %vm46, %v3107, 0
  %3133 = vmatprep.subr.bf16.mxu0 0
  %3134 = vmatpush1.bf16.msra.mxu0 %v3120
  %3135 = vmatprep.subr.bf16.mxu0 0
  %3136 = vmatpush1.bf16.msra.mxu0 %v3121
  %3137 = vmatprep.subr.bf16.mxu0 0
  %3138 = vmatpush1.bf16.msra.mxu0 0
  %3139 = vmatprep.subr.bf16.mxu0 0
  %3140 = vmatpush1.bf16.msra.mxu0 0
  %3141 = vmatprep.subr.bf16.mxu0 0
  %3142 = vmatpush1.bf16.msra.mxu0 0
  %3143 = vmatprep.subr.bf16.mxu0 0
  %3144 = vmatpush1.bf16.msra.mxu0 0
  %3145 = vmatprep.subr.bf16.mxu0 0
  %3146 = vmatpush1.bf16.msra.mxu0 0
  %3147 = vmatprep.subr.bf16.mxu0 0
  %3148 = vmatpush1.bf16.msra.mxu0 0
  %3149 = vmatprep.subr.bf16.mxu0 0
  %3150 = vmatpush1.bf16.msra.mxu0 0
  %3151 = vmatprep.subr.bf16.mxu0 0
  %3152 = vmatpush1.bf16.msra.mxu0 0
  %3153 = vmatprep.subr.bf16.mxu0 0
  %3154 = vmatpush1.bf16.msra.mxu0 0
  %3155 = vmatprep.subr.bf16.mxu0 0
  %3156 = vmatpush1.bf16.msra.mxu0 0
  %3157 = vmatprep.subr.bf16.mxu0 0
  %3158 = vmatpush1.bf16.msra.mxu0 0
  %3159 = vmatprep.subr.bf16.mxu0 0
  %3160 = vmatpush1.bf16.msra.mxu0 0
  %3161 = vmatprep.subr.bf16.mxu0 0
  %3162 = vmatpush1.bf16.msra.mxu0 0
  %3163 = vmatprep.subr.bf16.mxu0 0
  %3164 = vmatpush1.bf16.msra.mxu0 0
  %3165 = vmatprep.mubr.bf16.mxu0 0
  %3166 = vmatmul.mubr.bf16.gmra.mrb[0].mxu0 %v3125
  %v3167 = vpop.f32.mrb[0].mxu0
  %v3168 = vadd.f32 %v3111, %v3167
  %v3169 = vpop.f32.mrb[0].mxu0
  %v3170 = vpop.f32.mrb[0].mxu0
  %v3171 = vadd.f32 %v3111, %v3170
  %v3172 = vpop.f32.mrb[0].mxu0
  %3173 = vmatprep.mubr.bf16.mxu0 0
  %3174 = vmatmul.mubr.bf16.gmra.mrb[0].mxu0 %v3128
  %v3175 = vpop.f32.mrb[0].mxu0
  %v3176 = vadd.f32 %v3111, %v3175
  %v3177 = vpop.f32.mrb[0].mxu0
  %v3178 = vpop.f32.mrb[0].mxu0
  %v3179 = vadd.f32 %v3111, %v3178
  %v3180 = vpop.f32.mrb[0].mxu0
  %3181 = vmatprep.mubr.bf16.mxu0 0
  %3182 = vmatmul.mubr.bf16.gmra.mrb[0].mxu0 %v3131
  %v3183 = vpop.f32.mrb[0].mxu0
  %v3184 = vadd.f32 %v3111, %v3183
  %v3185 = vpop.f32.mrb[0].mxu0
  %v3186 = vpop.f32.mrb[0].mxu0
  %v3187 = vadd.f32 %v3111, %v3186
  %v3188 = vpop.f32.mrb[0].mxu0
  %3189 = vdwg.mxu0
  %v3190 = vmul.f32 %v3168, 0.5
  %v3191 = vmul.f32 %v3171, 0.5
  %v3192 = vmul.f32 %v3176, 0.5
  %v3193 = vmul.f32 %v3179, 0.5
  %v3194 = vmul.f32 %v3184, 0.5
  %v3195 = vmul.f32 %v3187, 0.5
  %v3196 = vmul.f32 %v3168, 0.044715
  %v3197 = vmul.f32 %v3171, 0.044715
  %v3198 = vmul.f32 %v3176, 0.044715
  %v3199 = vmul.f32 %v3179, 0.044715
  %v3200 = vmul.f32 %v3184, 0.044715
  %v3201 = vmul.f32 %v3187, 0.044715
  %v3202 = vmul.f32 %v3196, %v3168
  %v3203 = vmul.f32 %v3197, %v3171
  %v3204 = vmul.f32 %v3198, %v3176
  %v3205 = vmul.f32 %v3199, %v3179
  %v3206 = vmul.f32 %v3200, %v3184
  %v3207 = vmul.f32 %v3201, %v3187
  %v3208 = vmul.f32 %v3202, %v3168
  %v3209 = vmul.f32 %v3203, %v3171
  %v3210 = vmul.f32 %v3204, %v3176
  %v3211 = vmul.f32 %v3205, %v3179
  %v3212 = vmul.f32 %v3206, %v3184
  %v3213 = vmul.f32 %v3207, %v3187
  %v3214 = vadd.f32 %v3168, %v3208
  %v3215 = vadd.f32 %v3171, %v3209
  %v3216 = vadd.f32 %v3176, %v3210
  %v3217 = vadd.f32 %v3179, %v3211
  %v3218 = vadd.f32 %v3184, %v3212
  %v3219 = vadd.f32 %v3187, %v3213
  %v3220 = vmul.f32 %v3214, 0.7978846
  %v3221 = vmul.f32 %v3215, 0.7978846
  %v3222 = vmul.f32 %v3216, 0.7978846
  %v3223 = vmul.f32 %v3217, 0.7978846
  %v3224 = vmul.f32 %v3218, 0.7978846
  %v3225 = vmul.f32 %v3219, 0.7978846
  %v3226 = vtanh.pop %v3220
  %v3227 = vtanh.pop %v3221
  %v3228 = vtanh.pop %v3222
  %v3229 = vtanh.pop %v3223
  %v3230 = vtanh.pop %v3224
  %v3231 = vtanh.pop %v3225
  %v3232 = vadd.f32 %v3226, 1.0
  %v3233 = vadd.f32 %v3227, 1.0
  %v3234 = vadd.f32 %v3228, 1.0
  %v3235 = vadd.f32 %v3229, 1.0
  %v3236 = vadd.f32 %v3230, 1.0
  %v3237 = vadd.f32 %v3231, 1.0
  %v3238 = vmul.f32 %v3190, %v3232
  %v3239 = vmul.f32 %v3191, %v3233
  %v3240 = vmul.f32 %v3192, %v3234
  %v3241 = vmul.f32 %v3193, %v3235
  %v3242 = vmul.f32 %v3194, %v3236
  %v3243 = vmul.f32 %v3195, %v3237
  %s3244 = scalar_lea.vmem %s7, 32
  %v3245 = vld [vmem:[%s3244] sm:$0xf]
  %v3246 = vld [vmem:[%s3244 + $0x4] sm:$0xf]
  %v3247 = vld [vmem:[%s3244 + $0x8] sm:$0xf]
  %v3248 = vld [vmem:[%s3244 + $0xc] sm:$0xf]
  %v3249 = vld [vmem:[%s3244 + $0x10] sm:$0xf]
  %v3250 = vld [vmem:[%s3244 + $0x14] sm:$0xf]
  %v3251 = vld [vmem:[%s3244 + $0x18] sm:$0xf]
  %v3252 = vld [vmem:[%s3244 + $0x1c] sm:$0xf]
  %v3253 = vpack.c.bf16 %v3239, %v3238
  %v3254 = vpack.c.bf16 %v3241, %v3240
  %v3255 = vpack.c.bf16 %v3243, %v3242
  %v3256 = vlaneseq
  %v3257 = vshrl.u32 %v3256, 7
  %v3258 = vsub.s32 5, %v3257
  %v3259 = vrot.slane %v1801, %v3258
  %v3268 = vunpack.c.l.b16 %v3245
  %v3269 = vunpack.c.l.b16 %v3246
  %v3270 = vunpack.c.l.b16 %v3247
  %v3271 = vunpack.c.l.b16 %v3248
  %v3272 = vunpack.c.l.b16 %v3249
  %v3273 = vunpack.c.l.b16 %v3250
  %v3274 = vunpack.c.l.b16 %v3251
  %v3275 = vunpack.c.l.b16 %v3252
  %v3276 = vpack.c.b16 %v3269, %v3268
  %v3277 = vpack.c.b16 %v3271, %v3270
  %v3278 = vpack.c.b16 %v3273, %v3272
  %v3279 = vpack.c.b16 %v3275, %v3274
  %v3285 = vsel %vm1629, %v3253, 0
  %v3288 = vsel %vm1629, %v3254, 0
  %v3291 = vsel %vm1629, %v3255, 0
  %3293 = vmatprep.subr.bf16.mxu0 0
  %3294 = vmatpush1.bf16.msra.mxu0 %v3276
  %3295 = vmatprep.subr.bf16.mxu0 0
  %3296 = vmatpush1.bf16.msra.mxu0 %v3277
  %3297 = vmatprep.subr.bf16.mxu0 0
  %3298 = vmatpush1.bf16.msra.mxu0 %v3278
  %3299 = vmatprep.subr.bf16.mxu0 0
  %3300 = vmatpush1.bf16.msra.mxu0 %v3279
  %3301 = vmatprep.subr.bf16.mxu0 0
  %3302 = vmatpush1.bf16.msra.mxu0 0
  %3303 = vmatprep.subr.bf16.mxu0 0
  %3304 = vmatpush1.bf16.msra.mxu0 0
  %3305 = vmatprep.subr.bf16.mxu0 0
  %3306 = vmatpush1.bf16.msra.mxu0 0
  %3307 = vmatprep.subr.bf16.mxu0 0
  %3308 = vmatpush1.bf16.msra.mxu0 0
  %3309 = vmatprep.subr.bf16.mxu0 0
  %3310 = vmatpush1.bf16.msra.mxu0 0
  %3311 = vmatprep.subr.bf16.mxu0 0
  %3312 = vmatpush1.bf16.msra.mxu0 0
  %3313 = vmatprep.subr.bf16.mxu0 0
  %3314 = vmatpush1.bf16.msra.mxu0 0
  %3315 = vmatprep.subr.bf16.mxu0 0
  %3316 = vmatpush1.bf16.msra.mxu0 0
  %3317 = vmatprep.subr.bf16.mxu0 0
  %3318 = vmatpush1.bf16.msra.mxu0 0
  %3319 = vmatprep.subr.bf16.mxu0 0
  %3320 = vmatpush1.bf16.msra.mxu0 0
  %3321 = vmatprep.subr.bf16.mxu0 0
  %3322 = vmatpush1.bf16.msra.mxu0 0
  %3323 = vmatprep.subr.bf16.mxu0 0
  %3324 = vmatpush1.bf16.msra.mxu0 0
  %3325 = vmatprep.mubr.bf16.mxu0 0
  %3326 = vmatmul.mubr.bf16.gmra.mrb[0].mxu0 %v3285
  %v3327 = vpop.f32.mrb[0].mxu0
  %v3328 = vadd.f32 %v3259, %v3327
  %v3329 = vpop.f32.mrb[0].mxu0
  %v3330 = vpop.f32.mrb[0].mxu0
  %v3331 = vadd.f32 %v3259, %v3330
  %v3332 = vpop.f32.mrb[0].mxu0
  %3333 = vmatprep.mubr.bf16.mxu0 0
  %3334 = vmatmul.mubr.bf16.gmra.mrb[0].mxu0 %v3288
  %v3335 = vpop.f32.mrb[0].mxu0
  %v3336 = vadd.f32 %v3259, %v3335
  %v3337 = vpop.f32.mrb[0].mxu0
  %v3338 = vpop.f32.mrb[0].mxu0
  %v3339 = vadd.f32 %v3259, %v3338
  %v3340 = vpop.f32.mrb[0].mxu0
  %3341 = vmatprep.mubr.bf16.mxu0 0
  %3342 = vmatmul.mubr.bf16.gmra.mrb[0].mxu0 %v3291
  %v3343 = vpop.f32.mrb[0].mxu0
  %v3344 = vadd.f32 %v3259, %v3343
  %v3345 = vpop.f32.mrb[0].mxu0
  %v3346 = vpop.f32.mrb[0].mxu0
  %v3347 = vadd.f32 %v3259, %v3346
  %v3348 = vpop.f32.mrb[0].mxu0
  %3349 = vdwg.mxu0
  %v3350 = vadd.f32 %v3094, %v3328
  %v3351 = vadd.f32 %v3095, %v3331
  %v3352 = vadd.f32 %v3096, %v3336
  %v3353 = vadd.f32 %v3097, %v3339
  %v3354 = vadd.f32 %v3098, %v3344
  %v3355 = vadd.f32 %v3099, %v3347
  %v3356 = vsel %vm46, %v3350, 0.0
  %3357 = vadd.xlane.f32.xlu0 %v3356
  %v3358 = vpop.xlane.xlu0 %3357
  %v3359 = vsel %vm46, %v3351, 0.0
  %3360 = vadd.xlane.f32.xlu0 %v3359
  %v3361 = vpop.xlane.xlu0 %3360
  %v3362 = vsel %vm46, %v3352, 0.0
  %3363 = vadd.xlane.f32.xlu0 %v3362
  %v3364 = vpop.xlane.xlu0 %3363
  %v3365 = vsel %vm46, %v3353, 0.0
  %3366 = vadd.xlane.f32.xlu0 %v3365
  %v3367 = vpop.xlane.xlu0 %3366
  %v3368 = vsel %vm46, %v3354, 0.0
  %3369 = vadd.xlane.f32.xlu0 %v3368
  %v3370 = vpop.xlane.xlu0 %3369
  %v3371 = vsel %vm46, %v3355, 0.0
  %3372 = vadd.xlane.f32.xlu0 %v3371
  %v3373 = vpop.xlane.xlu0 %3372
  %v3374 = vmul.f32 %v3358, %v65
  %v3375 = vmul.f32 %v3361, %v65
  %v3376 = vmul.f32 %v3364, %v65
  %v3377 = vmul.f32 %v3367, %v65
  %v3378 = vmul.f32 %v3370, %v65
  %v3379 = vmul.f32 %v3373, %v65
  %v3380 = vsub.f32 %v3350, %v3374
  %v3381 = vsub.f32 %v3351, %v3375
  %v3382 = vsub.f32 %v3352, %v3376
  %v3383 = vsub.f32 %v3353, %v3377
  %v3384 = vsub.f32 %v3354, %v3378
  %v3385 = vsub.f32 %v3355, %v3379
  %v3386 = vmul.f32 %v3380, %v3380
  %v3387 = vmul.f32 %v3381, %v3381
  %v3388 = vmul.f32 %v3382, %v3382
  %v3389 = vmul.f32 %v3383, %v3383
  %v3390 = vmul.f32 %v3384, %v3384
  %v3391 = vmul.f32 %v3385, %v3385
  %v3392 = vsel %vm46, %v3386, 0.0
  %3393 = vadd.xlane.f32.xlu0 %v3392
  %v3394 = vpop.xlane.xlu0 %3393
  %v3395 = vsel %vm46, %v3387, 0.0
  %3396 = vadd.xlane.f32.xlu0 %v3395
  %v3397 = vpop.xlane.xlu0 %3396
  %v3398 = vsel %vm46, %v3388, 0.0
  %3399 = vadd.xlane.f32.xlu0 %v3398
  %v3400 = vpop.xlane.xlu0 %3399
  %v3401 = vsel %vm46, %v3389, 0.0
  %3402 = vadd.xlane.f32.xlu0 %v3401
  %v3403 = vpop.xlane.xlu0 %3402
  %v3404 = vsel %vm46, %v3390, 0.0
  %3405 = vadd.xlane.f32.xlu0 %v3404
  %v3406 = vpop.xlane.xlu0 %3405
  %v3407 = vsel %vm46, %v3391, 0.0
  %3408 = vadd.xlane.f32.xlu0 %v3407
  %v3409 = vpop.xlane.xlu0 %3408
  %v3410 = vmul.f32 %v3394, %v65
  %v3411 = vmul.f32 %v3397, %v65
  %v3412 = vmul.f32 %v3400, %v65
  %v3413 = vmul.f32 %v3403, %v65
  %v3414 = vmul.f32 %v3406, %v65
  %v3415 = vmul.f32 %v3409, %v65
  %v3416 = vadd.f32 %v3410, 1e-12
  %v3417 = vadd.f32 %v3411, 1e-12
  %v3418 = vadd.f32 %v3412, 1e-12
  %v3419 = vadd.f32 %v3413, 1e-12
  %v3420 = vadd.f32 %v3414, 1e-12
  %v3421 = vadd.f32 %v3415, 1e-12
  %v3422 = vrsqrt.pop %v3416
  %v3423 = vrsqrt.pop %v3417
  %v3424 = vrsqrt.pop %v3418
  %v3425 = vrsqrt.pop %v3419
  %v3426 = vrsqrt.pop %v3420
  %v3427 = vrsqrt.pop %v3421
  %v3428 = vmul.f32 %v3380, %v3422
  %v3429 = vmul.f32 %v3381, %v3423
  %v3430 = vmul.f32 %v3382, %v3424
  %v3431 = vmul.f32 %v3383, %v3425
  %v3432 = vmul.f32 %v3384, %v3426
  %v3433 = vmul.f32 %v3385, %v3427
  %v3434 = vlaneseq
  %v3435 = vshrl.u32 %v3434, 7
  %v3436 = vsub.s32 6, %v3435
  %v3437 = vrot.slane %v1801, %v3436
  %v3438 = vmul.f32 %v3428, %v3437
  %v3439 = vmul.f32 %v3429, %v3437
  %v3440 = vmul.f32 %v3430, %v3437
  %v3441 = vmul.f32 %v3431, %v3437
  %v3442 = vmul.f32 %v3432, %v3437
  %v3443 = vmul.f32 %v3433, %v3437
  %v3444 = vlaneseq
  %v3445 = vshrl.u32 %v3444, 7
  %v3446 = vsub.s32 7, %v3445
  %v3447 = vrot.slane %v1801, %v3446
  %v3448 = vadd.f32 %v3438, %v3447
  %v3449 = vadd.f32 %v3439, %v3447
  %v3450 = vadd.f32 %v3440, %v3447
  %v3451 = vadd.f32 %v3441, %v3447
  %v3452 = vadd.f32 %v3442, %v3447
  %v3453 = vadd.f32 %v3443, %v3447
  %v3454 = vld [vmem:[%s8] sm:$0xf]
  %v3455 = vld [vmem:[%s8 + $0x4] sm:$0xf]
  %v3456 = vld [vmem:[%s8 + $0x8] sm:$0xf]
  %v3457 = vld [vmem:[%s8 + $0xc] sm:$0xf]
  %v3458 = vpack.c.bf16 %v3448, %v3448
  %v3459 = vpack.c.bf16 %v3449, %v3449
  %v3460 = vpack.c.bf16 %v3450, %v3450
  %v3461 = vpack.c.bf16 %v3451, %v3451
  %v3462 = vpack.c.bf16 %v3452, %v3452
  %v3463 = vpack.c.bf16 %v3453, %v3453
  %v3464 = vlaneseq
  %v3465 = vshrl.u32 %v3464, 7
  %v3466 = vsub.s32 2, %v3465
  %v3467 = vrot.slane %v39, %v3466
  %v3474 = vunpack.c.l.b16 %v3458
  %v3475 = vunpack.c.l.b16 %v3459
  %v3476 = vunpack.c.l.b16 %v3460
  %v3477 = vunpack.c.l.b16 %v3461
  %v3478 = vunpack.c.l.b16 %v3462
  %v3479 = vunpack.c.l.b16 %v3463
  %v3480 = vrot.slane %v3475, 7
  %vm3481 = vcmask 1041409
  %v3482 = vsel %vm3481, %v3480, %v3474
  %v3483 = vrot.slane %v3476, 6
  %vm3484 = vcmask 1042434
  %v3485 = vsel %vm3484, %v3483, %v3482
  %v3486 = vrot.slane %v3477, 5
  %vm3487 = vcmask 1043459
  %v3488 = vsel %vm3487, %v3486, %v3485
  %v3489 = vrot.slane %v3478, 4
  %vm3490 = vcmask 1044484
  %v3491 = vsel %vm3490, %v3489, %v3488
  %v3492 = vrot.slane %v3479, 3
  %vm3493 = vcmask 1045509
  %v3494 = vsel %vm3493, %v3492, %v3491
  %v3495 = vpack.c.b16 %v3494, %v3494
  %v3500 = vunpack.c.l.b16 %v3454
  %v3501 = vunpack.c.l.b16 %v3455
  %v3502 = vunpack.c.l.b16 %v3456
  %v3503 = vunpack.c.l.b16 %v3457
  %v3504 = vpack.c.b16 %v3501, %v3500
  %v3505 = vpack.c.b16 %v3503, %v3502
  %v3509 = vsel %vm46, %v3495, 0
  %3511 = vmatprep.subr.bf16.mxu0 0
  %3512 = vmatpush1.bf16.msra.mxu0 %v3504
  %3513 = vmatprep.subr.bf16.mxu0 0
  %3514 = vmatpush1.bf16.msra.mxu0 %v3505
  %3515 = vmatprep.subr.bf16.mxu0 0
  %3516 = vmatpush1.bf16.msra.mxu0 0
  %3517 = vmatprep.subr.bf16.mxu0 0
  %3518 = vmatpush1.bf16.msra.mxu0 0
  %3519 = vmatprep.subr.bf16.mxu0 0
  %3520 = vmatpush1.bf16.msra.mxu0 0
  %3521 = vmatprep.subr.bf16.mxu0 0
  %3522 = vmatpush1.bf16.msra.mxu0 0
  %3523 = vmatprep.subr.bf16.mxu0 0
  %3524 = vmatpush1.bf16.msra.mxu0 0
  %3525 = vmatprep.subr.bf16.mxu0 0
  %3526 = vmatpush1.bf16.msra.mxu0 0
  %3527 = vmatprep.subr.bf16.mxu0 0
  %3528 = vmatpush1.bf16.msra.mxu0 0
  %3529 = vmatprep.subr.bf16.mxu0 0
  %3530 = vmatpush1.bf16.msra.mxu0 0
  %3531 = vmatprep.subr.bf16.mxu0 0
  %3532 = vmatpush1.bf16.msra.mxu0 0
  %3533 = vmatprep.subr.bf16.mxu0 0
  %3534 = vmatpush1.bf16.msra.mxu0 0
  %3535 = vmatprep.subr.bf16.mxu0 0
  %3536 = vmatpush1.bf16.msra.mxu0 0
  %3537 = vmatprep.subr.bf16.mxu0 0
  %3538 = vmatpush1.bf16.msra.mxu0 0
  %3539 = vmatprep.subr.bf16.mxu0 0
  %3540 = vmatpush1.bf16.msra.mxu0 0
  %3541 = vmatprep.subr.bf16.mxu0 0
  %3542 = vmatpush1.bf16.msra.mxu0 0
  %3543 = vmatprep.mubr.bf16.mxu0 0
  %3544 = vmatmul.mubr.bf16.gmra.mrb[0].mxu0 %v3509
  %v3545 = vpop.f32.mrb[0].mxu0
  %v3546 = vadd.f32 %v3467, %v3545
  %v3547 = vpop.f32.mrb[0].mxu0
  %v3548 = vpop.f32.mrb[0].mxu0
  %v3549 = vpop.f32.mrb[0].mxu0
  %3550 = vdwg.mxu0
  %v3551 = vtanh.pop %v3546
  %v3552 = vpack.c.bf16 %v3551, %v3551
  %v3553 = vlaneseq
  %v3554 = vshrl.u32 %v3553, 7
  %v3555 = vsub.s32 3, %v3554
  %v3556 = vrot.slane %v39, %v3555
  %3557 = vrot.lane.b32.xlu0 %v3504, 96
  %v3558 = vpop.permute.xlu0 %3557
  %3559 = vrot.lane.b32.xlu0 %v3505, 96
  %v3560 = vpop.permute.xlu0 %3559
  %v3564 = vsel %vm46, %v3552, 0
  %3566 = vmatprep.subr.bf16.mxu0 0
  %3567 = vmatpush1.bf16.msra.mxu0 %v3558
  %3568 = vmatprep.subr.bf16.mxu0 0
  %3569 = vmatpush1.bf16.msra.mxu0 %v3560
  %3570 = vmatprep.subr.bf16.mxu0 0
  %3571 = vmatpush1.bf16.msra.mxu0 0
  %3572 = vmatprep.subr.bf16.mxu0 0
  %3573 = vmatpush1.bf16.msra.mxu0 0
  %3574 = vmatprep.subr.bf16.mxu0 0
  %3575 = vmatpush1.bf16.msra.mxu0 0
  %3576 = vmatprep.subr.bf16.mxu0 0
  %3577 = vmatpush1.bf16.msra.mxu0 0
  %3578 = vmatprep.subr.bf16.mxu0 0
  %3579 = vmatpush1.bf16.msra.mxu0 0
  %3580 = vmatprep.subr.bf16.mxu0 0
  %3581 = vmatpush1.bf16.msra.mxu0 0
  %3582 = vmatprep.subr.bf16.mxu0 0
  %3583 = vmatpush1.bf16.msra.mxu0 0
  %3584 = vmatprep.subr.bf16.mxu0 0
  %3585 = vmatpush1.bf16.msra.mxu0 0
  %3586 = vmatprep.subr.bf16.mxu0 0
  %3587 = vmatpush1.bf16.msra.mxu0 0
  %3588 = vmatprep.subr.bf16.mxu0 0
  %3589 = vmatpush1.bf16.msra.mxu0 0
  %3590 = vmatprep.subr.bf16.mxu0 0
  %3591 = vmatpush1.bf16.msra.mxu0 0
  %3592 = vmatprep.subr.bf16.mxu0 0
  %3593 = vmatpush1.bf16.msra.mxu0 0
  %3594 = vmatprep.subr.bf16.mxu0 0
  %3595 = vmatpush1.bf16.msra.mxu0 0
  %3596 = vmatprep.subr.bf16.mxu0 0
  %3597 = vmatpush1.bf16.msra.mxu0 0
  %3598 = vmatprep.mubr.bf16.mxu0 0
  %3599 = vmatmul.mubr.bf16.gmra.mrb[0].mxu0 %v3564
  %v3600 = vpop.f32.mrb[0].mxu0
  %v3601 = vadd.f32 %v3556, %v3600
  %v3602 = vpop.f32.mrb[0].mxu0
  %v3603 = vpop.f32.mrb[0].mxu0
  %v3604 = vpop.f32.mrb[0].mxu0
  %3605 = vdwg.mxu0
  %vm3606 = vcmask 5120
  %3607 = vst.msk [vmem:[%s9] sm:$0x3f] %vm3606, %v3601
  // Predicated region
  $region38: #{bert_cross_forward.1} parent=0 // pred_check
    _
  $region39: #{bert_cross_forward.1} parent=0 // pred_check_branch
    %3609 = sbr.rel (0) target = $region41
  $region40: #{bert_cross_forward.1} parent=0 // pred_region
    _
  $region41: #{bert_cross_forward.1} parent=0 // pred_fallthru
    _
  // Predicated region
  $region42: #{bert_cross_forward.1} parent=0 // pred_check
    _
  $region43: #{bert_cross_forward.1} parent=0 // pred_check_branch
    %3611 = sbr.rel (0) target = $region45
  $region44: #{bert_cross_forward.1} parent=0 // pred_region
    _
  $region45: #{bert_cross_forward.1} parent=0 // pred_fallthru
    _

</llo_original>
